<compile_context>
chip_gen: v5e
topology: v5e:2x2
jax: 0.10.0
libtpu: 0.0.40
codegen_flags: <defaults>
</compile_context>

<pallas_src>
import jax
import jax.numpy as jnp
from jax import lax
from jax.experimental import pallas as pl
from jax.experimental.pallas import tpu as pltpu

# ------------------------- model hyper-parameters ---------------------------
VOCAB_SIZE = 50
EMB_DIM = 32          # embedding_dim
Y_DIM = 4
Z_DIM = 3
NUM_RNN_LAYERS = 2    # lstm_num_layer
NUM_BLOCKS = 4        # blocklist_1 (2) + blocklist_2 (2) MLPFANBlocks
LN_EPS = 1e-5

OUT_W = 8             # combined head width: y lanes 0..3, z lanes 4..6, pad 7
TB_MAX = 256          # batch tile = MXU M dim (256 for v6e/v7x; use 128 on v5e)

WEIGHT_NAMES = ("wih", "whh", "b_rnn", "w01", "b01", "wf1", "bf1", "wf2",
                "bf2", "ln_g", "ln_b", "wh", "bh")


def _round_up(x, m):
    return (x + m - 1) // m * m


def _full_spec(arr):
    """Whole-array (replicated) BlockSpec for a weight used by every grid step."""
    nd = arr.ndim
    return pl.BlockSpec(arr.shape, lambda i, nd=nd: (0,) * nd)


# ------------------------------ fused kernel --------------------------------
def fused_kernel(x_ref, wih_ref, whh_ref, brnn_ref, w01_ref, b01_ref,
                 wf1_ref, bf1_ref, wf2_ref, bf2_ref, g_ref, beta_ref,
                 wh_ref, bh_ref, out_ref, seq_ref):
    """2-layer tanh RNN + 4 MLPFANBlocks + classifier_y / classifier_z.

    x_ref:    (S, TB, E)  f32   time-major embedded batch tile
    wih_ref:  (L, E, E)   bf16  input->hidden weights, stored (in, out)
    whh_ref:  (L, E, E)   f32   hidden->hidden weights (f32 recurrence)
    brnn_ref: (L, 1, E)   f32   combined b_ih + b_hh
    w01_ref:  (NB, E, E)  bf16  folded MLP0 @ MLP1 per FAN block
    b01_ref:  (NB, 1, E)  f32
    wf1_ref / wf2_ref: (NB, E, E) bf16; bf1_ref / bf2_ref: (NB, 1, E) f32
    g_ref / beta_ref:  (NB, 1, E) f32   LayerNorm gamma / beta
    wh_ref:   (2, E, 8)   bf16  classifier weights (y lanes 0..3, z lanes 4..6)
    bh_ref:   (2, 1, 8)   f32
    out_ref:  (S, TB, 8)  f32   combined y|z output (written once)
    seq_ref:  (S, TB, E)  f32   VMEM scratch: xproj, then per-layer RNN output
    """
    S, TB, E = x_ref.shape
    n_tok = S * TB

    def mm_bf16(v, w):
        return jnp.dot(v.astype(jnp.bfloat16), w,
                       preferred_element_type=jnp.float32)

    # --------------------------- 2-layer tanh RNN ---------------------------
    unroll = True if S <= 32 else 8
    for layer in range(NUM_RNN_LAYERS):                 # static (2 layers)
        src = x_ref if layer == 0 else seq_ref
        x_all = src[...].reshape(n_tok, E)              # (S*TB, E) f32

        # Hoisted input projection: one matmul over all timesteps of the tile.
        xproj = mm_bf16(x_all, wih_ref[layer]) + brnn_ref[layer]
        seq_ref[...] = xproj.reshape(S, TB, E)

        whh = whh_ref[layer]                            # (E, E) f32

        def step(t, h):
            h = jnp.tanh(
                jnp.dot(h, whh, preferred_element_type=jnp.float32)
                + seq_ref[t])                           # (TB, E)
            seq_ref[t] = h                              # dense slab store
            return h

        lax.fori_loop(0, S, step, jnp.zeros((TB, E), jnp.float32),
                      unroll=unroll)

    # ------------------ MLPFANBlocks + classifier heads ---------------------
    tok = seq_ref[...].reshape(n_tok, E)                # last-layer RNN output

    def fan_block(v, bidx):
        v = mm_bf16(v, w01_ref[bidx]) + b01_ref[bidx]               # MLP0@MLP1
        h = jnp.maximum(mm_bf16(v, wf1_ref[bidx]) + bf1_ref[bidx], 0.0)
        h = mm_bf16(h, wf2_ref[bidx]) + bf2_ref[bidx]
        r = h + v                                                   # residual
        mu = jnp.mean(r, axis=-1, keepdims=True)                    # LayerNorm
        var = jnp.mean((r - mu) ** 2, axis=-1, keepdims=True)
        return (r - mu) * lax.rsqrt(var + LN_EPS) * g_ref[bidx] + beta_ref[bidx]

    x = tok
    for bidx in range(2):                               # blocklist_1
        x = fan_block(x, bidx)
    yz = mm_bf16(x, wh_ref[0]) + bh_ref[0]              # y in lanes 0..3
    for bidx in range(2, 4):                            # blocklist_2
        x = fan_block(x, bidx)
    yz = yz + mm_bf16(x, wh_ref[1]) + bh_ref[1]         # z in lanes 4..6

    out_ref[...] = yz.reshape(S, TB, OUT_W).astype(out_ref.dtype)   # one store


# ------------------------------ wrapper --------------------------------------
def contrast_rnn_forward(lex, kp):
    """lex: int32 (B, S) token ids; kp: prepared kernel params.

    Returns (out1 (B, S, Y_DIM), out2 (B, S, Z_DIM))."""
    B, S = lex.shape
    E = EMB_DIM

    # Embedding lookup: tiny data-dependent gather, kept as plain-JAX glue.
    # Emitted time-major (S, B, E) so per-timestep slices are leading-dim slices.
    emb = jnp.take(kp["embedding"], lex.T, axis=0).astype(jnp.float32)

    TB = TB_MAX if B >= TB_MAX else _round_up(B, 8)
    B_pad = _round_up(B, TB)
    if B_pad != B:
        emb = jnp.pad(emb, ((0, 0), (0, B_pad - B), (0, 0)))

    out = pl.pallas_call(
        fused_kernel,
        out_shape=jax.ShapeDtypeStruct((S, B_pad, OUT_W), jnp.float32),
        grid=(B_pad // TB,),
        in_specs=[pl.BlockSpec((S, TB, E), lambda i: (0, i, 0))]
                 + [_full_spec(kp[n]) for n in WEIGHT_NAMES],
        out_specs=pl.BlockSpec((S, TB, OUT_W), lambda i: (0, i, 0)),
        scratch_shapes=[pltpu.VMEM((S, TB, E), jnp.float32)],
        compiler_params=pltpu.CompilerParams(
            dimension_semantics=("parallel",)),
    )(emb, *[kp[n] for n in WEIGHT_NAMES])

    out = jnp.transpose(out, (1, 0, 2))[:B]             # (B, S, OUT_W) tiny glue
    out1 = out[..., :Y_DIM]
    out2 = out[..., Y_DIM:Y_DIM + Z_DIM]
    return out1, out2


# ----------------------- deterministic parameter init ------------------------
def init_params(key):
    E = EMB_DIM
    ks = jax.random.split(key, 12)

    def unif(k, shape, fan_in):
        bound = 1.0 / jnp.sqrt(jnp.float32(fan_in))
        return jax.random.uniform(k, shape, jnp.float32, -bound, bound)

    return {
        "embedding": jax.random.normal(ks[0], (VOCAB_SIZE, E), jnp.float32),
        # RNN weights, stored (in, out)
        "wih": unif(ks[1], (NUM_RNN_LAYERS, E, E), E),
        "whh": unif(ks[2], (NUM_RNN_LAYERS, E, E), E),
        "bih": unif(ks[3], (NUM_RNN_LAYERS, 1, E), E),
        "bhh": unif(ks[4], (NUM_RNN_LAYERS, 1, E), E),
        # MLPFANBlock stacks: per block [MLP0, MLP1, FF1, FF2]
        "wb": unif(ks[5], (NUM_BLOCKS, 4, E, E), E),
        "bb": unif(ks[6], (NUM_BLOCKS, 4, 1, E), E),
        "ln_g": jnp.ones((NUM_BLOCKS, 1, E), jnp.float32),
        "ln_b": jnp.zeros((NUM_BLOCKS, 1, E), jnp.float32),
        # classifiers
        "wy": unif(ks[7], (E, Y_DIM), E),
        "by": unif(ks[8], (1, Y_DIM), E),
        "wz": unif(ks[9], (E, Z_DIM), E),
        "bz": unif(ks[10], (1, Z_DIM), E),
    }


def prepare_params(p):
    """One-time preprocessing into kernel-ready params (folds, pads, bf16)."""
    E = EMB_DIM
    wb, bb = p["wb"], p["bb"]

    # Fold MLP0 -> MLP1 (no nonlinearity between them): exact composition.
    w01 = jnp.einsum("bij,bjk->bik", wb[:, 0], wb[:, 1])              # (NB,E,E)
    b01 = jnp.einsum("bij,bjk->bik", bb[:, 0], wb[:, 1]) + bb[:, 1]   # (NB,1,E)

    # Combined 8-lane classifier heads (disjoint lane ranges, lane 7 unused).
    wy_pad = jnp.zeros((E, OUT_W), jnp.float32).at[:, :Y_DIM].set(p["wy"])
    by_pad = jnp.zeros((1, OUT_W), jnp.float32).at[:, :Y_DIM].set(p["by"])
    wz_pad = jnp.zeros((E, OUT_W), jnp.float32).at[:, Y_DIM:Y_DIM + Z_DIM].set(p["wz"])
    bz_pad = jnp.zeros((1, OUT_W), jnp.float32).at[:, Y_DIM:Y_DIM + Z_DIM].set(p["bz"])

    return {
        "embedding": p["embedding"],
        # RNN: bf16 input-projection weights, f32 recurrence, combined bias
        "wih": p["wih"].astype(jnp.bfloat16),
        "whh": p["whh"],
        "b_rnn": p["bih"] + p["bhh"],
        # FAN blocks
        "w01": w01.astype(jnp.bfloat16),
        "b01": b01,
        "wf1": wb[:, 2].astype(jnp.bfloat16),
        "bf1": bb[:, 2],
        "wf2": wb[:, 3].astype(jnp.bfloat16),
        "bf2": bb[:, 3],
        "ln_g": p["ln_g"],
        "ln_b": p["ln_b"],
        # classifiers (stacked, 8-lane)
        "wh": jnp.stack([wy_pad, wz_pad]).astype(jnp.bfloat16),   # (2, E, 8)
        "bh": jnp.stack([by_pad, bz_pad]),                        # (2, 1, 8)
    }


# ---------------------------- pure-JAX reference -----------------------------
def reference_forward(lex, p):
    B, S = lex.shape
    x = jnp.take(p["embedding"], lex, axis=0)            # (B, S, E)
    for layer in range(NUM_RNN_LAYERS):
        h = jnp.zeros((B, EMB_DIM), jnp.float32)
        outs = []
        for t in range(S):
            h = jnp.tanh(x[:, t] @ p["wih"][layer] + p["bih"][layer]
                         + h @ p["whh"][layer] + p["bhh"][layer])
            outs.append(h)
        x = jnp.stack(outs, axis=1)

    def ln(v, g, b):
        mu = v.mean(-1, keepdims=True)
        var = ((v - mu) ** 2).mean(-1, keepdims=True)
        return (v - mu) / jnp.sqrt(var + LN_EPS) * g + b

    def block(v, bidx):
        v = v @ p["wb"][bidx, 0] + p["bb"][bidx, 0]
        v = v @ p["wb"][bidx, 1] + p["bb"][bidx, 1]
        h = jnp.maximum(v @ p["wb"][bidx, 2] + p["bb"][bidx, 2], 0.0)
        h = h @ p["wb"][bidx, 3] + p["bb"][bidx, 3]
        return ln(h + v, p["ln_g"][bidx], p["ln_b"][bidx])

    for bidx in range(2):
        x = block(x, bidx)
    out1 = x @ p["wy"] + p["by"]
    for bidx in range(2, 4):
        x = block(x, bidx)
    out2 = x @ p["wz"] + p["bz"]
    return out1, out2


# ---------------------------------- main -------------------------------------
if __name__ == "__main__":
    key = jax.random.PRNGKey(0)
    k_param, k_lex = jax.random.split(key)

    B, S = 2, 8
    lex = jax.random.randint(k_lex, (B, S), 0, VOCAB_SIZE, dtype=jnp.int32)
    params = init_params(k_param)
    kparams = prepare_params(params)          # one-time fold / pad / bf16 cast

    out1, out2 = jax.jit(contrast_rnn_forward)(lex, kparams)
    out1 = jax.block_until_ready(out1)
    out2 = jax.block_until_ready(out2)

    assert out1.shape == (B, S, Y_DIM) and out2.shape == (B, S, Z_DIM)

    ref1, ref2 = reference_forward(lex, params)
    if not (jnp.allclose(out1, ref1, atol=5e-2, rtol=5e-2)
            and jnp.allclose(out2, ref2, atol=5e-2, rtol=5e-2)):
        raise AssertionError(
            f"mismatch: out1 max|d|={float(jnp.max(jnp.abs(out1 - ref1)))}, "
            f"out2 max|d|={float(jnp.max(jnp.abs(out2 - ref2)))}")

    print("KERNEL_OK")
</pallas_src>

<mosaic_0001>
module attributes {stable_mosaic.version = 11 : i64} {
  func.func @fused_kernel(%arg0: i32, %arg1: memref<8x8x32xf32, #tpu.memory_space<vmem>>, %arg2: memref<2x32x32xbf16, #tpu.memory_space<vmem>>, %arg3: memref<2x32x32xf32, #tpu.memory_space<vmem>>, %arg4: memref<2x1x32xf32, #tpu.memory_space<vmem>>, %arg5: memref<4x32x32xbf16, #tpu.memory_space<vmem>>, %arg6: memref<4x1x32xf32, #tpu.memory_space<vmem>>, %arg7: memref<4x32x32xbf16, #tpu.memory_space<vmem>>, %arg8: memref<4x1x32xf32, #tpu.memory_space<vmem>>, %arg9: memref<4x32x32xbf16, #tpu.memory_space<vmem>>, %arg10: memref<4x1x32xf32, #tpu.memory_space<vmem>>, %arg11: memref<4x1x32xf32, #tpu.memory_space<vmem>>, %arg12: memref<4x1x32xf32, #tpu.memory_space<vmem>>, %arg13: memref<2x32x8xbf16, #tpu.memory_space<vmem>>, %arg14: memref<2x1x8xf32, #tpu.memory_space<vmem>>, %arg15: memref<8x8x8xf32, #tpu.memory_space<vmem>>, %arg16: memref<8x8x32xf32, #tpu.memory_space<vmem>>) attributes {dimension_semantics = [#tpu.dimension_semantics<parallel>], iteration_bounds = array<i64: 1>, scalar_prefetch = 0 : i64, scratch_operands = 1 : i64, tpu.core_type = #tpu.core_type<tc>, window_params = [{transform_indices = @transform_0, window_bounds = array<i64: 8, 8, 32>}, {pipeline_mode = #tpu.pipeline_mode<synchronous>, transform_indices = @transform_1, window_bounds = array<i64: 2, 32, 32>}, {pipeline_mode = #tpu.pipeline_mode<synchronous>, transform_indices = @transform_2, window_bounds = array<i64: 2, 32, 32>}, {pipeline_mode = #tpu.pipeline_mode<synchronous>, transform_indices = @transform_3, window_bounds = array<i64: 2, 1, 32>}, {pipeline_mode = #tpu.pipeline_mode<synchronous>, transform_indices = @transform_4, window_bounds = array<i64: 4, 32, 32>}, {pipeline_mode = #tpu.pipeline_mode<synchronous>, transform_indices = @transform_5, window_bounds = array<i64: 4, 1, 32>}, {pipeline_mode = #tpu.pipeline_mode<synchronous>, transform_indices = @transform_6, window_bounds = array<i64: 4, 32, 32>}, {pipeline_mode = #tpu.pipeline_mode<synchronous>, transform_indices = @transform_7, window_bounds = array<i64: 4, 1, 32>}, {pipeline_mode = #tpu.pipeline_mode<synchronous>, transform_indices = @transform_8, window_bounds = array<i64: 4, 32, 32>}, {pipeline_mode = #tpu.pipeline_mode<synchronous>, transform_indices = @transform_9, window_bounds = array<i64: 4, 1, 32>}, {pipeline_mode = #tpu.pipeline_mode<synchronous>, transform_indices = @transform_10, window_bounds = array<i64: 4, 1, 32>}, {pipeline_mode = #tpu.pipeline_mode<synchronous>, transform_indices = @transform_11, window_bounds = array<i64: 4, 1, 32>}, {pipeline_mode = #tpu.pipeline_mode<synchronous>, transform_indices = @transform_12, window_bounds = array<i64: 2, 32, 8>}, {pipeline_mode = #tpu.pipeline_mode<synchronous>, transform_indices = @transform_13, window_bounds = array<i64: 2, 1, 8>}, {transform_indices = @transform_14, window_bounds = array<i64: 8, 8, 8>}]} {
    %c0 = arith.constant 0 : index
    %c0_0 = arith.constant 0 : index
    %c0_1 = arith.constant 0 : index
    %0 = vector.load %arg1[%c0, %c0_0, %c0_1] : memref<8x8x32xf32, #tpu.memory_space<vmem>>, vector<8x8x32xf32>
    %1 = vector.shape_cast %0 : vector<8x8x32xf32> to vector<64x32xf32>
    %c0_2 = arith.constant 0 : index
    %c0_3 = arith.constant 0 : index
    %c0_4 = arith.constant 0 : index
    %2 = vector.load %arg2[%c0_2, %c0_3, %c0_4] : memref<2x32x32xbf16, #tpu.memory_space<vmem>>, vector<1x32x32xbf16>
    %3 = vector.shape_cast %2 : vector<1x32x32xbf16> to vector<32x32xbf16>
    %4 = arith.truncf %1 : vector<64x32xf32> to vector<64x32xbf16>
    %cst = arith.constant dense<0.000000e+00> : vector<64x32xf32>
    %5 = tpu.matmul %4, %3, %cst {dimension_numbers = #tpu.dot_dimension_numbers<[1], [0], [0], [1], [0, 0, 1, 1], [], []>} : vector<64x32xbf16>, vector<32x32xbf16>, vector<64x32xf32> -> vector<64x32xf32>
    %c0_5 = arith.constant 0 : index
    %c0_6 = arith.constant 0 : index
    %c0_7 = arith.constant 0 : index
    %6 = vector.load %arg4[%c0_5, %c0_6, %c0_7] : memref<2x1x32xf32, #tpu.memory_space<vmem>>, vector<1x1x32xf32>
    %7 = vector.shape_cast %6 : vector<1x1x32xf32> to vector<1x32xf32>
    %8 = vector.broadcast %7 : vector<1x32xf32> to vector<64x32xf32>
    %9 = arith.addf %5, %8 : vector<64x32xf32>
    %10 = vector.shape_cast %9 : vector<64x32xf32> to vector<8x8x32xf32>
    %c0_8 = arith.constant 0 : index
    %c0_9 = arith.constant 0 : index
    %c0_10 = arith.constant 0 : index
    %11 = vector.load %arg16[%c0_8, %c0_9, %c0_10] : memref<8x8x32xf32, #tpu.memory_space<vmem>>, vector<8x8x32xf32>
    tpu.vector_store %arg16[%c0_8, %c0_9, %c0_10], %10 {strides = array<i32>} : memref<8x8x32xf32, #tpu.memory_space<vmem>>, vector<8x8x32xf32>,
    %c0_11 = arith.constant 0 : index
    %c0_12 = arith.constant 0 : index
    %c0_13 = arith.constant 0 : index
    %12 = vector.load %arg3[%c0_11, %c0_12, %c0_13] : memref<2x32x32xf32, #tpu.memory_space<vmem>>, vector<1x32x32xf32>
    %13 = vector.shape_cast %12 : vector<1x32x32xf32> to vector<32x32xf32>
    %cst_14 = arith.constant 0.000000e+00 : f32
    %14 = vector.broadcast %cst_14 : f32 to vector<8x32xf32>
    %c0_i32 = arith.constant 0 : i32
    %cst_15 = arith.constant dense<0.000000e+00> : vector<8x32xf32>
    %15 = tpu.matmul %14, %13, %cst_15 {dimension_numbers = #tpu.dot_dimension_numbers<[1], [0], [0], [1], [0, 0, 1, 1], [], []>} : vector<8x32xf32>, vector<32x32xf32>, vector<8x32xf32> -> vector<8x32xf32>
    %16 = arith.index_cast %c0_i32 : i32 to index
    %c0_16 = arith.constant 0 : index
    %c0_17 = arith.constant 0 : index
    %17 = vector.load %arg16[%16, %c0_16, %c0_17] : memref<8x8x32xf32, #tpu.memory_space<vmem>>, vector<1x8x32xf32>
    %18 = vector.shape_cast %17 : vector<1x8x32xf32> to vector<8x32xf32>
    %19 = arith.addf %15, %18 : vector<8x32xf32>
    %20 = math.tanh %19 : vector<8x32xf32>
    %21 = arith.index_cast %c0_i32 : i32 to index
    %c0_18 = arith.constant 0 : index
    %c0_19 = arith.constant 0 : index
    %22 = vector.load %arg16[%21, %c0_18, %c0_19] : memref<8x8x32xf32, #tpu.memory_space<vmem>>, vector<1x8x32xf32>
    %23 = vector.shape_cast %22 : vector<1x8x32xf32> to vector<8x32xf32>
    %24 = vector.shape_cast %20 : vector<8x32xf32> to vector<1x8x32xf32>
    tpu.vector_store %arg16[%21, %c0_18, %c0_19], %24 {strides = array<i32>} : memref<8x8x32xf32, #tpu.memory_space<vmem>>, vector<1x8x32xf32>,
    %c1_i32 = arith.constant 1 : i32
    %cst_20 = arith.constant dense<0.000000e+00> : vector<8x32xf32>
    %25 = tpu.matmul %20, %13, %cst_20 {dimension_numbers = #tpu.dot_dimension_numbers<[1], [0], [0], [1], [0, 0, 1, 1], [], []>} : vector<8x32xf32>, vector<32x32xf32>, vector<8x32xf32> -> vector<8x32xf32>
    %26 = arith.index_cast %c1_i32 : i32 to index
    %c0_21 = arith.constant 0 : index
    %c0_22 = arith.constant 0 : index
    %27 = vector.load %arg16[%26, %c0_21, %c0_22] : memref<8x8x32xf32, #tpu.memory_space<vmem>>, vector<1x8x32xf32>
    %28 = vector.shape_cast %27 : vector<1x8x32xf32> to vector<8x32xf32>
    %29 = arith.addf %25, %28 : vector<8x32xf32>
    %30 = math.tanh %29 : vector<8x32xf32>
    %31 = arith.index_cast %c1_i32 : i32 to index
    %c0_23 = arith.constant 0 : index
    %c0_24 = arith.constant 0 : index
    %32 = vector.load %arg16[%31, %c0_23, %c0_24] : memref<8x8x32xf32, #tpu.memory_space<vmem>>, vector<1x8x32xf32>
    %33 = vector.shape_cast %32 : vector<1x8x32xf32> to vector<8x32xf32>
    %34 = vector.shape_cast %30 : vector<8x32xf32> to vector<1x8x32xf32>
    tpu.vector_store %arg16[%31, %c0_23, %c0_24], %34 {strides = array<i32>} : memref<8x8x32xf32, #tpu.memory_space<vmem>>, vector<1x8x32xf32>,
    %c2_i32 = arith.constant 2 : i32
    %cst_25 = arith.constant dense<0.000000e+00> : vector<8x32xf32>
    %35 = tpu.matmul %30, %13, %cst_25 {dimension_numbers = #tpu.dot_dimension_numbers<[1], [0], [0], [1], [0, 0, 1, 1], [], []>} : vector<8x32xf32>, vector<32x32xf32>, vector<8x32xf32> -> vector<8x32xf32>
    %36 = arith.index_cast %c2_i32 : i32 to index
    %c0_26 = arith.constant 0 : index
    %c0_27 = arith.constant 0 : index
    %37 = vector.load %arg16[%36, %c0_26, %c0_27] : memref<8x8x32xf32, #tpu.memory_space<vmem>>, vector<1x8x32xf32>
    %38 = vector.shape_cast %37 : vector<1x8x32xf32> to vector<8x32xf32>
    %39 = arith.addf %35, %38 : vector<8x32xf32>
    %40 = math.tanh %39 : vector<8x32xf32>
    %41 = arith.index_cast %c2_i32 : i32 to index
    %c0_28 = arith.constant 0 : index
    %c0_29 = arith.constant 0 : index
    %42 = vector.load %arg16[%41, %c0_28, %c0_29] : memref<8x8x32xf32, #tpu.memory_space<vmem>>, vector<1x8x32xf32>
    %43 = vector.shape_cast %42 : vector<1x8x32xf32> to vector<8x32xf32>
    %44 = vector.shape_cast %40 : vector<8x32xf32> to vector<1x8x32xf32>
    tpu.vector_store %arg16[%41, %c0_28, %c0_29], %44 {strides = array<i32>} : memref<8x8x32xf32, #tpu.memory_space<vmem>>, vector<1x8x32xf32>,
    %c3_i32 = arith.constant 3 : i32
    %cst_30 = arith.constant dense<0.000000e+00> : vector<8x32xf32>
    %45 = tpu.matmul %40, %13, %cst_30 {dimension_numbers = #tpu.dot_dimension_numbers<[1], [0], [0], [1], [0, 0, 1, 1], [], []>} : vector<8x32xf32>, vector<32x32xf32>, vector<8x32xf32> -> vector<8x32xf32>
    %46 = arith.index_cast %c3_i32 : i32 to index
    %c0_31 = arith.constant 0 : index
    %c0_32 = arith.constant 0 : index
    %47 = vector.load %arg16[%46, %c0_31, %c0_32] : memref<8x8x32xf32, #tpu.memory_space<vmem>>, vector<1x8x32xf32>
    %48 = vector.shape_cast %47 : vector<1x8x32xf32> to vector<8x32xf32>
    %49 = arith.addf %45, %48 : vector<8x32xf32>
    %50 = math.tanh %49 : vector<8x32xf32>
    %51 = arith.index_cast %c3_i32 : i32 to index
    %c0_33 = arith.constant 0 : index
    %c0_34 = arith.constant 0 : index
    %52 = vector.load %arg16[%51, %c0_33, %c0_34] : memref<8x8x32xf32, #tpu.memory_space<vmem>>, vector<1x8x32xf32>
    %53 = vector.shape_cast %52 : vector<1x8x32xf32> to vector<8x32xf32>
    %54 = vector.shape_cast %50 : vector<8x32xf32> to vector<1x8x32xf32>
    tpu.vector_store %arg16[%51, %c0_33, %c0_34], %54 {strides = array<i32>} : memref<8x8x32xf32, #tpu.memory_space<vmem>>, vector<1x8x32xf32>,
    %c4_i32 = arith.constant 4 : i32
    %cst_35 = arith.constant dense<0.000000e+00> : vector<8x32xf32>
    %55 = tpu.matmul %50, %13, %cst_35 {dimension_numbers = #tpu.dot_dimension_numbers<[1], [0], [0], [1], [0, 0, 1, 1], [], []>} : vector<8x32xf32>, vector<32x32xf32>, vector<8x32xf32> -> vector<8x32xf32>
    %56 = arith.index_cast %c4_i32 : i32 to index
    %c0_36 = arith.constant 0 : index
    %c0_37 = arith.constant 0 : index
    %57 = vector.load %arg16[%56, %c0_36, %c0_37] : memref<8x8x32xf32, #tpu.memory_space<vmem>>, vector<1x8x32xf32>
    %58 = vector.shape_cast %57 : vector<1x8x32xf32> to vector<8x32xf32>
    %59 = arith.addf %55, %58 : vector<8x32xf32>
    %60 = math.tanh %59 : vector<8x32xf32>
    %61 = arith.index_cast %c4_i32 : i32 to index
    %c0_38 = arith.constant 0 : index
    %c0_39 = arith.constant 0 : index
    %62 = vector.load %arg16[%61, %c0_38, %c0_39] : memref<8x8x32xf32, #tpu.memory_space<vmem>>, vector<1x8x32xf32>
    %63 = vector.shape_cast %62 : vector<1x8x32xf32> to vector<8x32xf32>
    %64 = vector.shape_cast %60 : vector<8x32xf32> to vector<1x8x32xf32>
    tpu.vector_store %arg16[%61, %c0_38, %c0_39], %64 {strides = array<i32>} : memref<8x8x32xf32, #tpu.memory_space<vmem>>, vector<1x8x32xf32>,
    %c5_i32 = arith.constant 5 : i32
    %cst_40 = arith.constant dense<0.000000e+00> : vector<8x32xf32>
    %65 = tpu.matmul %60, %13, %cst_40 {dimension_numbers = #tpu.dot_dimension_numbers<[1], [0], [0], [1], [0, 0, 1, 1], [], []>} : vector<8x32xf32>, vector<32x32xf32>, vector<8x32xf32> -> vector<8x32xf32>
    %66 = arith.index_cast %c5_i32 : i32 to index
    %c0_41 = arith.constant 0 : index
    %c0_42 = arith.constant 0 : index
    %67 = vector.load %arg16[%66, %c0_41, %c0_42] : memref<8x8x32xf32, #tpu.memory_space<vmem>>, vector<1x8x32xf32>
    %68 = vector.shape_cast %67 : vector<1x8x32xf32> to vector<8x32xf32>
    %69 = arith.addf %65, %68 : vector<8x32xf32>
    %70 = math.tanh %69 : vector<8x32xf32>
    %71 = arith.index_cast %c5_i32 : i32 to index
    %c0_43 = arith.constant 0 : index
    %c0_44 = arith.constant 0 : index
    %72 = vector.load %arg16[%71, %c0_43, %c0_44] : memref<8x8x32xf32, #tpu.memory_space<vmem>>, vector<1x8x32xf32>
    %73 = vector.shape_cast %72 : vector<1x8x32xf32> to vector<8x32xf32>
    %74 = vector.shape_cast %70 : vector<8x32xf32> to vector<1x8x32xf32>
    tpu.vector_store %arg16[%71, %c0_43, %c0_44], %74 {strides = array<i32>} : memref<8x8x32xf32, #tpu.memory_space<vmem>>, vector<1x8x32xf32>,
    %c6_i32 = arith.constant 6 : i32
    %cst_45 = arith.constant dense<0.000000e+00> : vector<8x32xf32>
    %75 = tpu.matmul %70, %13, %cst_45 {dimension_numbers = #tpu.dot_dimension_numbers<[1], [0], [0], [1], [0, 0, 1, 1], [], []>} : vector<8x32xf32>, vector<32x32xf32>, vector<8x32xf32> -> vector<8x32xf32>
    %76 = arith.index_cast %c6_i32 : i32 to index
    %c0_46 = arith.constant 0 : index
    %c0_47 = arith.constant 0 : index
    %77 = vector.load %arg16[%76, %c0_46, %c0_47] : memref<8x8x32xf32, #tpu.memory_space<vmem>>, vector<1x8x32xf32>
    %78 = vector.shape_cast %77 : vector<1x8x32xf32> to vector<8x32xf32>
    %79 = arith.addf %75, %78 : vector<8x32xf32>
    %80 = math.tanh %79 : vector<8x32xf32>
    %81 = arith.index_cast %c6_i32 : i32 to index
    %c0_48 = arith.constant 0 : index
    %c0_49 = arith.constant 0 : index
    %82 = vector.load %arg16[%81, %c0_48, %c0_49] : memref<8x8x32xf32, #tpu.memory_space<vmem>>, vector<1x8x32xf32>
    %83 = vector.shape_cast %82 : vector<1x8x32xf32> to vector<8x32xf32>
    %84 = vector.shape_cast %80 : vector<8x32xf32> to vector<1x8x32xf32>
    tpu.vector_store %arg16[%81, %c0_48, %c0_49], %84 {strides = array<i32>} : memref<8x8x32xf32, #tpu.memory_space<vmem>>, vector<1x8x32xf32>,
    %c7_i32 = arith.constant 7 : i32
    %cst_50 = arith.constant dense<0.000000e+00> : vector<8x32xf32>
    %85 = tpu.matmul %80, %13, %cst_50 {dimension_numbers = #tpu.dot_dimension_numbers<[1], [0], [0], [1], [0, 0, 1, 1], [], []>} : vector<8x32xf32>, vector<32x32xf32>, vector<8x32xf32> -> vector<8x32xf32>
    %86 = arith.index_cast %c7_i32 : i32 to index
    %c0_51 = arith.constant 0 : index
    %c0_52 = arith.constant 0 : index
    %87 = vector.load %arg16[%86, %c0_51, %c0_52] : memref<8x8x32xf32, #tpu.memory_space<vmem>>, vector<1x8x32xf32>
    %88 = vector.shape_cast %87 : vector<1x8x32xf32> to vector<8x32xf32>
    %89 = arith.addf %85, %88 : vector<8x32xf32>
    %90 = math.tanh %89 : vector<8x32xf32>
    %91 = arith.index_cast %c7_i32 : i32 to index
    %c0_53 = arith.constant 0 : index
    %c0_54 = arith.constant 0 : index
    %92 = vector.load %arg16[%91, %c0_53, %c0_54] : memref<8x8x32xf32, #tpu.memory_space<vmem>>, vector<1x8x32xf32>
    %93 = vector.shape_cast %92 : vector<1x8x32xf32> to vector<8x32xf32>
    %94 = vector.shape_cast %90 : vector<8x32xf32> to vector<1x8x32xf32>
    tpu.vector_store %arg16[%91, %c0_53, %c0_54], %94 {strides = array<i32>} : memref<8x8x32xf32, #tpu.memory_space<vmem>>, vector<1x8x32xf32>,
    %c8_i32 = arith.constant 8 : i32
    %c0_55 = arith.constant 0 : index
    %c0_56 = arith.constant 0 : index
    %c0_57 = arith.constant 0 : index
    %95 = vector.load %arg16[%c0_55, %c0_56, %c0_57] : memref<8x8x32xf32, #tpu.memory_space<vmem>>, vector<8x8x32xf32>
    %96 = vector.shape_cast %95 : vector<8x8x32xf32> to vector<64x32xf32>
    %c1 = arith.constant 1 : index
    %c0_58 = arith.constant 0 : index
    %c0_59 = arith.constant 0 : index
    %97 = vector.load %arg2[%c1, %c0_58, %c0_59] : memref<2x32x32xbf16, #tpu.memory_space<vmem>>, vector<1x32x32xbf16>
    %98 = vector.shape_cast %97 : vector<1x32x32xbf16> to vector<32x32xbf16>
    %99 = arith.truncf %96 : vector<64x32xf32> to vector<64x32xbf16>
    %cst_60 = arith.constant dense<0.000000e+00> : vector<64x32xf32>
    %100 = tpu.matmul %99, %98, %cst_60 {dimension_numbers = #tpu.dot_dimension_numbers<[1], [0], [0], [1], [0, 0, 1, 1], [], []>} : vector<64x32xbf16>, vector<32x32xbf16>, vector<64x32xf32> -> vector<64x32xf32>
    %c1_61 = arith.constant 1 : index
    %c0_62 = arith.constant 0 : index
    %c0_63 = arith.constant 0 : index
    %101 = vector.load %arg4[%c1_61, %c0_62, %c0_63] : memref<2x1x32xf32, #tpu.memory_space<vmem>>, vector<1x1x32xf32>
    %102 = vector.shape_cast %101 : vector<1x1x32xf32> to vector<1x32xf32>
    %103 = vector.broadcast %102 : vector<1x32xf32> to vector<64x32xf32>
    %104 = arith.addf %100, %103 : vector<64x32xf32>
    %105 = vector.shape_cast %104 : vector<64x32xf32> to vector<8x8x32xf32>
    %c0_64 = arith.constant 0 : index
    %c0_65 = arith.constant 0 : index
    %c0_66 = arith.constant 0 : index
    %106 = vector.load %arg16[%c0_64, %c0_65, %c0_66] : memref<8x8x32xf32, #tpu.memory_space<vmem>>, vector<8x8x32xf32>
    tpu.vector_store %arg16[%c0_64, %c0_65, %c0_66], %105 {strides = array<i32>} : memref<8x8x32xf32, #tpu.memory_space<vmem>>, vector<8x8x32xf32>,
    %c1_67 = arith.constant 1 : index
    %c0_68 = arith.constant 0 : index
    %c0_69 = arith.constant 0 : index
    %107 = vector.load %arg3[%c1_67, %c0_68, %c0_69] : memref<2x32x32xf32, #tpu.memory_space<vmem>>, vector<1x32x32xf32>
    %108 = vector.shape_cast %107 : vector<1x32x32xf32> to vector<32x32xf32>
    %cst_70 = arith.constant 0.000000e+00 : f32
    %109 = vector.broadcast %cst_70 : f32 to vector<8x32xf32>
    %c0_i32_71 = arith.constant 0 : i32
    %cst_72 = arith.constant dense<0.000000e+00> : vector<8x32xf32>
    %110 = tpu.matmul %109, %108, %cst_72 {dimension_numbers = #tpu.dot_dimension_numbers<[1], [0], [0], [1], [0, 0, 1, 1], [], []>} : vector<8x32xf32>, vector<32x32xf32>, vector<8x32xf32> -> vector<8x32xf32>
    %111 = arith.index_cast %c0_i32_71 : i32 to index
    %c0_73 = arith.constant 0 : index
    %c0_74 = arith.constant 0 : index
    %112 = vector.load %arg16[%111, %c0_73, %c0_74] : memref<8x8x32xf32, #tpu.memory_space<vmem>>, vector<1x8x32xf32>
    %113 = vector.shape_cast %112 : vector<1x8x32xf32> to vector<8x32xf32>
    %114 = arith.addf %110, %113 : vector<8x32xf32>
    %115 = math.tanh %114 : vector<8x32xf32>
    %116 = arith.index_cast %c0_i32_71 : i32 to index
    %c0_75 = arith.constant 0 : index
    %c0_76 = arith.constant 0 : index
    %117 = vector.load %arg16[%116, %c0_75, %c0_76] : memref<8x8x32xf32, #tpu.memory_space<vmem>>, vector<1x8x32xf32>
    %118 = vector.shape_cast %117 : vector<1x8x32xf32> to vector<8x32xf32>
    %119 = vector.shape_cast %115 : vector<8x32xf32> to vector<1x8x32xf32>
    tpu.vector_store %arg16[%116, %c0_75, %c0_76], %119 {strides = array<i32>} : memref<8x8x32xf32, #tpu.memory_space<vmem>>, vector<1x8x32xf32>,
    %c1_i32_77 = arith.constant 1 : i32
    %cst_78 = arith.constant dense<0.000000e+00> : vector<8x32xf32>
    %120 = tpu.matmul %115, %108, %cst_78 {dimension_numbers = #tpu.dot_dimension_numbers<[1], [0], [0], [1], [0, 0, 1, 1], [], []>} : vector<8x32xf32>, vector<32x32xf32>, vector<8x32xf32> -> vector<8x32xf32>
    %121 = arith.index_cast %c1_i32_77 : i32 to index
    %c0_79 = arith.constant 0 : index
    %c0_80 = arith.constant 0 : index
    %122 = vector.load %arg16[%121, %c0_79, %c0_80] : memref<8x8x32xf32, #tpu.memory_space<vmem>>, vector<1x8x32xf32>
    %123 = vector.shape_cast %122 : vector<1x8x32xf32> to vector<8x32xf32>
    %124 = arith.addf %120, %123 : vector<8x32xf32>
    %125 = math.tanh %124 : vector<8x32xf32>
    %126 = arith.index_cast %c1_i32_77 : i32 to index
    %c0_81 = arith.constant 0 : index
    %c0_82 = arith.constant 0 : index
    %127 = vector.load %arg16[%126, %c0_81, %c0_82] : memref<8x8x32xf32, #tpu.memory_space<vmem>>, vector<1x8x32xf32>
    %128 = vector.shape_cast %127 : vector<1x8x32xf32> to vector<8x32xf32>
    %129 = vector.shape_cast %125 : vector<8x32xf32> to vector<1x8x32xf32>
    tpu.vector_store %arg16[%126, %c0_81, %c0_82], %129 {strides = array<i32>} : memref<8x8x32xf32, #tpu.memory_space<vmem>>, vector<1x8x32xf32>,
    %c2_i32_83 = arith.constant 2 : i32
    %cst_84 = arith.constant dense<0.000000e+00> : vector<8x32xf32>
    %130 = tpu.matmul %125, %108, %cst_84 {dimension_numbers = #tpu.dot_dimension_numbers<[1], [0], [0], [1], [0, 0, 1, 1], [], []>} : vector<8x32xf32>, vector<32x32xf32>, vector<8x32xf32> -> vector<8x32xf32>
    %131 = arith.index_cast %c2_i32_83 : i32 to index
    %c0_85 = arith.constant 0 : index
    %c0_86 = arith.constant 0 : index
    %132 = vector.load %arg16[%131, %c0_85, %c0_86] : memref<8x8x32xf32, #tpu.memory_space<vmem>>, vector<1x8x32xf32>
    %133 = vector.shape_cast %132 : vector<1x8x32xf32> to vector<8x32xf32>
    %134 = arith.addf %130, %133 : vector<8x32xf32>
    %135 = math.tanh %134 : vector<8x32xf32>
    %136 = arith.index_cast %c2_i32_83 : i32 to index
    %c0_87 = arith.constant 0 : index
    %c0_88 = arith.constant 0 : index
    %137 = vector.load %arg16[%136, %c0_87, %c0_88] : memref<8x8x32xf32, #tpu.memory_space<vmem>>, vector<1x8x32xf32>
    %138 = vector.shape_cast %137 : vector<1x8x32xf32> to vector<8x32xf32>
    %139 = vector.shape_cast %135 : vector<8x32xf32> to vector<1x8x32xf32>
    tpu.vector_store %arg16[%136, %c0_87, %c0_88], %139 {strides = array<i32>} : memref<8x8x32xf32, #tpu.memory_space<vmem>>, vector<1x8x32xf32>,
    %c3_i32_89 = arith.constant 3 : i32
    %cst_90 = arith.constant dense<0.000000e+00> : vector<8x32xf32>
    %140 = tpu.matmul %135, %108, %cst_90 {dimension_numbers = #tpu.dot_dimension_numbers<[1], [0], [0], [1], [0, 0, 1, 1], [], []>} : vector<8x32xf32>, vector<32x32xf32>, vector<8x32xf32> -> vector<8x32xf32>
    %141 = arith.index_cast %c3_i32_89 : i32 to index
    %c0_91 = arith.constant 0 : index
    %c0_92 = arith.constant 0 : index
    %142 = vector.load %arg16[%141, %c0_91, %c0_92] : memref<8x8x32xf32, #tpu.memory_space<vmem>>, vector<1x8x32xf32>
    %143 = vector.shape_cast %142 : vector<1x8x32xf32> to vector<8x32xf32>
    %144 = arith.addf %140, %143 : vector<8x32xf32>
    %145 = math.tanh %144 : vector<8x32xf32>
    %146 = arith.index_cast %c3_i32_89 : i32 to index
    %c0_93 = arith.constant 0 : index
    %c0_94 = arith.constant 0 : index
    %147 = vector.load %arg16[%146, %c0_93, %c0_94] : memref<8x8x32xf32, #tpu.memory_space<vmem>>, vector<1x8x32xf32>
    %148 = vector.shape_cast %147 : vector<1x8x32xf32> to vector<8x32xf32>
    %149 = vector.shape_cast %145 : vector<8x32xf32> to vector<1x8x32xf32>
    tpu.vector_store %arg16[%146, %c0_93, %c0_94], %149 {strides = array<i32>} : memref<8x8x32xf32, #tpu.memory_space<vmem>>, vector<1x8x32xf32>,
    %c4_i32_95 = arith.constant 4 : i32
    %cst_96 = arith.constant dense<0.000000e+00> : vector<8x32xf32>
    %150 = tpu.matmul %145, %108, %cst_96 {dimension_numbers = #tpu.dot_dimension_numbers<[1], [0], [0], [1], [0, 0, 1, 1], [], []>} : vector<8x32xf32>, vector<32x32xf32>, vector<8x32xf32> -> vector<8x32xf32>
    %151 = arith.index_cast %c4_i32_95 : i32 to index
    %c0_97 = arith.constant 0 : index
    %c0_98 = arith.constant 0 : index
    %152 = vector.load %arg16[%151, %c0_97, %c0_98] : memref<8x8x32xf32, #tpu.memory_space<vmem>>, vector<1x8x32xf32>
    %153 = vector.shape_cast %152 : vector<1x8x32xf32> to vector<8x32xf32>
    %154 = arith.addf %150, %153 : vector<8x32xf32>
    %155 = math.tanh %154 : vector<8x32xf32>
    %156 = arith.index_cast %c4_i32_95 : i32 to index
    %c0_99 = arith.constant 0 : index
    %c0_100 = arith.constant 0 : index
    %157 = vector.load %arg16[%156, %c0_99, %c0_100] : memref<8x8x32xf32, #tpu.memory_space<vmem>>, vector<1x8x32xf32>
    %158 = vector.shape_cast %157 : vector<1x8x32xf32> to vector<8x32xf32>
    %159 = vector.shape_cast %155 : vector<8x32xf32> to vector<1x8x32xf32>
    tpu.vector_store %arg16[%156, %c0_99, %c0_100], %159 {strides = array<i32>} : memref<8x8x32xf32, #tpu.memory_space<vmem>>, vector<1x8x32xf32>,
    %c5_i32_101 = arith.constant 5 : i32
    %cst_102 = arith.constant dense<0.000000e+00> : vector<8x32xf32>
    %160 = tpu.matmul %155, %108, %cst_102 {dimension_numbers = #tpu.dot_dimension_numbers<[1], [0], [0], [1], [0, 0, 1, 1], [], []>} : vector<8x32xf32>, vector<32x32xf32>, vector<8x32xf32> -> vector<8x32xf32>
    %161 = arith.index_cast %c5_i32_101 : i32 to index
    %c0_103 = arith.constant 0 : index
    %c0_104 = arith.constant 0 : index
    %162 = vector.load %arg16[%161, %c0_103, %c0_104] : memref<8x8x32xf32, #tpu.memory_space<vmem>>, vector<1x8x32xf32>
    %163 = vector.shape_cast %162 : vector<1x8x32xf32> to vector<8x32xf32>
    %164 = arith.addf %160, %163 : vector<8x32xf32>
    %165 = math.tanh %164 : vector<8x32xf32>
    %166 = arith.index_cast %c5_i32_101 : i32 to index
    %c0_105 = arith.constant 0 : index
    %c0_106 = arith.constant 0 : index
    %167 = vector.load %arg16[%166, %c0_105, %c0_106] : memref<8x8x32xf32, #tpu.memory_space<vmem>>, vector<1x8x32xf32>
    %168 = vector.shape_cast %167 : vector<1x8x32xf32> to vector<8x32xf32>
    %169 = vector.shape_cast %165 : vector<8x32xf32> to vector<1x8x32xf32>
    tpu.vector_store %arg16[%166, %c0_105, %c0_106], %169 {strides = array<i32>} : memref<8x8x32xf32, #tpu.memory_space<vmem>>, vector<1x8x32xf32>,
    %c6_i32_107 = arith.constant 6 : i32
    %cst_108 = arith.constant dense<0.000000e+00> : vector<8x32xf32>
    %170 = tpu.matmul %165, %108, %cst_108 {dimension_numbers = #tpu.dot_dimension_numbers<[1], [0], [0], [1], [0, 0, 1, 1], [], []>} : vector<8x32xf32>, vector<32x32xf32>, vector<8x32xf32> -> vector<8x32xf32>
    %171 = arith.index_cast %c6_i32_107 : i32 to index
    %c0_109 = arith.constant 0 : index
    %c0_110 = arith.constant 0 : index
    %172 = vector.load %arg16[%171, %c0_109, %c0_110] : memref<8x8x32xf32, #tpu.memory_space<vmem>>, vector<1x8x32xf32>
    %173 = vector.shape_cast %172 : vector<1x8x32xf32> to vector<8x32xf32>
    %174 = arith.addf %170, %173 : vector<8x32xf32>
    %175 = math.tanh %174 : vector<8x32xf32>
    %176 = arith.index_cast %c6_i32_107 : i32 to index
    %c0_111 = arith.constant 0 : index
    %c0_112 = arith.constant 0 : index
    %177 = vector.load %arg16[%176, %c0_111, %c0_112] : memref<8x8x32xf32, #tpu.memory_space<vmem>>, vector<1x8x32xf32>
    %178 = vector.shape_cast %177 : vector<1x8x32xf32> to vector<8x32xf32>
    %179 = vector.shape_cast %175 : vector<8x32xf32> to vector<1x8x32xf32>
    tpu.vector_store %arg16[%176, %c0_111, %c0_112], %179 {strides = array<i32>} : memref<8x8x32xf32, #tpu.memory_space<vmem>>, vector<1x8x32xf32>,
    %c7_i32_113 = arith.constant 7 : i32
    %cst_114 = arith.constant dense<0.000000e+00> : vector<8x32xf32>
    %180 = tpu.matmul %175, %108, %cst_114 {dimension_numbers = #tpu.dot_dimension_numbers<[1], [0], [0], [1], [0, 0, 1, 1], [], []>} : vector<8x32xf32>, vector<32x32xf32>, vector<8x32xf32> -> vector<8x32xf32>
    %181 = arith.index_cast %c7_i32_113 : i32 to index
    %c0_115 = arith.constant 0 : index
    %c0_116 = arith.constant 0 : index
    %182 = vector.load %arg16[%181, %c0_115, %c0_116] : memref<8x8x32xf32, #tpu.memory_space<vmem>>, vector<1x8x32xf32>
    %183 = vector.shape_cast %182 : vector<1x8x32xf32> to vector<8x32xf32>
    %184 = arith.addf %180, %183 : vector<8x32xf32>
    %185 = math.tanh %184 : vector<8x32xf32>
    %186 = arith.index_cast %c7_i32_113 : i32 to index
    %c0_117 = arith.constant 0 : index
    %c0_118 = arith.constant 0 : index
    %187 = vector.load %arg16[%186, %c0_117, %c0_118] : memref<8x8x32xf32, #tpu.memory_space<vmem>>, vector<1x8x32xf32>
    %188 = vector.shape_cast %187 : vector<1x8x32xf32> to vector<8x32xf32>
    %189 = vector.shape_cast %185 : vector<8x32xf32> to vector<1x8x32xf32>
    tpu.vector_store %arg16[%186, %c0_117, %c0_118], %189 {strides = array<i32>} : memref<8x8x32xf32, #tpu.memory_space<vmem>>, vector<1x8x32xf32>,
    %c8_i32_119 = arith.constant 8 : i32
    %c0_120 = arith.constant 0 : index
    %c0_121 = arith.constant 0 : index
    %c0_122 = arith.constant 0 : index
    %190 = vector.load %arg16[%c0_120, %c0_121, %c0_122] : memref<8x8x32xf32, #tpu.memory_space<vmem>>, vector<8x8x32xf32>
    %191 = vector.shape_cast %190 : vector<8x8x32xf32> to vector<64x32xf32>
    %c0_123 = arith.constant 0 : index
    %c0_124 = arith.constant 0 : index
    %c0_125 = arith.constant 0 : index
    %192 = vector.load %arg5[%c0_123, %c0_124, %c0_125] : memref<4x32x32xbf16, #tpu.memory_space<vmem>>, vector<1x32x32xbf16>
    %193 = vector.shape_cast %192 : vector<1x32x32xbf16> to vector<32x32xbf16>
    %194 = arith.truncf %191 : vector<64x32xf32> to vector<64x32xbf16>
    %cst_126 = arith.constant dense<0.000000e+00> : vector<64x32xf32>
    %195 = tpu.matmul %194, %193, %cst_126 {dimension_numbers = #tpu.dot_dimension_numbers<[1], [0], [0], [1], [0, 0, 1, 1], [], []>} : vector<64x32xbf16>, vector<32x32xbf16>, vector<64x32xf32> -> vector<64x32xf32>
    %c0_127 = arith.constant 0 : index
    %c0_128 = arith.constant 0 : index
    %c0_129 = arith.constant 0 : index
    %196 = vector.load %arg6[%c0_127, %c0_128, %c0_129] : memref<4x1x32xf32, #tpu.memory_space<vmem>>, vector<1x1x32xf32>
    %197 = vector.shape_cast %196 : vector<1x1x32xf32> to vector<1x32xf32>
    %198 = vector.broadcast %197 : vector<1x32xf32> to vector<64x32xf32>
    %199 = arith.addf %195, %198 : vector<64x32xf32>
    %c0_130 = arith.constant 0 : index
    %c0_131 = arith.constant 0 : index
    %c0_132 = arith.constant 0 : index
    %200 = vector.load %arg7[%c0_130, %c0_131, %c0_132] : memref<4x32x32xbf16, #tpu.memory_space<vmem>>, vector<1x32x32xbf16>
    %201 = vector.shape_cast %200 : vector<1x32x32xbf16> to vector<32x32xbf16>
    %202 = arith.truncf %199 : vector<64x32xf32> to vector<64x32xbf16>
    %cst_133 = arith.constant dense<0.000000e+00> : vector<64x32xf32>
    %203 = tpu.matmul %202, %201, %cst_133 {dimension_numbers = #tpu.dot_dimension_numbers<[1], [0], [0], [1], [0, 0, 1, 1], [], []>} : vector<64x32xbf16>, vector<32x32xbf16>, vector<64x32xf32> -> vector<64x32xf32>
    %c0_134 = arith.constant 0 : index
    %c0_135 = arith.constant 0 : index
    %c0_136 = arith.constant 0 : index
    %204 = vector.load %arg8[%c0_134, %c0_135, %c0_136] : memref<4x1x32xf32, #tpu.memory_space<vmem>>, vector<1x1x32xf32>
    %205 = vector.shape_cast %204 : vector<1x1x32xf32> to vector<1x32xf32>
    %206 = vector.broadcast %205 : vector<1x32xf32> to vector<64x32xf32>
    %207 = arith.addf %203, %206 : vector<64x32xf32>
    %cst_137 = arith.constant 0.000000e+00 : f32
    %208 = vector.broadcast %cst_137 : f32 to vector<64x32xf32>
    %209 = arith.maximumf %207, %208 : vector<64x32xf32>
    %c0_138 = arith.constant 0 : index
    %c0_139 = arith.constant 0 : index
    %c0_140 = arith.constant 0 : index
    %210 = vector.load %arg9[%c0_138, %c0_139, %c0_140] : memref<4x32x32xbf16, #tpu.memory_space<vmem>>, vector<1x32x32xbf16>
    %211 = vector.shape_cast %210 : vector<1x32x32xbf16> to vector<32x32xbf16>
    %212 = arith.truncf %209 : vector<64x32xf32> to vector<64x32xbf16>
    %cst_141 = arith.constant dense<0.000000e+00> : vector<64x32xf32>
    %213 = tpu.matmul %212, %211, %cst_141 {dimension_numbers = #tpu.dot_dimension_numbers<[1], [0], [0], [1], [0, 0, 1, 1], [], []>} : vector<64x32xbf16>, vector<32x32xbf16>, vector<64x32xf32> -> vector<64x32xf32>
    %c0_142 = arith.constant 0 : index
    %c0_143 = arith.constant 0 : index
    %c0_144 = arith.constant 0 : index
    %214 = vector.load %arg10[%c0_142, %c0_143, %c0_144] : memref<4x1x32xf32, #tpu.memory_space<vmem>>, vector<1x1x32xf32>
    %215 = vector.shape_cast %214 : vector<1x1x32xf32> to vector<1x32xf32>
    %216 = vector.broadcast %215 : vector<1x32xf32> to vector<64x32xf32>
    %217 = arith.addf %213, %216 : vector<64x32xf32>
    %218 = arith.addf %217, %199 : vector<64x32xf32>
    %cst_145 = arith.constant dense<0.000000e+00> : vector<64xf32>
    %219 = vector.multi_reduction <add>, %218, %cst_145 [1] : vector<64x32xf32> to vector<64xf32>
    %220 = vector.shape_cast %219 : vector<64xf32> to vector<64x1xf32>
    %cst_146 = arith.constant 3.200000e+01 : f32
    %221 = vector.broadcast %cst_146 : f32 to vector<64x1xf32>
    %222 = arith.divf %220, %221 : vector<64x1xf32>
    %223 = vector.broadcast %222 : vector<64x1xf32> to vector<64x32xf32>
    %224 = arith.subf %218, %223 : vector<64x32xf32>
    %225 = arith.mulf %224, %224 : vector<64x32xf32>
    %cst_147 = arith.constant dense<0.000000e+00> : vector<64xf32>
    %226 = vector.multi_reduction <add>, %225, %cst_147 [1] : vector<64x32xf32> to vector<64xf32>
    %227 = vector.shape_cast %226 : vector<64xf32> to vector<64x1xf32>
    %cst_148 = arith.constant 3.200000e+01 : f32
    %228 = vector.broadcast %cst_148 : f32 to vector<64x1xf32>
    %229 = arith.divf %227, %228 : vector<64x1xf32>
    %230 = vector.broadcast %222 : vector<64x1xf32> to vector<64x32xf32>
    %231 = arith.subf %218, %230 : vector<64x32xf32>
    %cst_149 = arith.constant 9.99999974E-6 : f32
    %232 = vector.broadcast %cst_149 : f32 to vector<64x1xf32>
    %233 = arith.addf %229, %232 : vector<64x1xf32>
    %234 = math.rsqrt %233 : vector<64x1xf32>
    %235 = vector.broadcast %234 : vector<64x1xf32> to vector<64x32xf32>
    %236 = arith.mulf %231, %235 : vector<64x32xf32>
    %c0_150 = arith.constant 0 : index
    %c0_151 = arith.constant 0 : index
    %c0_152 = arith.constant 0 : index
    %237 = vector.load %arg11[%c0_150, %c0_151, %c0_152] : memref<4x1x32xf32, #tpu.memory_space<vmem>>, vector<1x1x32xf32>
    %238 = vector.shape_cast %237 : vector<1x1x32xf32> to vector<1x32xf32>
    %239 = vector.broadcast %238 : vector<1x32xf32> to vector<64x32xf32>
    %240 = arith.mulf %236, %239 : vector<64x32xf32>
    %c0_153 = arith.constant 0 : index
    %c0_154 = arith.constant 0 : index
    %c0_155 = arith.constant 0 : index
    %241 = vector.load %arg12[%c0_153, %c0_154, %c0_155] : memref<4x1x32xf32, #tpu.memory_space<vmem>>, vector<1x1x32xf32>
    %242 = vector.shape_cast %241 : vector<1x1x32xf32> to vector<1x32xf32>
    %243 = vector.broadcast %242 : vector<1x32xf32> to vector<64x32xf32>
    %244 = arith.addf %240, %243 : vector<64x32xf32>
    %c1_156 = arith.constant 1 : index
    %c0_157 = arith.constant 0 : index
    %c0_158 = arith.constant 0 : index
    %245 = vector.load %arg5[%c1_156, %c0_157, %c0_158] : memref<4x32x32xbf16, #tpu.memory_space<vmem>>, vector<1x32x32xbf16>
    %246 = vector.shape_cast %245 : vector<1x32x32xbf16> to vector<32x32xbf16>
    %247 = arith.truncf %244 : vector<64x32xf32> to vector<64x32xbf16>
    %cst_159 = arith.constant dense<0.000000e+00> : vector<64x32xf32>
    %248 = tpu.matmul %247, %246, %cst_159 {dimension_numbers = #tpu.dot_dimension_numbers<[1], [0], [0], [1], [0, 0, 1, 1], [], []>} : vector<64x32xbf16>, vector<32x32xbf16>, vector<64x32xf32> -> vector<64x32xf32>
    %c1_160 = arith.constant 1 : index
    %c0_161 = arith.constant 0 : index
    %c0_162 = arith.constant 0 : index
    %249 = vector.load %arg6[%c1_160, %c0_161, %c0_162] : memref<4x1x32xf32, #tpu.memory_space<vmem>>, vector<1x1x32xf32>
    %250 = vector.shape_cast %249 : vector<1x1x32xf32> to vector<1x32xf32>
    %251 = vector.broadcast %250 : vector<1x32xf32> to vector<64x32xf32>
    %252 = arith.addf %248, %251 : vector<64x32xf32>
    %c1_163 = arith.constant 1 : index
    %c0_164 = arith.constant 0 : index
    %c0_165 = arith.constant 0 : index
    %253 = vector.load %arg7[%c1_163, %c0_164, %c0_165] : memref<4x32x32xbf16, #tpu.memory_space<vmem>>, vector<1x32x32xbf16>
    %254 = vector.shape_cast %253 : vector<1x32x32xbf16> to vector<32x32xbf16>
    %255 = arith.truncf %252 : vector<64x32xf32> to vector<64x32xbf16>
    %cst_166 = arith.constant dense<0.000000e+00> : vector<64x32xf32>
    %256 = tpu.matmul %255, %254, %cst_166 {dimension_numbers = #tpu.dot_dimension_numbers<[1], [0], [0], [1], [0, 0, 1, 1], [], []>} : vector<64x32xbf16>, vector<32x32xbf16>, vector<64x32xf32> -> vector<64x32xf32>
    %c1_167 = arith.constant 1 : index
    %c0_168 = arith.constant 0 : index
    %c0_169 = arith.constant 0 : index
    %257 = vector.load %arg8[%c1_167, %c0_168, %c0_169] : memref<4x1x32xf32, #tpu.memory_space<vmem>>, vector<1x1x32xf32>
    %258 = vector.shape_cast %257 : vector<1x1x32xf32> to vector<1x32xf32>
    %259 = vector.broadcast %258 : vector<1x32xf32> to vector<64x32xf32>
    %260 = arith.addf %256, %259 : vector<64x32xf32>
    %cst_170 = arith.constant 0.000000e+00 : f32
    %261 = vector.broadcast %cst_170 : f32 to vector<64x32xf32>
    %262 = arith.maximumf %260, %261 : vector<64x32xf32>
    %c1_171 = arith.constant 1 : index
    %c0_172 = arith.constant 0 : index
    %c0_173 = arith.constant 0 : index
    %263 = vector.load %arg9[%c1_171, %c0_172, %c0_173] : memref<4x32x32xbf16, #tpu.memory_space<vmem>>, vector<1x32x32xbf16>
    %264 = vector.shape_cast %263 : vector<1x32x32xbf16> to vector<32x32xbf16>
    %265 = arith.truncf %262 : vector<64x32xf32> to vector<64x32xbf16>
    %cst_174 = arith.constant dense<0.000000e+00> : vector<64x32xf32>
    %266 = tpu.matmul %265, %264, %cst_174 {dimension_numbers = #tpu.dot_dimension_numbers<[1], [0], [0], [1], [0, 0, 1, 1], [], []>} : vector<64x32xbf16>, vector<32x32xbf16>, vector<64x32xf32> -> vector<64x32xf32>
    %c1_175 = arith.constant 1 : index
    %c0_176 = arith.constant 0 : index
    %c0_177 = arith.constant 0 : index
    %267 = vector.load %arg10[%c1_175, %c0_176, %c0_177] : memref<4x1x32xf32, #tpu.memory_space<vmem>>, vector<1x1x32xf32>
    %268 = vector.shape_cast %267 : vector<1x1x32xf32> to vector<1x32xf32>
    %269 = vector.broadcast %268 : vector<1x32xf32> to vector<64x32xf32>
    %270 = arith.addf %266, %269 : vector<64x32xf32>
    %271 = arith.addf %270, %252 : vector<64x32xf32>
    %cst_178 = arith.constant dense<0.000000e+00> : vector<64xf32>
    %272 = vector.multi_reduction <add>, %271, %cst_178 [1] : vector<64x32xf32> to vector<64xf32>
    %273 = vector.shape_cast %272 : vector<64xf32> to vector<64x1xf32>
    %cst_179 = arith.constant 3.200000e+01 : f32
    %274 = vector.broadcast %cst_179 : f32 to vector<64x1xf32>
    %275 = arith.divf %273, %274 : vector<64x1xf32>
    %276 = vector.broadcast %275 : vector<64x1xf32> to vector<64x32xf32>
    %277 = arith.subf %271, %276 : vector<64x32xf32>
    %278 = arith.mulf %277, %277 : vector<64x32xf32>
    %cst_180 = arith.constant dense<0.000000e+00> : vector<64xf32>
    %279 = vector.multi_reduction <add>, %278, %cst_180 [1] : vector<64x32xf32> to vector<64xf32>
    %280 = vector.shape_cast %279 : vector<64xf32> to vector<64x1xf32>
    %cst_181 = arith.constant 3.200000e+01 : f32
    %281 = vector.broadcast %cst_181 : f32 to vector<64x1xf32>
    %282 = arith.divf %280, %281 : vector<64x1xf32>
    %283 = vector.broadcast %275 : vector<64x1xf32> to vector<64x32xf32>
    %284 = arith.subf %271, %283 : vector<64x32xf32>
    %cst_182 = arith.constant 9.99999974E-6 : f32
    %285 = vector.broadcast %cst_182 : f32 to vector<64x1xf32>
    %286 = arith.addf %282, %285 : vector<64x1xf32>
    %287 = math.rsqrt %286 : vector<64x1xf32>
    %288 = vector.broadcast %287 : vector<64x1xf32> to vector<64x32xf32>
    %289 = arith.mulf %284, %288 : vector<64x32xf32>
    %c1_183 = arith.constant 1 : index
    %c0_184 = arith.constant 0 : index
    %c0_185 = arith.constant 0 : index
    %290 = vector.load %arg11[%c1_183, %c0_184, %c0_185] : memref<4x1x32xf32, #tpu.memory_space<vmem>>, vector<1x1x32xf32>
    %291 = vector.shape_cast %290 : vector<1x1x32xf32> to vector<1x32xf32>
    %292 = vector.broadcast %291 : vector<1x32xf32> to vector<64x32xf32>
    %293 = arith.mulf %289, %292 : vector<64x32xf32>
    %c1_186 = arith.constant 1 : index
    %c0_187 = arith.constant 0 : index
    %c0_188 = arith.constant 0 : index
    %294 = vector.load %arg12[%c1_186, %c0_187, %c0_188] : memref<4x1x32xf32, #tpu.memory_space<vmem>>, vector<1x1x32xf32>
    %295 = vector.shape_cast %294 : vector<1x1x32xf32> to vector<1x32xf32>
    %296 = vector.broadcast %295 : vector<1x32xf32> to vector<64x32xf32>
    %297 = arith.addf %293, %296 : vector<64x32xf32>
    %c0_189 = arith.constant 0 : index
    %c0_190 = arith.constant 0 : index
    %c0_191 = arith.constant 0 : index
    %298 = vector.load %arg13[%c0_189, %c0_190, %c0_191] : memref<2x32x8xbf16, #tpu.memory_space<vmem>>, vector<1x32x8xbf16>
    %299 = vector.shape_cast %298 : vector<1x32x8xbf16> to vector<32x8xbf16>
    %300 = arith.truncf %297 : vector<64x32xf32> to vector<64x32xbf16>
    %cst_192 = arith.constant dense<0.000000e+00> : vector<64x8xf32>
    %301 = tpu.matmul %300, %299, %cst_192 {dimension_numbers = #tpu.dot_dimension_numbers<[1], [0], [0], [1], [0, 0, 1, 1], [], []>} : vector<64x32xbf16>, vector<32x8xbf16>, vector<64x8xf32> -> vector<64x8xf32>
    %c0_193 = arith.constant 0 : index
    %c0_194 = arith.constant 0 : index
    %c0_195 = arith.constant 0 : index
    %302 = vector.load %arg14[%c0_193, %c0_194, %c0_195] : memref<2x1x8xf32, #tpu.memory_space<vmem>>, vector<1x1x8xf32>
    %303 = vector.shape_cast %302 : vector<1x1x8xf32> to vector<1x8xf32>
    %304 = vector.broadcast %303 : vector<1x8xf32> to vector<64x8xf32>
    %305 = arith.addf %301, %304 : vector<64x8xf32>
    %c2 = arith.constant 2 : index
    %c0_196 = arith.constant 0 : index
    %c0_197 = arith.constant 0 : index
    %306 = vector.load %arg5[%c2, %c0_196, %c0_197] : memref<4x32x32xbf16, #tpu.memory_space<vmem>>, vector<1x32x32xbf16>
    %307 = vector.shape_cast %306 : vector<1x32x32xbf16> to vector<32x32xbf16>
    %308 = arith.truncf %297 : vector<64x32xf32> to vector<64x32xbf16>
    %cst_198 = arith.constant dense<0.000000e+00> : vector<64x32xf32>
    %309 = tpu.matmul %308, %307, %cst_198 {dimension_numbers = #tpu.dot_dimension_numbers<[1], [0], [0], [1], [0, 0, 1, 1], [], []>} : vector<64x32xbf16>, vector<32x32xbf16>, vector<64x32xf32> -> vector<64x32xf32>
    %c2_199 = arith.constant 2 : index
    %c0_200 = arith.constant 0 : index
    %c0_201 = arith.constant 0 : index
    %310 = vector.load %arg6[%c2_199, %c0_200, %c0_201] : memref<4x1x32xf32, #tpu.memory_space<vmem>>, vector<1x1x32xf32>
    %311 = vector.shape_cast %310 : vector<1x1x32xf32> to vector<1x32xf32>
    %312 = vector.broadcast %311 : vector<1x32xf32> to vector<64x32xf32>
    %313 = arith.addf %309, %312 : vector<64x32xf32>
    %c2_202 = arith.constant 2 : index
    %c0_203 = arith.constant 0 : index
    %c0_204 = arith.constant 0 : index
    %314 = vector.load %arg7[%c2_202, %c0_203, %c0_204] : memref<4x32x32xbf16, #tpu.memory_space<vmem>>, vector<1x32x32xbf16>
    %315 = vector.shape_cast %314 : vector<1x32x32xbf16> to vector<32x32xbf16>
    %316 = arith.truncf %313 : vector<64x32xf32> to vector<64x32xbf16>
    %cst_205 = arith.constant dense<0.000000e+00> : vector<64x32xf32>
    %317 = tpu.matmul %316, %315, %cst_205 {dimension_numbers = #tpu.dot_dimension_numbers<[1], [0], [0], [1], [0, 0, 1, 1], [], []>} : vector<64x32xbf16>, vector<32x32xbf16>, vector<64x32xf32> -> vector<64x32xf32>
    %c2_206 = arith.constant 2 : index
    %c0_207 = arith.constant 0 : index
    %c0_208 = arith.constant 0 : index
    %318 = vector.load %arg8[%c2_206, %c0_207, %c0_208] : memref<4x1x32xf32, #tpu.memory_space<vmem>>, vector<1x1x32xf32>
    %319 = vector.shape_cast %318 : vector<1x1x32xf32> to vector<1x32xf32>
    %320 = vector.broadcast %319 : vector<1x32xf32> to vector<64x32xf32>
    %321 = arith.addf %317, %320 : vector<64x32xf32>
    %cst_209 = arith.constant 0.000000e+00 : f32
    %322 = vector.broadcast %cst_209 : f32 to vector<64x32xf32>
    %323 = arith.maximumf %321, %322 : vector<64x32xf32>
    %c2_210 = arith.constant 2 : index
    %c0_211 = arith.constant 0 : index
    %c0_212 = arith.constant 0 : index
    %324 = vector.load %arg9[%c2_210, %c0_211, %c0_212] : memref<4x32x32xbf16, #tpu.memory_space<vmem>>, vector<1x32x32xbf16>
    %325 = vector.shape_cast %324 : vector<1x32x32xbf16> to vector<32x32xbf16>
    %326 = arith.truncf %323 : vector<64x32xf32> to vector<64x32xbf16>
    %cst_213 = arith.constant dense<0.000000e+00> : vector<64x32xf32>
    %327 = tpu.matmul %326, %325, %cst_213 {dimension_numbers = #tpu.dot_dimension_numbers<[1], [0], [0], [1], [0, 0, 1, 1], [], []>} : vector<64x32xbf16>, vector<32x32xbf16>, vector<64x32xf32> -> vector<64x32xf32>
    %c2_214 = arith.constant 2 : index
    %c0_215 = arith.constant 0 : index
    %c0_216 = arith.constant 0 : index
    %328 = vector.load %arg10[%c2_214, %c0_215, %c0_216] : memref<4x1x32xf32, #tpu.memory_space<vmem>>, vector<1x1x32xf32>
    %329 = vector.shape_cast %328 : vector<1x1x32xf32> to vector<1x32xf32>
    %330 = vector.broadcast %329 : vector<1x32xf32> to vector<64x32xf32>
    %331 = arith.addf %327, %330 : vector<64x32xf32>
    %332 = arith.addf %331, %313 : vector<64x32xf32>
    %cst_217 = arith.constant dense<0.000000e+00> : vector<64xf32>
    %333 = vector.multi_reduction <add>, %332, %cst_217 [1] : vector<64x32xf32> to vector<64xf32>
    %334 = vector.shape_cast %333 : vector<64xf32> to vector<64x1xf32>
    %cst_218 = arith.constant 3.200000e+01 : f32
    %335 = vector.broadcast %cst_218 : f32 to vector<64x1xf32>
    %336 = arith.divf %334, %335 : vector<64x1xf32>
    %337 = vector.broadcast %336 : vector<64x1xf32> to vector<64x32xf32>
    %338 = arith.subf %332, %337 : vector<64x32xf32>
    %339 = arith.mulf %338, %338 : vector<64x32xf32>
    %cst_219 = arith.constant dense<0.000000e+00> : vector<64xf32>
    %340 = vector.multi_reduction <add>, %339, %cst_219 [1] : vector<64x32xf32> to vector<64xf32>
    %341 = vector.shape_cast %340 : vector<64xf32> to vector<64x1xf32>
    %cst_220 = arith.constant 3.200000e+01 : f32
    %342 = vector.broadcast %cst_220 : f32 to vector<64x1xf32>
    %343 = arith.divf %341, %342 : vector<64x1xf32>
    %344 = vector.broadcast %336 : vector<64x1xf32> to vector<64x32xf32>
    %345 = arith.subf %332, %344 : vector<64x32xf32>
    %cst_221 = arith.constant 9.99999974E-6 : f32
    %346 = vector.broadcast %cst_221 : f32 to vector<64x1xf32>
    %347 = arith.addf %343, %346 : vector<64x1xf32>
    %348 = math.rsqrt %347 : vector<64x1xf32>
    %349 = vector.broadcast %348 : vector<64x1xf32> to vector<64x32xf32>
    %350 = arith.mulf %345, %349 : vector<64x32xf32>
    %c2_222 = arith.constant 2 : index
    %c0_223 = arith.constant 0 : index
    %c0_224 = arith.constant 0 : index
    %351 = vector.load %arg11[%c2_222, %c0_223, %c0_224] : memref<4x1x32xf32, #tpu.memory_space<vmem>>, vector<1x1x32xf32>
    %352 = vector.shape_cast %351 : vector<1x1x32xf32> to vector<1x32xf32>
    %353 = vector.broadcast %352 : vector<1x32xf32> to vector<64x32xf32>
    %354 = arith.mulf %350, %353 : vector<64x32xf32>
    %c2_225 = arith.constant 2 : index
    %c0_226 = arith.constant 0 : index
    %c0_227 = arith.constant 0 : index
    %355 = vector.load %arg12[%c2_225, %c0_226, %c0_227] : memref<4x1x32xf32, #tpu.memory_space<vmem>>, vector<1x1x32xf32>
    %356 = vector.shape_cast %355 : vector<1x1x32xf32> to vector<1x32xf32>
    %357 = vector.broadcast %356 : vector<1x32xf32> to vector<64x32xf32>
    %358 = arith.addf %354, %357 : vector<64x32xf32>
    %c3 = arith.constant 3 : index
    %c0_228 = arith.constant 0 : index
    %c0_229 = arith.constant 0 : index
    %359 = vector.load %arg5[%c3, %c0_228, %c0_229] : memref<4x32x32xbf16, #tpu.memory_space<vmem>>, vector<1x32x32xbf16>
    %360 = vector.shape_cast %359 : vector<1x32x32xbf16> to vector<32x32xbf16>
    %361 = arith.truncf %358 : vector<64x32xf32> to vector<64x32xbf16>
    %cst_230 = arith.constant dense<0.000000e+00> : vector<64x32xf32>
    %362 = tpu.matmul %361, %360, %cst_230 {dimension_numbers = #tpu.dot_dimension_numbers<[1], [0], [0], [1], [0, 0, 1, 1], [], []>} : vector<64x32xbf16>, vector<32x32xbf16>, vector<64x32xf32> -> vector<64x32xf32>
    %c3_231 = arith.constant 3 : index
    %c0_232 = arith.constant 0 : index
    %c0_233 = arith.constant 0 : index
    %363 = vector.load %arg6[%c3_231, %c0_232, %c0_233] : memref<4x1x32xf32, #tpu.memory_space<vmem>>, vector<1x1x32xf32>
    %364 = vector.shape_cast %363 : vector<1x1x32xf32> to vector<1x32xf32>
    %365 = vector.broadcast %364 : vector<1x32xf32> to vector<64x32xf32>
    %366 = arith.addf %362, %365 : vector<64x32xf32>
    %c3_234 = arith.constant 3 : index
    %c0_235 = arith.constant 0 : index
    %c0_236 = arith.constant 0 : index
    %367 = vector.load %arg7[%c3_234, %c0_235, %c0_236] : memref<4x32x32xbf16, #tpu.memory_space<vmem>>, vector<1x32x32xbf16>
    %368 = vector.shape_cast %367 : vector<1x32x32xbf16> to vector<32x32xbf16>
    %369 = arith.truncf %366 : vector<64x32xf32> to vector<64x32xbf16>
    %cst_237 = arith.constant dense<0.000000e+00> : vector<64x32xf32>
    %370 = tpu.matmul %369, %368, %cst_237 {dimension_numbers = #tpu.dot_dimension_numbers<[1], [0], [0], [1], [0, 0, 1, 1], [], []>} : vector<64x32xbf16>, vector<32x32xbf16>, vector<64x32xf32> -> vector<64x32xf32>
    %c3_238 = arith.constant 3 : index
    %c0_239 = arith.constant 0 : index
    %c0_240 = arith.constant 0 : index
    %371 = vector.load %arg8[%c3_238, %c0_239, %c0_240] : memref<4x1x32xf32, #tpu.memory_space<vmem>>, vector<1x1x32xf32>
    %372 = vector.shape_cast %371 : vector<1x1x32xf32> to vector<1x32xf32>
    %373 = vector.broadcast %372 : vector<1x32xf32> to vector<64x32xf32>
    %374 = arith.addf %370, %373 : vector<64x32xf32>
    %cst_241 = arith.constant 0.000000e+00 : f32
    %375 = vector.broadcast %cst_241 : f32 to vector<64x32xf32>
    %376 = arith.maximumf %374, %375 : vector<64x32xf32>
    %c3_242 = arith.constant 3 : index
    %c0_243 = arith.constant 0 : index
    %c0_244 = arith.constant 0 : index
    %377 = vector.load %arg9[%c3_242, %c0_243, %c0_244] : memref<4x32x32xbf16, #tpu.memory_space<vmem>>, vector<1x32x32xbf16>
    %378 = vector.shape_cast %377 : vector<1x32x32xbf16> to vector<32x32xbf16>
    %379 = arith.truncf %376 : vector<64x32xf32> to vector<64x32xbf16>
    %cst_245 = arith.constant dense<0.000000e+00> : vector<64x32xf32>
    %380 = tpu.matmul %379, %378, %cst_245 {dimension_numbers = #tpu.dot_dimension_numbers<[1], [0], [0], [1], [0, 0, 1, 1], [], []>} : vector<64x32xbf16>, vector<32x32xbf16>, vector<64x32xf32> -> vector<64x32xf32>
    %c3_246 = arith.constant 3 : index
    %c0_247 = arith.constant 0 : index
    %c0_248 = arith.constant 0 : index
    %381 = vector.load %arg10[%c3_246, %c0_247, %c0_248] : memref<4x1x32xf32, #tpu.memory_space<vmem>>, vector<1x1x32xf32>
    %382 = vector.shape_cast %381 : vector<1x1x32xf32> to vector<1x32xf32>
    %383 = vector.broadcast %382 : vector<1x32xf32> to vector<64x32xf32>
    %384 = arith.addf %380, %383 : vector<64x32xf32>
    %385 = arith.addf %384, %366 : vector<64x32xf32>
    %cst_249 = arith.constant dense<0.000000e+00> : vector<64xf32>
    %386 = vector.multi_reduction <add>, %385, %cst_249 [1] : vector<64x32xf32> to vector<64xf32>
    %387 = vector.shape_cast %386 : vector<64xf32> to vector<64x1xf32>
    %cst_250 = arith.constant 3.200000e+01 : f32
    %388 = vector.broadcast %cst_250 : f32 to vector<64x1xf32>
    %389 = arith.divf %387, %388 : vector<64x1xf32>
    %390 = vector.broadcast %389 : vector<64x1xf32> to vector<64x32xf32>
    %391 = arith.subf %385, %390 : vector<64x32xf32>
    %392 = arith.mulf %391, %391 : vector<64x32xf32>
    %cst_251 = arith.constant dense<0.000000e+00> : vector<64xf32>
    %393 = vector.multi_reduction <add>, %392, %cst_251 [1] : vector<64x32xf32> to vector<64xf32>
    %394 = vector.shape_cast %393 : vector<64xf32> to vector<64x1xf32>
    %cst_252 = arith.constant 3.200000e+01 : f32
    %395 = vector.broadcast %cst_252 : f32 to vector<64x1xf32>
    %396 = arith.divf %394, %395 : vector<64x1xf32>
    %397 = vector.broadcast %389 : vector<64x1xf32> to vector<64x32xf32>
    %398 = arith.subf %385, %397 : vector<64x32xf32>
    %cst_253 = arith.constant 9.99999974E-6 : f32
    %399 = vector.broadcast %cst_253 : f32 to vector<64x1xf32>
    %400 = arith.addf %396, %399 : vector<64x1xf32>
    %401 = math.rsqrt %400 : vector<64x1xf32>
    %402 = vector.broadcast %401 : vector<64x1xf32> to vector<64x32xf32>
    %403 = arith.mulf %398, %402 : vector<64x32xf32>
    %c3_254 = arith.constant 3 : index
    %c0_255 = arith.constant 0 : index
    %c0_256 = arith.constant 0 : index
    %404 = vector.load %arg11[%c3_254, %c0_255, %c0_256] : memref<4x1x32xf32, #tpu.memory_space<vmem>>, vector<1x1x32xf32>
    %405 = vector.shape_cast %404 : vector<1x1x32xf32> to vector<1x32xf32>
    %406 = vector.broadcast %405 : vector<1x32xf32> to vector<64x32xf32>
    %407 = arith.mulf %403, %406 : vector<64x32xf32>
    %c3_257 = arith.constant 3 : index
    %c0_258 = arith.constant 0 : index
    %c0_259 = arith.constant 0 : index
    %408 = vector.load %arg12[%c3_257, %c0_258, %c0_259] : memref<4x1x32xf32, #tpu.memory_space<vmem>>, vector<1x1x32xf32>
    %409 = vector.shape_cast %408 : vector<1x1x32xf32> to vector<1x32xf32>
    %410 = vector.broadcast %409 : vector<1x32xf32> to vector<64x32xf32>
    %411 = arith.addf %407, %410 : vector<64x32xf32>
    %c1_260 = arith.constant 1 : index
    %c0_261 = arith.constant 0 : index
    %c0_262 = arith.constant 0 : index
    %412 = vector.load %arg13[%c1_260, %c0_261, %c0_262] : memref<2x32x8xbf16, #tpu.memory_space<vmem>>, vector<1x32x8xbf16>
    %413 = vector.shape_cast %412 : vector<1x32x8xbf16> to vector<32x8xbf16>
    %414 = arith.truncf %411 : vector<64x32xf32> to vector<64x32xbf16>
    %cst_263 = arith.constant dense<0.000000e+00> : vector<64x8xf32>
    %415 = tpu.matmul %414, %413, %cst_263 {dimension_numbers = #tpu.dot_dimension_numbers<[1], [0], [0], [1], [0, 0, 1, 1], [], []>} : vector<64x32xbf16>, vector<32x8xbf16>, vector<64x8xf32> -> vector<64x8xf32>
    %416 = arith.addf %305, %415 : vector<64x8xf32>
    %c1_264 = arith.constant 1 : index
    %c0_265 = arith.constant 0 : index
    %c0_266 = arith.constant 0 : index
    %417 = vector.load %arg14[%c1_264, %c0_265, %c0_266] : memref<2x1x8xf32, #tpu.memory_space<vmem>>, vector<1x1x8xf32>
    %418 = vector.shape_cast %417 : vector<1x1x8xf32> to vector<1x8xf32>
    %419 = vector.broadcast %418 : vector<1x8xf32> to vector<64x8xf32>
    %420 = arith.addf %416, %419 : vector<64x8xf32>
    %421 = vector.shape_cast %420 : vector<64x8xf32> to vector<8x8x8xf32>
    %c0_267 = arith.constant 0 : index
    %c0_268 = arith.constant 0 : index
    %c0_269 = arith.constant 0 : index
    %422 = vector.load %arg15[%c0_267, %c0_268, %c0_269] : memref<8x8x8xf32, #tpu.memory_space<vmem>>, vector<8x8x8xf32>
    tpu.vector_store %arg15[%c0_267, %c0_268, %c0_269], %421 {strides = array<i32>} : memref<8x8x8xf32, #tpu.memory_space<vmem>>, vector<8x8x8xf32>,
    return
  }
  func.func @transform_0(%arg0: i32) -> (i32, i32, i32) {
    %c0_i32 = arith.constant 0 : i32
    %c0_i32_0 = arith.constant 0 : i32
    %c0_i32_1 = arith.constant 0 : i32
    return %c0_i32, %arg0, %c0_i32_0 : i32, i32, i32
  }
  func.func @transform_1(%arg0: i32) -> (i32, i32, i32) {
    %c0_i32 = arith.constant 0 : i32
    %c0_i32_0 = arith.constant 0 : i32
    %c0_i32_1 = arith.constant 0 : i32
    %c0_i32_2 = arith.constant 0 : i32
    return %c0_i32, %c0_i32_0, %c0_i32_1 : i32, i32, i32
  }
  func.func @transform_2(%arg0: i32) -> (i32, i32, i32) {
    %c0_i32 = arith.constant 0 : i32
    %c0_i32_0 = arith.constant 0 : i32
    %c0_i32_1 = arith.constant 0 : i32
    %c0_i32_2 = arith.constant 0 : i32
    return %c0_i32, %c0_i32_0, %c0_i32_1 : i32, i32, i32
  }
  func.func @transform_3(%arg0: i32) -> (i32, i32, i32) {
    %c0_i32 = arith.constant 0 : i32
    %c0_i32_0 = arith.constant 0 : i32
    %c0_i32_1 = arith.constant 0 : i32
    %c0_i32_2 = arith.constant 0 : i32
    return %c0_i32, %c0_i32_0, %c0_i32_1 : i32, i32, i32
  }
  func.func @transform_4(%arg0: i32) -> (i32, i32, i32) {
    %c0_i32 = arith.constant 0 : i32
    %c0_i32_0 = arith.constant 0 : i32
    %c0_i32_1 = arith.constant 0 : i32
    %c0_i32_2 = arith.constant 0 : i32
    return %c0_i32, %c0_i32_0, %c0_i32_1 : i32, i32, i32
  }
  func.func @transform_5(%arg0: i32) -> (i32, i32, i32) {
    %c0_i32 = arith.constant 0 : i32
    %c0_i32_0 = arith.constant 0 : i32
    %c0_i32_1 = arith.constant 0 : i32
    %c0_i32_2 = arith.constant 0 : i32
    return %c0_i32, %c0_i32_0, %c0_i32_1 : i32, i32, i32
  }
  func.func @transform_6(%arg0: i32) -> (i32, i32, i32) {
    %c0_i32 = arith.constant 0 : i32
    %c0_i32_0 = arith.constant 0 : i32
    %c0_i32_1 = arith.constant 0 : i32
    %c0_i32_2 = arith.constant 0 : i32
    return %c0_i32, %c0_i32_0, %c0_i32_1 : i32, i32, i32
  }
  func.func @transform_7(%arg0: i32) -> (i32, i32, i32) {
    %c0_i32 = arith.constant 0 : i32
    %c0_i32_0 = arith.constant 0 : i32
    %c0_i32_1 = arith.constant 0 : i32
    %c0_i32_2 = arith.constant 0 : i32
    return %c0_i32, %c0_i32_0, %c0_i32_1 : i32, i32, i32
  }
  func.func @transform_8(%arg0: i32) -> (i32, i32, i32) {
    %c0_i32 = arith.constant 0 : i32
    %c0_i32_0 = arith.constant 0 : i32
    %c0_i32_1 = arith.constant 0 : i32
    %c0_i32_2 = arith.constant 0 : i32
    return %c0_i32, %c0_i32_0, %c0_i32_1 : i32, i32, i32
  }
  func.func @transform_9(%arg0: i32) -> (i32, i32, i32) {
    %c0_i32 = arith.constant 0 : i32
    %c0_i32_0 = arith.constant 0 : i32
    %c0_i32_1 = arith.constant 0 : i32
    %c0_i32_2 = arith.constant 0 : i32
    return %c0_i32, %c0_i32_0, %c0_i32_1 : i32, i32, i32
  }
  func.func @transform_10(%arg0: i32) -> (i32, i32, i32) {
    %c0_i32 = arith.constant 0 : i32
    %c0_i32_0 = arith.constant 0 : i32
    %c0_i32_1 = arith.constant 0 : i32
    %c0_i32_2 = arith.constant 0 : i32
    return %c0_i32, %c0_i32_0, %c0_i32_1 : i32, i32, i32
  }
  func.func @transform_11(%arg0: i32) -> (i32, i32, i32) {
    %c0_i32 = arith.constant 0 : i32
    %c0_i32_0 = arith.constant 0 : i32
    %c0_i32_1 = arith.constant 0 : i32
    %c0_i32_2 = arith.constant 0 : i32
    return %c0_i32, %c0_i32_0, %c0_i32_1 : i32, i32, i32
  }
  func.func @transform_12(%arg0: i32) -> (i32, i32, i32) {
    %c0_i32 = arith.constant 0 : i32
    %c0_i32_0 = arith.constant 0 : i32
    %c0_i32_1 = arith.constant 0 : i32
    %c0_i32_2 = arith.constant 0 : i32
    return %c0_i32, %c0_i32_0, %c0_i32_1 : i32, i32, i32
  }
  func.func @transform_13(%arg0: i32) -> (i32, i32, i32) {
    %c0_i32 = arith.constant 0 : i32
    %c0_i32_0 = arith.constant 0 : i32
    %c0_i32_1 = arith.constant 0 : i32
    %c0_i32_2 = arith.constant 0 : i32
    return %c0_i32, %c0_i32_0, %c0_i32_1 : i32, i32, i32
  }
  func.func @transform_14(%arg0: i32) -> (i32, i32, i32) {
    %c0_i32 = arith.constant 0 : i32
    %c0_i32_0 = arith.constant 0 : i32
    %c0_i32_1 = arith.constant 0 : i32
    return %c0_i32, %arg0, %c0_i32_0 : i32, i32, i32
  }
}

</mosaic_0001>

<llo_original>
// kernel: contrast_rnn_forward.1
$region0: #{contrast_rnn_forward.1}
  #allocation0 [shape = 'u32[]', space=smem, size = 0x4, offset = 0x4, fixed_abs, tag = 'smem constant byte address 0x4 - core index']
  #allocation1 [shape = 'u32[72,128]{1,0:T(1,128)}', space=vmem, size = 0x9000, scoped, tag = 'internal scratch']
  #allocation2 [shape = 'f32[8,8,32]{2,1,0:T(8,128)}', space=vmem, size = 0x8000, scoped, tag = 'scratch operand']
  %s0 = inlined_call_operand.vmem [shape: f32[8,8,32], index: 0, kind: input, shape index: {}]
  %s1 = inlined_call_operand.vmem [shape: bf16[2,32,32], index: 1, kind: input, shape index: {}]
  %s2 = inlined_call_operand.vmem [shape: f32[2,32,32], index: 2, kind: input, shape index: {}]
  %s3 = inlined_call_operand.vmem [shape: f32[2,1,32], index: 3, kind: input, shape index: {}]
  %s4 = inlined_call_operand.vmem [shape: bf16[4,32,32], index: 4, kind: input, shape index: {}]
  %s5 = inlined_call_operand.vmem [shape: f32[4,1,32], index: 5, kind: input, shape index: {}]
  %s6 = inlined_call_operand.vmem [shape: bf16[4,32,32], index: 6, kind: input, shape index: {}]
  %s7 = inlined_call_operand.vmem [shape: f32[4,1,32], index: 7, kind: input, shape index: {}]
  %s8 = inlined_call_operand.vmem [shape: bf16[4,32,32], index: 8, kind: input, shape index: {}]
  %s9 = inlined_call_operand.vmem [shape: f32[4,1,32], index: 9, kind: input, shape index: {}]
  %s10 = inlined_call_operand.vmem [shape: f32[4,1,32], index: 10, kind: input, shape index: {}]
  %s11 = inlined_call_operand.vmem [shape: f32[4,1,32], index: 11, kind: input, shape index: {}]
  %s12 = inlined_call_operand.vmem [shape: bf16[2,32,8], index: 12, kind: input, shape index: {}]
  %s13 = inlined_call_operand.vmem [shape: f32[2,1,8], index: 13, kind: input, shape index: {}]
  %s14 = inlined_call_operand.vmem [shape: f32[8,8,8], index: 14, kind: output, shape index: {}]
  %s15 = sld [smem:[#allocation0]]
  $region66: #{contrast_rnn_forward.1} parent=0
    _
  %s17 = ssub.s32 1, %s15
  %s18 = scalar_select 0, %s17, %s15
  // Predicated region
  $region2: #{contrast_rnn_forward.1} parent=0 // pred_check
    _
  $region3: #{contrast_rnn_forward.1} parent=0 // pred_check_branch
    %20 = sbr.rel (0) target = $region5
  $region4: #{contrast_rnn_forward.1} parent=0 // pred_region
    _
  $region5: #{contrast_rnn_forward.1} parent=0 // pred_fallthru
    _
  // Predicated region
  $region6: #{contrast_rnn_forward.1} parent=0 // pred_check
    _
  $region7: #{contrast_rnn_forward.1} parent=0 // pred_check_branch
    %22 = sbr.rel (0) target = $region9
  $region8: #{contrast_rnn_forward.1} parent=0 // pred_region
    _
  $region9: #{contrast_rnn_forward.1} parent=0 // pred_fallthru
    _
  // Predicated region
  $region10: #{contrast_rnn_forward.1} parent=0 // pred_check
    _
  $region11: #{contrast_rnn_forward.1} parent=0 // pred_check_branch
    %24 = sbr.rel (0) target = $region13
  $region12: #{contrast_rnn_forward.1} parent=0 // pred_region
    _
  $region13: #{contrast_rnn_forward.1} parent=0 // pred_fallthru
    _
  // Predicated region
  $region14: #{contrast_rnn_forward.1} parent=0 // pred_check
    _
  $region15: #{contrast_rnn_forward.1} parent=0 // pred_check_branch
    %26 = sbr.rel (0) target = $region17
  $region16: #{contrast_rnn_forward.1} parent=0 // pred_region
    _
  $region17: #{contrast_rnn_forward.1} parent=0 // pred_fallthru
    _
  // Predicated region
  $region18: #{contrast_rnn_forward.1} parent=0 // pred_check
    _
  $region19: #{contrast_rnn_forward.1} parent=0 // pred_check_branch
    %28 = sbr.rel (0) target = $region21
  $region20: #{contrast_rnn_forward.1} parent=0 // pred_region
    _
  $region21: #{contrast_rnn_forward.1} parent=0 // pred_fallthru
    _
  // Predicated region
  $region22: #{contrast_rnn_forward.1} parent=0 // pred_check
    _
  $region23: #{contrast_rnn_forward.1} parent=0 // pred_check_branch
    %30 = sbr.rel (0) target = $region25
  $region24: #{contrast_rnn_forward.1} parent=0 // pred_region
    _
  $region25: #{contrast_rnn_forward.1} parent=0 // pred_fallthru
    _
  // Predicated region
  $region26: #{contrast_rnn_forward.1} parent=0 // pred_check
    _
  $region27: #{contrast_rnn_forward.1} parent=0 // pred_check_branch
    %32 = sbr.rel (0) target = $region29
  $region28: #{contrast_rnn_forward.1} parent=0 // pred_region
    _
  $region29: #{contrast_rnn_forward.1} parent=0 // pred_fallthru
    _
  // Predicated region
  $region30: #{contrast_rnn_forward.1} parent=0 // pred_check
    _
  $region31: #{contrast_rnn_forward.1} parent=0 // pred_check_branch
    %34 = sbr.rel (0) target = $region33
  $region32: #{contrast_rnn_forward.1} parent=0 // pred_region
    _
  $region33: #{contrast_rnn_forward.1} parent=0 // pred_fallthru
    _
  // Predicated region
  $region34: #{contrast_rnn_forward.1} parent=0 // pred_check
    _
  $region35: #{contrast_rnn_forward.1} parent=0 // pred_check_branch
    %36 = sbr.rel (0) target = $region37
  $region36: #{contrast_rnn_forward.1} parent=0 // pred_region
    _
  $region37: #{contrast_rnn_forward.1} parent=0 // pred_fallthru
    _
  // Predicated region
  $region38: #{contrast_rnn_forward.1} parent=0 // pred_check
    _
  $region39: #{contrast_rnn_forward.1} parent=0 // pred_check_branch
    %38 = sbr.rel (0) target = $region41
  $region40: #{contrast_rnn_forward.1} parent=0 // pred_region
    _
  $region41: #{contrast_rnn_forward.1} parent=0 // pred_fallthru
    _
  // Predicated region
  $region42: #{contrast_rnn_forward.1} parent=0 // pred_check
    _
  $region43: #{contrast_rnn_forward.1} parent=0 // pred_check_branch
    %40 = sbr.rel (0) target = $region45
  $region44: #{contrast_rnn_forward.1} parent=0 // pred_region
    _
  $region45: #{contrast_rnn_forward.1} parent=0 // pred_fallthru
    _
  // Predicated region
  $region46: #{contrast_rnn_forward.1} parent=0 // pred_check
    _
  $region47: #{contrast_rnn_forward.1} parent=0 // pred_check_branch
    %42 = sbr.rel (0) target = $region49
  $region48: #{contrast_rnn_forward.1} parent=0 // pred_region
    _
  $region49: #{contrast_rnn_forward.1} parent=0 // pred_fallthru
    _
  // Predicated region
  $region50: #{contrast_rnn_forward.1} parent=0 // pred_check
    _
  $region51: #{contrast_rnn_forward.1} parent=0 // pred_check_branch
    %44 = sbr.rel (0) target = $region53
  $region52: #{contrast_rnn_forward.1} parent=0 // pred_region
    _
  $region53: #{contrast_rnn_forward.1} parent=0 // pred_fallthru
    _
  // Predicated region
  $region54: #{contrast_rnn_forward.1} parent=0 // pred_check
    _
  $region55: #{contrast_rnn_forward.1} parent=0 // pred_check_branch
    %46 = sbr.rel (0) target = $region57
  $region56: #{contrast_rnn_forward.1} parent=0 // pred_region
    _
  $region57: #{contrast_rnn_forward.1} parent=0 // pred_fallthru
    _
  %v48 = vld [vmem:[%s0] sm:$0xff]
  %v49 = vld [vmem:[%s0 + $0x8] sm:$0xff]
  %v50 = vld [vmem:[%s0 + $0x10] sm:$0xff]
  %v51 = vld [vmem:[%s0 + $0x18] sm:$0xff]
  %v52 = vld [vmem:[%s0 + $0x20] sm:$0xff]
  %v53 = vld [vmem:[%s0 + $0x28] sm:$0xff]
  %v54 = vld [vmem:[%s0 + $0x30] sm:$0xff]
  %v55 = vld [vmem:[%s0 + $0x38] sm:$0xff]
  %v56 = vld [vmem:[%s1] sm:$0xf]
  %v57 = vld [vmem:[%s1 + $0x4] sm:$0xf]
  %v58 = vld [vmem:[%s1 + $0x8] sm:$0xf]
  %v59 = vld [vmem:[%s1 + $0xc] sm:$0xf]
  %v60 = vpack.c.bf16 %v49, %v48
  %v61 = vpack.c.bf16 %v51, %v50
  %v62 = vpack.c.bf16 %v53, %v52
  %v63 = vpack.c.bf16 %v55, %v54
  %v64 = vld [vmem:[%s3] sm:$0x1]
  %v66 = vperm.slane %v64, 0
  %v72 = vunpack.c.l.b16 %v56
  %v73 = vunpack.c.l.b16 %v57
  %v74 = vunpack.c.l.b16 %v58
  %v75 = vunpack.c.l.b16 %v59
  %v76 = vpack.c.b16 %v73, %v72
  %v77 = vpack.c.b16 %v75, %v74
  %vm80 = vcmask 261120
  %v82 = vsel %vm80, %v60, 0
  %v85 = vsel %vm80, %v61, 0
  %v88 = vsel %vm80, %v62, 0
  %v91 = vsel %vm80, %v63, 0
  %93 = vmatpush.bf16.msra.mxu0 0
  %94 = vmatpush.bf16.msra.mxu0 0
  %95 = vmatpush.bf16.msra.mxu0 0
  %96 = vmatpush.bf16.msra.mxu0 0
  %97 = vmatpush.bf16.msra.mxu0 0
  %98 = vmatpush.bf16.msra.mxu0 0
  %99 = vmatpush.bf16.msra.mxu0 %v77
  %100 = vmatpush.bf16.msra.mxu0 %v76
  %101 = vmatmul.bf16.gmra.mxu0 %v82
  %v102 = vpop.f32.mrf.mxu0
  %v103 = vadd.f32 %v66, %v102
  %v104 = vpop.f32.mrf.mxu0
  %v105 = vadd.f32 %v66, %v104
  %106 = vmatmul.bf16.gmra.mxu0 %v85
  %v107 = vpop.f32.mrf.mxu0
  %v108 = vadd.f32 %v66, %v107
  %v109 = vpop.f32.mrf.mxu0
  %v110 = vadd.f32 %v66, %v109
  %111 = vmatmul.bf16.gmra.mxu0 %v88
  %v112 = vpop.f32.mrf.mxu0
  %v113 = vadd.f32 %v66, %v112
  %v114 = vpop.f32.mrf.mxu0
  %v115 = vadd.f32 %v66, %v114
  %116 = vmatmul.bf16.gmra.mxu0 %v91
  %v117 = vpop.f32.mrf.mxu0
  %v118 = vadd.f32 %v66, %v117
  %v119 = vpop.f32.mrf.mxu0
  %v120 = vadd.f32 %v66, %v119
  %121 = vdwg.mxu0
  %122 = vst.msk [vmem:[#allocation2] sm:$0xff] %vm80, %v103
  %123 = vst.msk [vmem:[#allocation2 + $0x8] sm:$0xff] %vm80, %v105
  %124 = vst.msk [vmem:[#allocation2 + $0x10] sm:$0xff] %vm80, %v108
  %125 = vst.msk [vmem:[#allocation2 + $0x18] sm:$0xff] %vm80, %v110
  %126 = vst.msk [vmem:[#allocation2 + $0x20] sm:$0xff] %vm80, %v113
  %127 = vst.msk [vmem:[#allocation2 + $0x28] sm:$0xff] %vm80, %v115
  %128 = vst.msk [vmem:[#allocation2 + $0x30] sm:$0xff] %vm80, %v118
  %129 = vst.msk [vmem:[#allocation2 + $0x38] sm:$0xff] %vm80, %v120
  %v130 = vld [vmem:[%s2] sm:$0xff]
  %v131 = vld [vmem:[%s2 + $0x8] sm:$0xff]
  %v132 = vld [vmem:[%s2 + $0x10] sm:$0xff]
  %v133 = vld [vmem:[%s2 + $0x18] sm:$0xff]
  %v134 = vld [vmem:[#allocation2] sm:$0xff]
  %v136 = vsel %vm80, 0.0, 0
  %138 = vmatpush.msra.mxu0 0.0
  %139 = vmatpush.msra.mxu0 0.0
  %140 = vmatpush.msra.mxu0 0.0
  %141 = vmatpush.msra.mxu0 0.0
  %142 = vmatpush.msra.mxu0 0.0
  %143 = vmatpush.msra.mxu0 0.0
  %144 = vmatpush.msra.mxu0 0.0
  %145 = vmatpush.msra.mxu0 0.0
  %146 = vmatpush.msra.mxu0 0.0
  %147 = vmatpush.msra.mxu0 0.0
  %148 = vmatpush.msra.mxu0 0.0
  %149 = vmatpush.msra.mxu0 0.0
  %150 = vmatpush.msra.mxu0 %v133
  %151 = vmatpush.msra.mxu0 %v132
  %152 = vmatpush.msra.mxu0 %v131
  %153 = vmatpush.msra.mxu0 %v130
  %154 = vmatmul.f32.gmra.mxu0 %v136
  %v155 = vpop.f32.mrf.mxu0
  %v156 = vadd.f32 %v134, %v155
  %157 = vdwg.mxu0
  %v158 = vtanh.pop %v156
  %159 = vst.msk [vmem:[#allocation2] sm:$0xff] %vm80, %v158
  %s160 = scalar_lea.vmem [#allocation2], 8
  %v161 = vld [vmem:[%s160] sm:$0xff]
  %v163 = vsel %vm80, %v158, 0
  %165 = vmatpush.msra.mxu0 0.0
  %166 = vmatpush.msra.mxu0 0.0
  %167 = vmatpush.msra.mxu0 0.0
  %168 = vmatpush.msra.mxu0 0.0
  %169 = vmatpush.msra.mxu0 0.0
  %170 = vmatpush.msra.mxu0 0.0
  %171 = vmatpush.msra.mxu0 0.0
  %172 = vmatpush.msra.mxu0 0.0
  %173 = vmatpush.msra.mxu0 0.0
  %174 = vmatpush.msra.mxu0 0.0
  %175 = vmatpush.msra.mxu0 0.0
  %176 = vmatpush.msra.mxu0 0.0
  %177 = vmatpush.msra.mxu0 %v133
  %178 = vmatpush.msra.mxu0 %v132
  %179 = vmatpush.msra.mxu0 %v131
  %180 = vmatpush.msra.mxu0 %v130
  %181 = vmatmul.f32.gmra.mxu0 %v163
  %v182 = vpop.f32.mrf.mxu0
  %v183 = vadd.f32 %v161, %v182
  %184 = vdwg.mxu0
  %v185 = vtanh.pop %v183
  %186 = vst.msk [vmem:[%s160] sm:$0xff] %vm80, %v185
  %s187 = scalar_lea.vmem [#allocation2], 16
  %v188 = vld [vmem:[%s187] sm:$0xff]
  %v190 = vsel %vm80, %v185, 0
  %192 = vmatpush.msra.mxu0 0.0
  %193 = vmatpush.msra.mxu0 0.0
  %194 = vmatpush.msra.mxu0 0.0
  %195 = vmatpush.msra.mxu0 0.0
  %196 = vmatpush.msra.mxu0 0.0
  %197 = vmatpush.msra.mxu0 0.0
  %198 = vmatpush.msra.mxu0 0.0
  %199 = vmatpush.msra.mxu0 0.0
  %200 = vmatpush.msra.mxu0 0.0
  %201 = vmatpush.msra.mxu0 0.0
  %202 = vmatpush.msra.mxu0 0.0
  %203 = vmatpush.msra.mxu0 0.0
  %204 = vmatpush.msra.mxu0 %v133
  %205 = vmatpush.msra.mxu0 %v132
  %206 = vmatpush.msra.mxu0 %v131
  %207 = vmatpush.msra.mxu0 %v130
  %208 = vmatmul.f32.gmra.mxu0 %v190
  %v209 = vpop.f32.mrf.mxu0
  %v210 = vadd.f32 %v188, %v209
  %211 = vdwg.mxu0
  %v212 = vtanh.pop %v210
  %213 = vst.msk [vmem:[%s187] sm:$0xff] %vm80, %v212
  %s214 = scalar_lea.vmem [#allocation2], 24
  %v215 = vld [vmem:[%s214] sm:$0xff]
  %v217 = vsel %vm80, %v212, 0
  %219 = vmatpush.msra.mxu0 0.0
  %220 = vmatpush.msra.mxu0 0.0
  %221 = vmatpush.msra.mxu0 0.0
  %222 = vmatpush.msra.mxu0 0.0
  %223 = vmatpush.msra.mxu0 0.0
  %224 = vmatpush.msra.mxu0 0.0
  %225 = vmatpush.msra.mxu0 0.0
  %226 = vmatpush.msra.mxu0 0.0
  %227 = vmatpush.msra.mxu0 0.0
  %228 = vmatpush.msra.mxu0 0.0
  %229 = vmatpush.msra.mxu0 0.0
  %230 = vmatpush.msra.mxu0 0.0
  %231 = vmatpush.msra.mxu0 %v133
  %232 = vmatpush.msra.mxu0 %v132
  %233 = vmatpush.msra.mxu0 %v131
  %234 = vmatpush.msra.mxu0 %v130
  %235 = vmatmul.f32.gmra.mxu0 %v217
  %v236 = vpop.f32.mrf.mxu0
  %v237 = vadd.f32 %v215, %v236
  %238 = vdwg.mxu0
  %v239 = vtanh.pop %v237
  %240 = vst.msk [vmem:[%s214] sm:$0xff] %vm80, %v239
  %s241 = scalar_lea.vmem [#allocation2], 32
  %v242 = vld [vmem:[%s241] sm:$0xff]
  %v244 = vsel %vm80, %v239, 0
  %246 = vmatpush.msra.mxu0 0.0
  %247 = vmatpush.msra.mxu0 0.0
  %248 = vmatpush.msra.mxu0 0.0
  %249 = vmatpush.msra.mxu0 0.0
  %250 = vmatpush.msra.mxu0 0.0
  %251 = vmatpush.msra.mxu0 0.0
  %252 = vmatpush.msra.mxu0 0.0
  %253 = vmatpush.msra.mxu0 0.0
  %254 = vmatpush.msra.mxu0 0.0
  %255 = vmatpush.msra.mxu0 0.0
  %256 = vmatpush.msra.mxu0 0.0
  %257 = vmatpush.msra.mxu0 0.0
  %258 = vmatpush.msra.mxu0 %v133
  %259 = vmatpush.msra.mxu0 %v132
  %260 = vmatpush.msra.mxu0 %v131
  %261 = vmatpush.msra.mxu0 %v130
  %262 = vmatmul.f32.gmra.mxu0 %v244
  %v263 = vpop.f32.mrf.mxu0
  %v264 = vadd.f32 %v242, %v263
  %265 = vdwg.mxu0
  %v266 = vtanh.pop %v264
  %267 = vst.msk [vmem:[%s241] sm:$0xff] %vm80, %v266
  %s268 = scalar_lea.vmem [#allocation2], 40
  %v269 = vld [vmem:[%s268] sm:$0xff]
  %v271 = vsel %vm80, %v266, 0
  %273 = vmatpush.msra.mxu0 0.0
  %274 = vmatpush.msra.mxu0 0.0
  %275 = vmatpush.msra.mxu0 0.0
  %276 = vmatpush.msra.mxu0 0.0
  %277 = vmatpush.msra.mxu0 0.0
  %278 = vmatpush.msra.mxu0 0.0
  %279 = vmatpush.msra.mxu0 0.0
  %280 = vmatpush.msra.mxu0 0.0
  %281 = vmatpush.msra.mxu0 0.0
  %282 = vmatpush.msra.mxu0 0.0
  %283 = vmatpush.msra.mxu0 0.0
  %284 = vmatpush.msra.mxu0 0.0
  %285 = vmatpush.msra.mxu0 %v133
  %286 = vmatpush.msra.mxu0 %v132
  %287 = vmatpush.msra.mxu0 %v131
  %288 = vmatpush.msra.mxu0 %v130
  %289 = vmatmul.f32.gmra.mxu0 %v271
  %v290 = vpop.f32.mrf.mxu0
  %v291 = vadd.f32 %v269, %v290
  %292 = vdwg.mxu0
  %v293 = vtanh.pop %v291
  %294 = vst.msk [vmem:[%s268] sm:$0xff] %vm80, %v293
  %s295 = scalar_lea.vmem [#allocation2], 48
  %v296 = vld [vmem:[%s295] sm:$0xff]
  %v298 = vsel %vm80, %v293, 0
  %300 = vmatpush.msra.mxu0 0.0
  %301 = vmatpush.msra.mxu0 0.0
  %302 = vmatpush.msra.mxu0 0.0
  %303 = vmatpush.msra.mxu0 0.0
  %304 = vmatpush.msra.mxu0 0.0
  %305 = vmatpush.msra.mxu0 0.0
  %306 = vmatpush.msra.mxu0 0.0
  %307 = vmatpush.msra.mxu0 0.0
  %308 = vmatpush.msra.mxu0 0.0
  %309 = vmatpush.msra.mxu0 0.0
  %310 = vmatpush.msra.mxu0 0.0
  %311 = vmatpush.msra.mxu0 0.0
  %312 = vmatpush.msra.mxu0 %v133
  %313 = vmatpush.msra.mxu0 %v132
  %314 = vmatpush.msra.mxu0 %v131
  %315 = vmatpush.msra.mxu0 %v130
  %316 = vmatmul.f32.gmra.mxu0 %v298
  %v317 = vpop.f32.mrf.mxu0
  %v318 = vadd.f32 %v296, %v317
  %319 = vdwg.mxu0
  %v320 = vtanh.pop %v318
  %321 = vst.msk [vmem:[%s295] sm:$0xff] %vm80, %v320
  %s322 = scalar_lea.vmem [#allocation2], 56
  %v323 = vld [vmem:[%s322] sm:$0xff]
  %v325 = vsel %vm80, %v320, 0
  %327 = vmatpush.msra.mxu0 0.0
  %328 = vmatpush.msra.mxu0 0.0
  %329 = vmatpush.msra.mxu0 0.0
  %330 = vmatpush.msra.mxu0 0.0
  %331 = vmatpush.msra.mxu0 0.0
  %332 = vmatpush.msra.mxu0 0.0
  %333 = vmatpush.msra.mxu0 0.0
  %334 = vmatpush.msra.mxu0 0.0
  %335 = vmatpush.msra.mxu0 0.0
  %336 = vmatpush.msra.mxu0 0.0
  %337 = vmatpush.msra.mxu0 0.0
  %338 = vmatpush.msra.mxu0 0.0
  %339 = vmatpush.msra.mxu0 %v133
  %340 = vmatpush.msra.mxu0 %v132
  %341 = vmatpush.msra.mxu0 %v131
  %342 = vmatpush.msra.mxu0 %v130
  %343 = vmatmul.f32.gmra.mxu0 %v325
  %v344 = vpop.f32.mrf.mxu0
  %v345 = vadd.f32 %v323, %v344
  %346 = vdwg.mxu0
  %v347 = vtanh.pop %v345
  %348 = vst.msk [vmem:[%s322] sm:$0xff] %vm80, %v347
  %v349 = vld [vmem:[#allocation2] sm:$0xff]
  %v350 = vld [vmem:[#allocation2 + $0x8] sm:$0xff]
  %v351 = vld [vmem:[#allocation2 + $0x10] sm:$0xff]
  %v352 = vld [vmem:[#allocation2 + $0x18] sm:$0xff]
  %v353 = vld [vmem:[#allocation2 + $0x20] sm:$0xff]
  %v354 = vld [vmem:[#allocation2 + $0x28] sm:$0xff]
  %v355 = vld [vmem:[#allocation2 + $0x30] sm:$0xff]
  %v356 = vld [vmem:[#allocation2 + $0x38] sm:$0xff]
  %s357 = scalar_lea.vmem %s1, 16
  %v358 = vld [vmem:[%s357] sm:$0xf]
  %v359 = vld [vmem:[%s357 + $0x4] sm:$0xf]
  %v360 = vld [vmem:[%s357 + $0x8] sm:$0xf]
  %v361 = vld [vmem:[%s357 + $0xc] sm:$0xf]
  %v362 = vpack.c.bf16 %v350, %v349
  %v363 = vpack.c.bf16 %v352, %v351
  %v364 = vpack.c.bf16 %v354, %v353
  %v365 = vpack.c.bf16 %v356, %v355
  %s366 = scalar_lea.vmem %s3, 1
  %v367 = vld [vmem:[%s366] sm:$0x1]
  %v369 = vperm.slane %v367, 0
  %v375 = vunpack.c.l.b16 %v358
  %v376 = vunpack.c.l.b16 %v359
  %v377 = vunpack.c.l.b16 %v360
  %v378 = vunpack.c.l.b16 %v361
  %v379 = vpack.c.b16 %v376, %v375
  %v380 = vpack.c.b16 %v378, %v377
  %v384 = vsel %vm80, %v362, 0
  %v387 = vsel %vm80, %v363, 0
  %v390 = vsel %vm80, %v364, 0
  %v393 = vsel %vm80, %v365, 0
  %395 = vmatpush.bf16.msra.mxu0 0
  %396 = vmatpush.bf16.msra.mxu0 0
  %397 = vmatpush.bf16.msra.mxu0 0
  %398 = vmatpush.bf16.msra.mxu0 0
  %399 = vmatpush.bf16.msra.mxu0 0
  %400 = vmatpush.bf16.msra.mxu0 0
  %401 = vmatpush.bf16.msra.mxu0 %v380
  %402 = vmatpush.bf16.msra.mxu0 %v379
  %403 = vmatmul.bf16.gmra.mxu0 %v384
  %v404 = vpop.f32.mrf.mxu0
  %v405 = vadd.f32 %v369, %v404
  %v406 = vpop.f32.mrf.mxu0
  %v407 = vadd.f32 %v369, %v406
  %408 = vmatmul.bf16.gmra.mxu0 %v387
  %v409 = vpop.f32.mrf.mxu0
  %v410 = vadd.f32 %v369, %v409
  %v411 = vpop.f32.mrf.mxu0
  %v412 = vadd.f32 %v369, %v411
  %413 = vmatmul.bf16.gmra.mxu0 %v390
  %v414 = vpop.f32.mrf.mxu0
  %v415 = vadd.f32 %v369, %v414
  %v416 = vpop.f32.mrf.mxu0
  %v417 = vadd.f32 %v369, %v416
  %418 = vmatmul.bf16.gmra.mxu0 %v393
  %v419 = vpop.f32.mrf.mxu0
  %v420 = vadd.f32 %v369, %v419
  %v421 = vpop.f32.mrf.mxu0
  %v422 = vadd.f32 %v369, %v421
  %423 = vdwg.mxu0
  %424 = vst.msk [vmem:[#allocation2] sm:$0xff] %vm80, %v405
  %425 = vst.msk [vmem:[#allocation2 + $0x8] sm:$0xff] %vm80, %v407
  %426 = vst.msk [vmem:[#allocation2 + $0x10] sm:$0xff] %vm80, %v410
  %427 = vst.msk [vmem:[#allocation2 + $0x18] sm:$0xff] %vm80, %v412
  %428 = vst.msk [vmem:[#allocation2 + $0x20] sm:$0xff] %vm80, %v415
  %429 = vst.msk [vmem:[#allocation2 + $0x28] sm:$0xff] %vm80, %v417
  %430 = vst.msk [vmem:[#allocation2 + $0x30] sm:$0xff] %vm80, %v420
  %431 = vst.msk [vmem:[#allocation2 + $0x38] sm:$0xff] %vm80, %v422
  %s432 = scalar_lea.vmem %s2, 32
  %v433 = vld [vmem:[%s432] sm:$0xff]
  %v434 = vld [vmem:[%s432 + $0x8] sm:$0xff]
  %v435 = vld [vmem:[%s432 + $0x10] sm:$0xff]
  %v436 = vld [vmem:[%s432 + $0x18] sm:$0xff]
  %v437 = vld [vmem:[#allocation2] sm:$0xff]
  %438 = vmatpush.msra.mxu0 0.0
  %439 = vmatpush.msra.mxu0 0.0
  %440 = vmatpush.msra.mxu0 0.0
  %441 = vmatpush.msra.mxu0 0.0
  %442 = vmatpush.msra.mxu0 0.0
  %443 = vmatpush.msra.mxu0 0.0
  %444 = vmatpush.msra.mxu0 0.0
  %445 = vmatpush.msra.mxu0 0.0
  %446 = vmatpush.msra.mxu0 0.0
  %447 = vmatpush.msra.mxu0 0.0
  %448 = vmatpush.msra.mxu0 0.0
  %449 = vmatpush.msra.mxu0 0.0
  %450 = vmatpush.msra.mxu0 %v436
  %451 = vmatpush.msra.mxu0 %v435
  %452 = vmatpush.msra.mxu0 %v434
  %453 = vmatpush.msra.mxu0 %v433
  %454 = vmatmul.f32.gmra.mxu0 %v136
  %v455 = vpop.f32.mrf.mxu0
  %v456 = vadd.f32 %v437, %v455
  %457 = vdwg.mxu0
  %v458 = vtanh.pop %v456
  %459 = vst.msk [vmem:[#allocation2] sm:$0xff] %vm80, %v458
  %v460 = vld [vmem:[%s160] sm:$0xff]
  %v462 = vsel %vm80, %v458, 0
  %464 = vmatpush.msra.mxu0 0.0
  %465 = vmatpush.msra.mxu0 0.0
  %466 = vmatpush.msra.mxu0 0.0
  %467 = vmatpush.msra.mxu0 0.0
  %468 = vmatpush.msra.mxu0 0.0
  %469 = vmatpush.msra.mxu0 0.0
  %470 = vmatpush.msra.mxu0 0.0
  %471 = vmatpush.msra.mxu0 0.0
  %472 = vmatpush.msra.mxu0 0.0
  %473 = vmatpush.msra.mxu0 0.0
  %474 = vmatpush.msra.mxu0 0.0
  %475 = vmatpush.msra.mxu0 0.0
  %476 = vmatpush.msra.mxu0 %v436
  %477 = vmatpush.msra.mxu0 %v435
  %478 = vmatpush.msra.mxu0 %v434
  %479 = vmatpush.msra.mxu0 %v433
  %480 = vmatmul.f32.gmra.mxu0 %v462
  %v481 = vpop.f32.mrf.mxu0
  %v482 = vadd.f32 %v460, %v481
  %483 = vdwg.mxu0
  %v484 = vtanh.pop %v482
  %485 = vst.msk [vmem:[%s160] sm:$0xff] %vm80, %v484
  %v486 = vld [vmem:[%s187] sm:$0xff]
  %v488 = vsel %vm80, %v484, 0
  %490 = vmatpush.msra.mxu0 0.0
  %491 = vmatpush.msra.mxu0 0.0
  %492 = vmatpush.msra.mxu0 0.0
  %493 = vmatpush.msra.mxu0 0.0
  %494 = vmatpush.msra.mxu0 0.0
  %495 = vmatpush.msra.mxu0 0.0
  %496 = vmatpush.msra.mxu0 0.0
  %497 = vmatpush.msra.mxu0 0.0
  %498 = vmatpush.msra.mxu0 0.0
  %499 = vmatpush.msra.mxu0 0.0
  %500 = vmatpush.msra.mxu0 0.0
  %501 = vmatpush.msra.mxu0 0.0
  %502 = vmatpush.msra.mxu0 %v436
  %503 = vmatpush.msra.mxu0 %v435
  %504 = vmatpush.msra.mxu0 %v434
  %505 = vmatpush.msra.mxu0 %v433
  %506 = vmatmul.f32.gmra.mxu0 %v488
  %v507 = vpop.f32.mrf.mxu0
  %v508 = vadd.f32 %v486, %v507
  %509 = vdwg.mxu0
  %v510 = vtanh.pop %v508
  %511 = vst.msk [vmem:[%s187] sm:$0xff] %vm80, %v510
  %v512 = vld [vmem:[%s214] sm:$0xff]
  %v514 = vsel %vm80, %v510, 0
  %516 = vmatpush.msra.mxu0 0.0
  %517 = vmatpush.msra.mxu0 0.0
  %518 = vmatpush.msra.mxu0 0.0
  %519 = vmatpush.msra.mxu0 0.0
  %520 = vmatpush.msra.mxu0 0.0
  %521 = vmatpush.msra.mxu0 0.0
  %522 = vmatpush.msra.mxu0 0.0
  %523 = vmatpush.msra.mxu0 0.0
  %524 = vmatpush.msra.mxu0 0.0
  %525 = vmatpush.msra.mxu0 0.0
  %526 = vmatpush.msra.mxu0 0.0
  %527 = vmatpush.msra.mxu0 0.0
  %528 = vmatpush.msra.mxu0 %v436
  %529 = vmatpush.msra.mxu0 %v435
  %530 = vmatpush.msra.mxu0 %v434
  %531 = vmatpush.msra.mxu0 %v433
  %532 = vmatmul.f32.gmra.mxu0 %v514
  %v533 = vpop.f32.mrf.mxu0
  %v534 = vadd.f32 %v512, %v533
  %535 = vdwg.mxu0
  %v536 = vtanh.pop %v534
  %537 = vst.msk [vmem:[%s214] sm:$0xff] %vm80, %v536
  %v538 = vld [vmem:[%s241] sm:$0xff]
  %v540 = vsel %vm80, %v536, 0
  %542 = vmatpush.msra.mxu0 0.0
  %543 = vmatpush.msra.mxu0 0.0
  %544 = vmatpush.msra.mxu0 0.0
  %545 = vmatpush.msra.mxu0 0.0
  %546 = vmatpush.msra.mxu0 0.0
  %547 = vmatpush.msra.mxu0 0.0
  %548 = vmatpush.msra.mxu0 0.0
  %549 = vmatpush.msra.mxu0 0.0
  %550 = vmatpush.msra.mxu0 0.0
  %551 = vmatpush.msra.mxu0 0.0
  %552 = vmatpush.msra.mxu0 0.0
  %553 = vmatpush.msra.mxu0 0.0
  %554 = vmatpush.msra.mxu0 %v436
  %555 = vmatpush.msra.mxu0 %v435
  %556 = vmatpush.msra.mxu0 %v434
  %557 = vmatpush.msra.mxu0 %v433
  %558 = vmatmul.f32.gmra.mxu0 %v540
  %v559 = vpop.f32.mrf.mxu0
  %v560 = vadd.f32 %v538, %v559
  %561 = vdwg.mxu0
  %v562 = vtanh.pop %v560
  %563 = vst.msk [vmem:[%s241] sm:$0xff] %vm80, %v562
  %v564 = vld [vmem:[%s268] sm:$0xff]
  %v566 = vsel %vm80, %v562, 0
  %568 = vmatpush.msra.mxu0 0.0
  %569 = vmatpush.msra.mxu0 0.0
  %570 = vmatpush.msra.mxu0 0.0
  %571 = vmatpush.msra.mxu0 0.0
  %572 = vmatpush.msra.mxu0 0.0
  %573 = vmatpush.msra.mxu0 0.0
  %574 = vmatpush.msra.mxu0 0.0
  %575 = vmatpush.msra.mxu0 0.0
  %576 = vmatpush.msra.mxu0 0.0
  %577 = vmatpush.msra.mxu0 0.0
  %578 = vmatpush.msra.mxu0 0.0
  %579 = vmatpush.msra.mxu0 0.0
  %580 = vmatpush.msra.mxu0 %v436
  %581 = vmatpush.msra.mxu0 %v435
  %582 = vmatpush.msra.mxu0 %v434
  %583 = vmatpush.msra.mxu0 %v433
  %584 = vmatmul.f32.gmra.mxu0 %v566
  %v585 = vpop.f32.mrf.mxu0
  %v586 = vadd.f32 %v564, %v585
  %587 = vdwg.mxu0
  %v588 = vtanh.pop %v586
  %589 = vst.msk [vmem:[%s268] sm:$0xff] %vm80, %v588
  %v590 = vld [vmem:[%s295] sm:$0xff]
  %v592 = vsel %vm80, %v588, 0
  %594 = vmatpush.msra.mxu0 0.0
  %595 = vmatpush.msra.mxu0 0.0
  %596 = vmatpush.msra.mxu0 0.0
  %597 = vmatpush.msra.mxu0 0.0
  %598 = vmatpush.msra.mxu0 0.0
  %599 = vmatpush.msra.mxu0 0.0
  %600 = vmatpush.msra.mxu0 0.0
  %601 = vmatpush.msra.mxu0 0.0
  %602 = vmatpush.msra.mxu0 0.0
  %603 = vmatpush.msra.mxu0 0.0
  %604 = vmatpush.msra.mxu0 0.0
  %605 = vmatpush.msra.mxu0 0.0
  %606 = vmatpush.msra.mxu0 %v436
  %607 = vmatpush.msra.mxu0 %v435
  %608 = vmatpush.msra.mxu0 %v434
  %609 = vmatpush.msra.mxu0 %v433
  %610 = vmatmul.f32.gmra.mxu0 %v592
  %v611 = vpop.f32.mrf.mxu0
  %v612 = vadd.f32 %v590, %v611
  %613 = vdwg.mxu0
  %v614 = vtanh.pop %v612
  %615 = vst.msk [vmem:[%s295] sm:$0xff] %vm80, %v614
  %v616 = vld [vmem:[%s322] sm:$0xff]
  %v618 = vsel %vm80, %v614, 0
  %620 = vmatpush.msra.mxu0 0.0
  %621 = vmatpush.msra.mxu0 0.0
  %622 = vmatpush.msra.mxu0 0.0
  %623 = vmatpush.msra.mxu0 0.0
  %624 = vmatpush.msra.mxu0 0.0
  %625 = vmatpush.msra.mxu0 0.0
  %626 = vmatpush.msra.mxu0 0.0
  %627 = vmatpush.msra.mxu0 0.0
  %628 = vmatpush.msra.mxu0 0.0
  %629 = vmatpush.msra.mxu0 0.0
  %630 = vmatpush.msra.mxu0 0.0
  %631 = vmatpush.msra.mxu0 0.0
  %632 = vmatpush.msra.mxu0 %v436
  %633 = vmatpush.msra.mxu0 %v435
  %634 = vmatpush.msra.mxu0 %v434
  %635 = vmatpush.msra.mxu0 %v433
  %636 = vmatmul.f32.gmra.mxu0 %v618
  %v637 = vpop.f32.mrf.mxu0
  %v638 = vadd.f32 %v616, %v637
  %639 = vdwg.mxu0
  %v640 = vtanh.pop %v638
  %641 = vst.msk [vmem:[%s322] sm:$0xff] %vm80, %v640
  %v642 = vld [vmem:[#allocation2] sm:$0xff]
  %v643 = vld [vmem:[#allocation2 + $0x8] sm:$0xff]
  %v644 = vld [vmem:[#allocation2 + $0x10] sm:$0xff]
  %v645 = vld [vmem:[#allocation2 + $0x18] sm:$0xff]
  %v646 = vld [vmem:[#allocation2 + $0x20] sm:$0xff]
  %v647 = vld [vmem:[#allocation2 + $0x28] sm:$0xff]
  %v648 = vld [vmem:[#allocation2 + $0x30] sm:$0xff]
  %v649 = vld [vmem:[#allocation2 + $0x38] sm:$0xff]
  %v650 = vld [vmem:[%s4] sm:$0xf]
  %v651 = vld [vmem:[%s4 + $0x4] sm:$0xf]
  %v652 = vld [vmem:[%s4 + $0x8] sm:$0xf]
  %v653 = vld [vmem:[%s4 + $0xc] sm:$0xf]
  %v654 = vpack.c.bf16 %v643, %v642
  %v655 = vpack.c.bf16 %v645, %v644
  %v656 = vpack.c.bf16 %v647, %v646
  %v657 = vpack.c.bf16 %v649, %v648
  %v658 = vld [vmem:[%s5] sm:$0x1]
  %v660 = vperm.slane %v658, 0
  %v666 = vunpack.c.l.b16 %v650
  %v667 = vunpack.c.l.b16 %v651
  %v668 = vunpack.c.l.b16 %v652
  %v669 = vunpack.c.l.b16 %v653
  %v670 = vpack.c.b16 %v667, %v666
  %v671 = vpack.c.b16 %v669, %v668
  %v675 = vsel %vm80, %v654, 0
  %v678 = vsel %vm80, %v655, 0
  %v681 = vsel %vm80, %v656, 0
  %v684 = vsel %vm80, %v657, 0
  %686 = vmatpush.bf16.msra.mxu0 0
  %687 = vmatpush.bf16.msra.mxu0 0
  %688 = vmatpush.bf16.msra.mxu0 0
  %689 = vmatpush.bf16.msra.mxu0 0
  %690 = vmatpush.bf16.msra.mxu0 0
  %691 = vmatpush.bf16.msra.mxu0 0
  %692 = vmatpush.bf16.msra.mxu0 %v671
  %693 = vmatpush.bf16.msra.mxu0 %v670
  %694 = vmatmul.bf16.gmra.mxu0 %v675
  %v695 = vpop.f32.mrf.mxu0
  %v696 = vadd.f32 %v660, %v695
  %v697 = vpop.f32.mrf.mxu0
  %v698 = vadd.f32 %v660, %v697
  %699 = vmatmul.bf16.gmra.mxu0 %v678
  %v700 = vpop.f32.mrf.mxu0
  %v701 = vadd.f32 %v660, %v700
  %v702 = vpop.f32.mrf.mxu0
  %v703 = vadd.f32 %v660, %v702
  %704 = vmatmul.bf16.gmra.mxu0 %v681
  %v705 = vpop.f32.mrf.mxu0
  %v706 = vadd.f32 %v660, %v705
  %v707 = vpop.f32.mrf.mxu0
  %v708 = vadd.f32 %v660, %v707
  %709 = vmatmul.bf16.gmra.mxu0 %v684
  %v710 = vpop.f32.mrf.mxu0
  %v711 = vadd.f32 %v660, %v710
  %v712 = vpop.f32.mrf.mxu0
  %v713 = vadd.f32 %v660, %v712
  %714 = vdwg.mxu0
  %v715 = vld [vmem:[%s6] sm:$0xf]
  %v716 = vld [vmem:[%s6 + $0x4] sm:$0xf]
  %v717 = vld [vmem:[%s6 + $0x8] sm:$0xf]
  %v718 = vld [vmem:[%s6 + $0xc] sm:$0xf]
  %v719 = vpack.c.bf16 %v698, %v696
  %v720 = vpack.c.bf16 %v703, %v701
  %v721 = vpack.c.bf16 %v708, %v706
  %v722 = vpack.c.bf16 %v713, %v711
  %v723 = vld [vmem:[%s7] sm:$0x1]
  %v725 = vperm.slane %v723, 0
  %v731 = vunpack.c.l.b16 %v715
  %v732 = vunpack.c.l.b16 %v716
  %v733 = vunpack.c.l.b16 %v717
  %v734 = vunpack.c.l.b16 %v718
  %v735 = vpack.c.b16 %v732, %v731
  %v736 = vpack.c.b16 %v734, %v733
  %v740 = vsel %vm80, %v719, 0
  %v743 = vsel %vm80, %v720, 0
  %v746 = vsel %vm80, %v721, 0
  %v749 = vsel %vm80, %v722, 0
  %751 = vmatpush.bf16.msra.mxu0 0
  %752 = vmatpush.bf16.msra.mxu0 0
  %753 = vmatpush.bf16.msra.mxu0 0
  %754 = vmatpush.bf16.msra.mxu0 0
  %755 = vmatpush.bf16.msra.mxu0 0
  %756 = vmatpush.bf16.msra.mxu0 0
  %757 = vmatpush.bf16.msra.mxu0 %v736
  %758 = vmatpush.bf16.msra.mxu0 %v735
  %759 = vmatmul.bf16.gmra.mxu0 %v740
  %v760 = vpop.f32.mrf.mxu0
  %v761 = vadd.f32 %v725, %v760
  %v762 = vpop.f32.mrf.mxu0
  %v763 = vadd.f32 %v725, %v762
  %764 = vmatmul.bf16.gmra.mxu0 %v743
  %v765 = vpop.f32.mrf.mxu0
  %v766 = vadd.f32 %v725, %v765
  %v767 = vpop.f32.mrf.mxu0
  %v768 = vadd.f32 %v725, %v767
  %769 = vmatmul.bf16.gmra.mxu0 %v746
  %v770 = vpop.f32.mrf.mxu0
  %v771 = vadd.f32 %v725, %v770
  %v772 = vpop.f32.mrf.mxu0
  %v773 = vadd.f32 %v725, %v772
  %774 = vmatmul.bf16.gmra.mxu0 %v749
  %v775 = vpop.f32.mrf.mxu0
  %v776 = vadd.f32 %v725, %v775
  %v777 = vpop.f32.mrf.mxu0
  %v778 = vadd.f32 %v725, %v777
  %779 = vdwg.mxu0
  %v780 = vmax.f32 %v761, 0.0
  %v781 = vmax.f32 %v763, 0.0
  %v782 = vmax.f32 %v766, 0.0
  %v783 = vmax.f32 %v768, 0.0
  %v784 = vmax.f32 %v771, 0.0
  %v785 = vmax.f32 %v773, 0.0
  %v786 = vmax.f32 %v776, 0.0
  %v787 = vmax.f32 %v778, 0.0
  %v788 = vld [vmem:[%s8] sm:$0xf]
  %v789 = vld [vmem:[%s8 + $0x4] sm:$0xf]
  %v790 = vld [vmem:[%s8 + $0x8] sm:$0xf]
  %v791 = vld [vmem:[%s8 + $0xc] sm:$0xf]
  %v792 = vpack.c.bf16 %v781, %v780
  %v793 = vpack.c.bf16 %v783, %v782
  %v794 = vpack.c.bf16 %v785, %v784
  %v795 = vpack.c.bf16 %v787, %v786
  %v796 = vld [vmem:[%s9] sm:$0x1]
  %v798 = vperm.slane %v796, 0
  %v804 = vunpack.c.l.b16 %v788
  %v805 = vunpack.c.l.b16 %v789
  %v806 = vunpack.c.l.b16 %v790
  %v807 = vunpack.c.l.b16 %v791
  %v808 = vpack.c.b16 %v805, %v804
  %v809 = vpack.c.b16 %v807, %v806
  %v813 = vsel %vm80, %v792, 0
  %v816 = vsel %vm80, %v793, 0
  %v819 = vsel %vm80, %v794, 0
  %v822 = vsel %vm80, %v795, 0
  %824 = vmatpush.bf16.msra.mxu0 0
  %825 = vmatpush.bf16.msra.mxu0 0
  %826 = vmatpush.bf16.msra.mxu0 0
  %827 = vmatpush.bf16.msra.mxu0 0
  %828 = vmatpush.bf16.msra.mxu0 0
  %829 = vmatpush.bf16.msra.mxu0 0
  %830 = vmatpush.bf16.msra.mxu0 %v809
  %831 = vmatpush.bf16.msra.mxu0 %v808
  %832 = vmatmul.bf16.gmra.mxu0 %v813
  %v833 = vpop.f32.mrf.mxu0
  %v834 = vadd.f32 %v798, %v833
  %v835 = vpop.f32.mrf.mxu0
  %v836 = vadd.f32 %v798, %v835
  %837 = vmatmul.bf16.gmra.mxu0 %v816
  %v838 = vpop.f32.mrf.mxu0
  %v839 = vadd.f32 %v798, %v838
  %v840 = vpop.f32.mrf.mxu0
  %v841 = vadd.f32 %v798, %v840
  %842 = vmatmul.bf16.gmra.mxu0 %v819
  %v843 = vpop.f32.mrf.mxu0
  %v844 = vadd.f32 %v798, %v843
  %v845 = vpop.f32.mrf.mxu0
  %v846 = vadd.f32 %v798, %v845
  %847 = vmatmul.bf16.gmra.mxu0 %v822
  %v848 = vpop.f32.mrf.mxu0
  %v849 = vadd.f32 %v798, %v848
  %v850 = vpop.f32.mrf.mxu0
  %v851 = vadd.f32 %v798, %v850
  %852 = vdwg.mxu0
  %v853 = vadd.f32 %v834, %v696
  %v854 = vadd.f32 %v836, %v698
  %v855 = vadd.f32 %v839, %v701
  %v856 = vadd.f32 %v841, %v703
  %v857 = vadd.f32 %v844, %v706
  %v858 = vadd.f32 %v846, %v708
  %v859 = vadd.f32 %v849, %v711
  %v860 = vadd.f32 %v851, %v713
  %v861 = vsel %vm80, %v853, 0.0
  %862 = vadd.xlane.f32.xlu0 %v861
  %v863 = vpop.xlane.xlu0 %862
  %v864 = vsel %vm80, %v854, 0.0
  %865 = vadd.xlane.f32.xlu0 %v864
  %v866 = vpop.xlane.xlu0 %865
  %v867 = vsel %vm80, %v855, 0.0
  %868 = vadd.xlane.f32.xlu0 %v867
  %v869 = vpop.xlane.xlu0 %868
  %v870 = vsel %vm80, %v856, 0.0
  %871 = vadd.xlane.f32.xlu0 %v870
  %v872 = vpop.xlane.xlu0 %871
  %v873 = vsel %vm80, %v857, 0.0
  %874 = vadd.xlane.f32.xlu0 %v873
  %v875 = vpop.xlane.xlu0 %874
  %v876 = vsel %vm80, %v858, 0.0
  %877 = vadd.xlane.f32.xlu0 %v876
  %v878 = vpop.xlane.xlu0 %877
  %v879 = vsel %vm80, %v859, 0.0
  %880 = vadd.xlane.f32.xlu0 %v879
  %v881 = vpop.xlane.xlu0 %880
  %v882 = vsel %vm80, %v860, 0.0
  %883 = vadd.xlane.f32.xlu0 %v882
  %v884 = vpop.xlane.xlu0 %883
  %v885 = vrcp.pop 32.0
  %v886 = vmul.f32 32.0, %v885
  %v887 = vsub.f32 1.0, %v886
  %v888 = vmul.f32 %v885, %v887
  %v889 = vadd.f32 %v885, %v888
  %vm890 = vweird.f32 %v885
  %v891 = vsel %vm890, %v885, %v889
  %v892 = vmul.f32 %v863, %v891
  %v893 = vmul.f32 %v866, %v891
  %v894 = vmul.f32 %v869, %v891
  %v895 = vmul.f32 %v872, %v891
  %v896 = vmul.f32 %v875, %v891
  %v897 = vmul.f32 %v878, %v891
  %v898 = vmul.f32 %v881, %v891
  %v899 = vmul.f32 %v884, %v891
  %v900 = vsub.f32 %v853, %v892
  %v901 = vsub.f32 %v854, %v893
  %v902 = vsub.f32 %v855, %v894
  %v903 = vsub.f32 %v856, %v895
  %v904 = vsub.f32 %v857, %v896
  %v905 = vsub.f32 %v858, %v897
  %v906 = vsub.f32 %v859, %v898
  %v907 = vsub.f32 %v860, %v899
  %v908 = vmul.f32 %v900, %v900
  %v909 = vmul.f32 %v901, %v901
  %v910 = vmul.f32 %v902, %v902
  %v911 = vmul.f32 %v903, %v903
  %v912 = vmul.f32 %v904, %v904
  %v913 = vmul.f32 %v905, %v905
  %v914 = vmul.f32 %v906, %v906
  %v915 = vmul.f32 %v907, %v907
  %v916 = vsel %vm80, %v908, 0.0
  %917 = vadd.xlane.f32.xlu0 %v916
  %v918 = vpop.xlane.xlu0 %917
  %v919 = vsel %vm80, %v909, 0.0
  %920 = vadd.xlane.f32.xlu0 %v919
  %v921 = vpop.xlane.xlu0 %920
  %v922 = vsel %vm80, %v910, 0.0
  %923 = vadd.xlane.f32.xlu0 %v922
  %v924 = vpop.xlane.xlu0 %923
  %v925 = vsel %vm80, %v911, 0.0
  %926 = vadd.xlane.f32.xlu0 %v925
  %v927 = vpop.xlane.xlu0 %926
  %v928 = vsel %vm80, %v912, 0.0
  %929 = vadd.xlane.f32.xlu0 %v928
  %v930 = vpop.xlane.xlu0 %929
  %v931 = vsel %vm80, %v913, 0.0
  %932 = vadd.xlane.f32.xlu0 %v931
  %v933 = vpop.xlane.xlu0 %932
  %v934 = vsel %vm80, %v914, 0.0
  %935 = vadd.xlane.f32.xlu0 %v934
  %v936 = vpop.xlane.xlu0 %935
  %v937 = vsel %vm80, %v915, 0.0
  %938 = vadd.xlane.f32.xlu0 %v937
  %v939 = vpop.xlane.xlu0 %938
  %v940 = vmul.f32 %v918, %v891
  %v941 = vmul.f32 %v921, %v891
  %v942 = vmul.f32 %v924, %v891
  %v943 = vmul.f32 %v927, %v891
  %v944 = vmul.f32 %v930, %v891
  %v945 = vmul.f32 %v933, %v891
  %v946 = vmul.f32 %v936, %v891
  %v947 = vmul.f32 %v939, %v891
  %v948 = vadd.f32 %v940, 1e-05
  %v949 = vadd.f32 %v941, 1e-05
  %v950 = vadd.f32 %v942, 1e-05
  %v951 = vadd.f32 %v943, 1e-05
  %v952 = vadd.f32 %v944, 1e-05
  %v953 = vadd.f32 %v945, 1e-05
  %v954 = vadd.f32 %v946, 1e-05
  %v955 = vadd.f32 %v947, 1e-05
  %v956 = vrsqrt.pop %v948
  %v957 = vmul.f32 %v956, %v948
  %v958 = vmul.f32 %v957, %v956
  %v959 = vmul.f32 0.5, %v958
  %v960 = vsub.f32 1.5, %v959
  %v961 = vmul.f32 %v956, %v960
  %vm962 = vweird.f32 %v948
  %vm963 = vweird.f32 %v956
  %vm964 = vmor %vm962, %vm963
  %v965 = vsel %vm964, %v956, %v961
  %v966 = vrsqrt.pop %v949
  %v967 = vmul.f32 %v966, %v949
  %v968 = vmul.f32 %v967, %v966
  %v969 = vmul.f32 0.5, %v968
  %v970 = vsub.f32 1.5, %v969
  %v971 = vmul.f32 %v966, %v970
  %vm972 = vweird.f32 %v949
  %vm973 = vweird.f32 %v966
  %vm974 = vmor %vm972, %vm973
  %v975 = vsel %vm974, %v966, %v971
  %v976 = vrsqrt.pop %v950
  %v977 = vmul.f32 %v976, %v950
  %v978 = vmul.f32 %v977, %v976
  %v979 = vmul.f32 0.5, %v978
  %v980 = vsub.f32 1.5, %v979
  %v981 = vmul.f32 %v976, %v980
  %vm982 = vweird.f32 %v950
  %vm983 = vweird.f32 %v976
  %vm984 = vmor %vm982, %vm983
  %v985 = vsel %vm984, %v976, %v981
  %v986 = vrsqrt.pop %v951
  %v987 = vmul.f32 %v986, %v951
  %v988 = vmul.f32 %v987, %v986
  %v989 = vmul.f32 0.5, %v988
  %v990 = vsub.f32 1.5, %v989
  %v991 = vmul.f32 %v986, %v990
  %vm992 = vweird.f32 %v951
  %vm993 = vweird.f32 %v986
  %vm994 = vmor %vm992, %vm993
  %v995 = vsel %vm994, %v986, %v991
  %v996 = vrsqrt.pop %v952
  %v997 = vmul.f32 %v996, %v952
  %v998 = vmul.f32 %v997, %v996
  %v999 = vmul.f32 0.5, %v998
  %v1000 = vsub.f32 1.5, %v999
  %v1001 = vmul.f32 %v996, %v1000
  %vm1002 = vweird.f32 %v952
  %vm1003 = vweird.f32 %v996
  %vm1004 = vmor %vm1002, %vm1003
  %v1005 = vsel %vm1004, %v996, %v1001
  %v1006 = vrsqrt.pop %v953
  %v1007 = vmul.f32 %v1006, %v953
  %v1008 = vmul.f32 %v1007, %v1006
  %v1009 = vmul.f32 0.5, %v1008
  %v1010 = vsub.f32 1.5, %v1009
  %v1011 = vmul.f32 %v1006, %v1010
  %vm1012 = vweird.f32 %v953
  %vm1013 = vweird.f32 %v1006
  %vm1014 = vmor %vm1012, %vm1013
  %v1015 = vsel %vm1014, %v1006, %v1011
  %v1016 = vrsqrt.pop %v954
  %v1017 = vmul.f32 %v1016, %v954
  %v1018 = vmul.f32 %v1017, %v1016
  %v1019 = vmul.f32 0.5, %v1018
  %v1020 = vsub.f32 1.5, %v1019
  %v1021 = vmul.f32 %v1016, %v1020
  %vm1022 = vweird.f32 %v954
  %vm1023 = vweird.f32 %v1016
  %vm1024 = vmor %vm1022, %vm1023
  %v1025 = vsel %vm1024, %v1016, %v1021
  %v1026 = vrsqrt.pop %v955
  %v1027 = vmul.f32 %v1026, %v955
  %v1028 = vmul.f32 %v1027, %v1026
  %v1029 = vmul.f32 0.5, %v1028
  %v1030 = vsub.f32 1.5, %v1029
  %v1031 = vmul.f32 %v1026, %v1030
  %vm1032 = vweird.f32 %v955
  %vm1033 = vweird.f32 %v1026
  %vm1034 = vmor %vm1032, %vm1033
  %v1035 = vsel %vm1034, %v1026, %v1031
  %v1036 = vmul.f32 %v900, %v965
  %v1037 = vmul.f32 %v901, %v975
  %v1038 = vmul.f32 %v902, %v985
  %v1039 = vmul.f32 %v903, %v995
  %v1040 = vmul.f32 %v904, %v1005
  %v1041 = vmul.f32 %v905, %v1015
  %v1042 = vmul.f32 %v906, %v1025
  %v1043 = vmul.f32 %v907, %v1035
  %v1044 = vld [vmem:[%s10] sm:$0x1]
  %v1046 = vperm.slane %v1044, 0
  %v1048 = vmul.f32 %v1036, %v1046
  %v1049 = vmul.f32 %v1037, %v1046
  %v1050 = vmul.f32 %v1038, %v1046
  %v1051 = vmul.f32 %v1039, %v1046
  %v1052 = vmul.f32 %v1040, %v1046
  %v1053 = vmul.f32 %v1041, %v1046
  %v1054 = vmul.f32 %v1042, %v1046
  %v1055 = vmul.f32 %v1043, %v1046
  %v1056 = vld [vmem:[%s11] sm:$0x1]
  %v1058 = vperm.slane %v1056, 0
  %v1060 = vadd.f32 %v1048, %v1058
  %v1061 = vadd.f32 %v1049, %v1058
  %v1062 = vadd.f32 %v1050, %v1058
  %v1063 = vadd.f32 %v1051, %v1058
  %v1064 = vadd.f32 %v1052, %v1058
  %v1065 = vadd.f32 %v1053, %v1058
  %v1066 = vadd.f32 %v1054, %v1058
  %v1067 = vadd.f32 %v1055, %v1058
  %s1068 = scalar_lea.vmem %s4, 16
  %v1069 = vld [vmem:[%s1068] sm:$0xf]
  %v1070 = vld [vmem:[%s1068 + $0x4] sm:$0xf]
  %v1071 = vld [vmem:[%s1068 + $0x8] sm:$0xf]
  %v1072 = vld [vmem:[%s1068 + $0xc] sm:$0xf]
  %v1073 = vpack.c.bf16 %v1061, %v1060
  %v1074 = vpack.c.bf16 %v1063, %v1062
  %v1075 = vpack.c.bf16 %v1065, %v1064
  %v1076 = vpack.c.bf16 %v1067, %v1066
  %s1077 = scalar_lea.vmem %s5, 1
  %v1078 = vld [vmem:[%s1077] sm:$0x1]
  %v1080 = vperm.slane %v1078, 0
  %v1086 = vunpack.c.l.b16 %v1069
  %v1087 = vunpack.c.l.b16 %v1070
  %v1088 = vunpack.c.l.b16 %v1071
  %v1089 = vunpack.c.l.b16 %v1072
  %v1090 = vpack.c.b16 %v1087, %v1086
  %v1091 = vpack.c.b16 %v1089, %v1088
  %v1095 = vsel %vm80, %v1073, 0
  %v1098 = vsel %vm80, %v1074, 0
  %v1101 = vsel %vm80, %v1075, 0
  %v1104 = vsel %vm80, %v1076, 0
  %1106 = vmatpush.bf16.msra.mxu0 0
  %1107 = vmatpush.bf16.msra.mxu0 0
  %1108 = vmatpush.bf16.msra.mxu0 0
  %1109 = vmatpush.bf16.msra.mxu0 0
  %1110 = vmatpush.bf16.msra.mxu0 0
  %1111 = vmatpush.bf16.msra.mxu0 0
  %1112 = vmatpush.bf16.msra.mxu0 %v1091
  %1113 = vmatpush.bf16.msra.mxu0 %v1090
  %1114 = vmatmul.bf16.gmra.mxu0 %v1095
  %v1115 = vpop.f32.mrf.mxu0
  %v1116 = vadd.f32 %v1080, %v1115
  %v1117 = vpop.f32.mrf.mxu0
  %v1118 = vadd.f32 %v1080, %v1117
  %1119 = vmatmul.bf16.gmra.mxu0 %v1098
  %v1120 = vpop.f32.mrf.mxu0
  %v1121 = vadd.f32 %v1080, %v1120
  %v1122 = vpop.f32.mrf.mxu0
  %v1123 = vadd.f32 %v1080, %v1122
  %1124 = vmatmul.bf16.gmra.mxu0 %v1101
  %v1125 = vpop.f32.mrf.mxu0
  %v1126 = vadd.f32 %v1080, %v1125
  %v1127 = vpop.f32.mrf.mxu0
  %v1128 = vadd.f32 %v1080, %v1127
  %1129 = vmatmul.bf16.gmra.mxu0 %v1104
  %v1130 = vpop.f32.mrf.mxu0
  %v1131 = vadd.f32 %v1080, %v1130
  %v1132 = vpop.f32.mrf.mxu0
  %v1133 = vadd.f32 %v1080, %v1132
  %1134 = vdwg.mxu0
  %s1135 = scalar_lea.vmem %s6, 16
  %v1136 = vld [vmem:[%s1135] sm:$0xf]
  %v1137 = vld [vmem:[%s1135 + $0x4] sm:$0xf]
  %v1138 = vld [vmem:[%s1135 + $0x8] sm:$0xf]
  %v1139 = vld [vmem:[%s1135 + $0xc] sm:$0xf]
  %v1140 = vpack.c.bf16 %v1118, %v1116
  %v1141 = vpack.c.bf16 %v1123, %v1121
  %v1142 = vpack.c.bf16 %v1128, %v1126
  %v1143 = vpack.c.bf16 %v1133, %v1131
  %s1144 = scalar_lea.vmem %s7, 1
  %v1145 = vld [vmem:[%s1144] sm:$0x1]
  %v1147 = vperm.slane %v1145, 0
  %v1153 = vunpack.c.l.b16 %v1136
  %v1154 = vunpack.c.l.b16 %v1137
  %v1155 = vunpack.c.l.b16 %v1138
  %v1156 = vunpack.c.l.b16 %v1139
  %v1157 = vpack.c.b16 %v1154, %v1153
  %v1158 = vpack.c.b16 %v1156, %v1155
  %v1162 = vsel %vm80, %v1140, 0
  %v1165 = vsel %vm80, %v1141, 0
  %v1168 = vsel %vm80, %v1142, 0
  %v1171 = vsel %vm80, %v1143, 0
  %1173 = vmatpush.bf16.msra.mxu0 0
  %1174 = vmatpush.bf16.msra.mxu0 0
  %1175 = vmatpush.bf16.msra.mxu0 0
  %1176 = vmatpush.bf16.msra.mxu0 0
  %1177 = vmatpush.bf16.msra.mxu0 0
  %1178 = vmatpush.bf16.msra.mxu0 0
  %1179 = vmatpush.bf16.msra.mxu0 %v1158
  %1180 = vmatpush.bf16.msra.mxu0 %v1157
  %1181 = vmatmul.bf16.gmra.mxu0 %v1162
  %v1182 = vpop.f32.mrf.mxu0
  %v1183 = vadd.f32 %v1147, %v1182
  %v1184 = vpop.f32.mrf.mxu0
  %v1185 = vadd.f32 %v1147, %v1184
  %1186 = vmatmul.bf16.gmra.mxu0 %v1165
  %v1187 = vpop.f32.mrf.mxu0
  %v1188 = vadd.f32 %v1147, %v1187
  %v1189 = vpop.f32.mrf.mxu0
  %v1190 = vadd.f32 %v1147, %v1189
  %1191 = vmatmul.bf16.gmra.mxu0 %v1168
  %v1192 = vpop.f32.mrf.mxu0
  %v1193 = vadd.f32 %v1147, %v1192
  %v1194 = vpop.f32.mrf.mxu0
  %v1195 = vadd.f32 %v1147, %v1194
  %1196 = vmatmul.bf16.gmra.mxu0 %v1171
  %v1197 = vpop.f32.mrf.mxu0
  %v1198 = vadd.f32 %v1147, %v1197
  %v1199 = vpop.f32.mrf.mxu0
  %v1200 = vadd.f32 %v1147, %v1199
  %1201 = vdwg.mxu0
  %v1202 = vmax.f32 %v1183, 0.0
  %v1203 = vmax.f32 %v1185, 0.0
  %v1204 = vmax.f32 %v1188, 0.0
  %v1205 = vmax.f32 %v1190, 0.0
  %v1206 = vmax.f32 %v1193, 0.0
  %v1207 = vmax.f32 %v1195, 0.0
  %v1208 = vmax.f32 %v1198, 0.0
  %v1209 = vmax.f32 %v1200, 0.0
  %s1210 = scalar_lea.vmem %s8, 16
  %v1211 = vld [vmem:[%s1210] sm:$0xf]
  %v1212 = vld [vmem:[%s1210 + $0x4] sm:$0xf]
  %v1213 = vld [vmem:[%s1210 + $0x8] sm:$0xf]
  %v1214 = vld [vmem:[%s1210 + $0xc] sm:$0xf]
  %v1215 = vpack.c.bf16 %v1203, %v1202
  %v1216 = vpack.c.bf16 %v1205, %v1204
  %v1217 = vpack.c.bf16 %v1207, %v1206
  %v1218 = vpack.c.bf16 %v1209, %v1208
  %s1219 = scalar_lea.vmem %s9, 1
  %v1220 = vld [vmem:[%s1219] sm:$0x1]
  %v1222 = vperm.slane %v1220, 0
  %v1228 = vunpack.c.l.b16 %v1211
  %v1229 = vunpack.c.l.b16 %v1212
  %v1230 = vunpack.c.l.b16 %v1213
  %v1231 = vunpack.c.l.b16 %v1214
  %v1232 = vpack.c.b16 %v1229, %v1228
  %v1233 = vpack.c.b16 %v1231, %v1230
  %v1237 = vsel %vm80, %v1215, 0
  %v1240 = vsel %vm80, %v1216, 0
  %v1243 = vsel %vm80, %v1217, 0
  %v1246 = vsel %vm80, %v1218, 0
  %1248 = vmatpush.bf16.msra.mxu0 0
  %1249 = vmatpush.bf16.msra.mxu0 0
  %1250 = vmatpush.bf16.msra.mxu0 0
  %1251 = vmatpush.bf16.msra.mxu0 0
  %1252 = vmatpush.bf16.msra.mxu0 0
  %1253 = vmatpush.bf16.msra.mxu0 0
  %1254 = vmatpush.bf16.msra.mxu0 %v1233
  %1255 = vmatpush.bf16.msra.mxu0 %v1232
  %1256 = vmatmul.bf16.gmra.mxu0 %v1237
  %v1257 = vpop.f32.mrf.mxu0
  %v1258 = vadd.f32 %v1222, %v1257
  %v1259 = vpop.f32.mrf.mxu0
  %v1260 = vadd.f32 %v1222, %v1259
  %1261 = vmatmul.bf16.gmra.mxu0 %v1240
  %v1262 = vpop.f32.mrf.mxu0
  %v1263 = vadd.f32 %v1222, %v1262
  %v1264 = vpop.f32.mrf.mxu0
  %v1265 = vadd.f32 %v1222, %v1264
  %1266 = vmatmul.bf16.gmra.mxu0 %v1243
  %v1267 = vpop.f32.mrf.mxu0
  %v1268 = vadd.f32 %v1222, %v1267
  %v1269 = vpop.f32.mrf.mxu0
  %v1270 = vadd.f32 %v1222, %v1269
  %1271 = vmatmul.bf16.gmra.mxu0 %v1246
  %v1272 = vpop.f32.mrf.mxu0
  %v1273 = vadd.f32 %v1222, %v1272
  %v1274 = vpop.f32.mrf.mxu0
  %v1275 = vadd.f32 %v1222, %v1274
  %1276 = vdwg.mxu0
  %v1277 = vadd.f32 %v1258, %v1116
  %v1278 = vadd.f32 %v1260, %v1118
  %v1279 = vadd.f32 %v1263, %v1121
  %v1280 = vadd.f32 %v1265, %v1123
  %v1281 = vadd.f32 %v1268, %v1126
  %v1282 = vadd.f32 %v1270, %v1128
  %v1283 = vadd.f32 %v1273, %v1131
  %v1284 = vadd.f32 %v1275, %v1133
  %v1285 = vsel %vm80, %v1277, 0.0
  %1286 = vadd.xlane.f32.xlu0 %v1285
  %v1287 = vpop.xlane.xlu0 %1286
  %v1288 = vsel %vm80, %v1278, 0.0
  %1289 = vadd.xlane.f32.xlu0 %v1288
  %v1290 = vpop.xlane.xlu0 %1289
  %v1291 = vsel %vm80, %v1279, 0.0
  %1292 = vadd.xlane.f32.xlu0 %v1291
  %v1293 = vpop.xlane.xlu0 %1292
  %v1294 = vsel %vm80, %v1280, 0.0
  %1295 = vadd.xlane.f32.xlu0 %v1294
  %v1296 = vpop.xlane.xlu0 %1295
  %v1297 = vsel %vm80, %v1281, 0.0
  %1298 = vadd.xlane.f32.xlu0 %v1297
  %v1299 = vpop.xlane.xlu0 %1298
  %v1300 = vsel %vm80, %v1282, 0.0
  %1301 = vadd.xlane.f32.xlu0 %v1300
  %v1302 = vpop.xlane.xlu0 %1301
  %v1303 = vsel %vm80, %v1283, 0.0
  %1304 = vadd.xlane.f32.xlu0 %v1303
  %v1305 = vpop.xlane.xlu0 %1304
  %v1306 = vsel %vm80, %v1284, 0.0
  %1307 = vadd.xlane.f32.xlu0 %v1306
  %v1308 = vpop.xlane.xlu0 %1307
  %v1309 = vmul.f32 %v1287, %v891
  %v1310 = vmul.f32 %v1290, %v891
  %v1311 = vmul.f32 %v1293, %v891
  %v1312 = vmul.f32 %v1296, %v891
  %v1313 = vmul.f32 %v1299, %v891
  %v1314 = vmul.f32 %v1302, %v891
  %v1315 = vmul.f32 %v1305, %v891
  %v1316 = vmul.f32 %v1308, %v891
  %v1317 = vsub.f32 %v1277, %v1309
  %v1318 = vsub.f32 %v1278, %v1310
  %v1319 = vsub.f32 %v1279, %v1311
  %v1320 = vsub.f32 %v1280, %v1312
  %v1321 = vsub.f32 %v1281, %v1313
  %v1322 = vsub.f32 %v1282, %v1314
  %v1323 = vsub.f32 %v1283, %v1315
  %v1324 = vsub.f32 %v1284, %v1316
  %v1325 = vmul.f32 %v1317, %v1317
  %v1326 = vmul.f32 %v1318, %v1318
  %v1327 = vmul.f32 %v1319, %v1319
  %v1328 = vmul.f32 %v1320, %v1320
  %v1329 = vmul.f32 %v1321, %v1321
  %v1330 = vmul.f32 %v1322, %v1322
  %v1331 = vmul.f32 %v1323, %v1323
  %v1332 = vmul.f32 %v1324, %v1324
  %v1333 = vsel %vm80, %v1325, 0.0
  %1334 = vadd.xlane.f32.xlu0 %v1333
  %v1335 = vpop.xlane.xlu0 %1334
  %v1336 = vsel %vm80, %v1326, 0.0
  %1337 = vadd.xlane.f32.xlu0 %v1336
  %v1338 = vpop.xlane.xlu0 %1337
  %v1339 = vsel %vm80, %v1327, 0.0
  %1340 = vadd.xlane.f32.xlu0 %v1339
  %v1341 = vpop.xlane.xlu0 %1340
  %v1342 = vsel %vm80, %v1328, 0.0
  %1343 = vadd.xlane.f32.xlu0 %v1342
  %v1344 = vpop.xlane.xlu0 %1343
  %v1345 = vsel %vm80, %v1329, 0.0
  %1346 = vadd.xlane.f32.xlu0 %v1345
  %v1347 = vpop.xlane.xlu0 %1346
  %v1348 = vsel %vm80, %v1330, 0.0
  %1349 = vadd.xlane.f32.xlu0 %v1348
  %v1350 = vpop.xlane.xlu0 %1349
  %v1351 = vsel %vm80, %v1331, 0.0
  %1352 = vadd.xlane.f32.xlu0 %v1351
  %v1353 = vpop.xlane.xlu0 %1352
  %v1354 = vsel %vm80, %v1332, 0.0
  %1355 = vadd.xlane.f32.xlu0 %v1354
  %v1356 = vpop.xlane.xlu0 %1355
  %v1357 = vmul.f32 %v1335, %v891
  %v1358 = vmul.f32 %v1338, %v891
  %v1359 = vmul.f32 %v1341, %v891
  %v1360 = vmul.f32 %v1344, %v891
  %v1361 = vmul.f32 %v1347, %v891
  %v1362 = vmul.f32 %v1350, %v891
  %v1363 = vmul.f32 %v1353, %v891
  %v1364 = vmul.f32 %v1356, %v891
  %v1365 = vadd.f32 %v1357, 1e-05
  %v1366 = vadd.f32 %v1358, 1e-05
  %v1367 = vadd.f32 %v1359, 1e-05
  %v1368 = vadd.f32 %v1360, 1e-05
  %v1369 = vadd.f32 %v1361, 1e-05
  %v1370 = vadd.f32 %v1362, 1e-05
  %v1371 = vadd.f32 %v1363, 1e-05
  %v1372 = vadd.f32 %v1364, 1e-05
  %v1373 = vrsqrt.pop %v1365
  %v1374 = vmul.f32 %v1373, %v1365
  %v1375 = vmul.f32 %v1374, %v1373
  %v1376 = vmul.f32 0.5, %v1375
  %v1377 = vsub.f32 1.5, %v1376
  %v1378 = vmul.f32 %v1373, %v1377
  %vm1379 = vweird.f32 %v1365
  %vm1380 = vweird.f32 %v1373
  %vm1381 = vmor %vm1379, %vm1380
  %v1382 = vsel %vm1381, %v1373, %v1378
  %v1383 = vrsqrt.pop %v1366
  %v1384 = vmul.f32 %v1383, %v1366
  %v1385 = vmul.f32 %v1384, %v1383
  %v1386 = vmul.f32 0.5, %v1385
  %v1387 = vsub.f32 1.5, %v1386
  %v1388 = vmul.f32 %v1383, %v1387
  %vm1389 = vweird.f32 %v1366
  %vm1390 = vweird.f32 %v1383
  %vm1391 = vmor %vm1389, %vm1390
  %v1392 = vsel %vm1391, %v1383, %v1388
  %v1393 = vrsqrt.pop %v1367
  %v1394 = vmul.f32 %v1393, %v1367
  %v1395 = vmul.f32 %v1394, %v1393
  %v1396 = vmul.f32 0.5, %v1395
  %v1397 = vsub.f32 1.5, %v1396
  %v1398 = vmul.f32 %v1393, %v1397
  %vm1399 = vweird.f32 %v1367
  %vm1400 = vweird.f32 %v1393
  %vm1401 = vmor %vm1399, %vm1400
  %v1402 = vsel %vm1401, %v1393, %v1398
  %v1403 = vrsqrt.pop %v1368
  %v1404 = vmul.f32 %v1403, %v1368
  %v1405 = vmul.f32 %v1404, %v1403
  %v1406 = vmul.f32 0.5, %v1405
  %v1407 = vsub.f32 1.5, %v1406
  %v1408 = vmul.f32 %v1403, %v1407
  %vm1409 = vweird.f32 %v1368
  %vm1410 = vweird.f32 %v1403
  %vm1411 = vmor %vm1409, %vm1410
  %v1412 = vsel %vm1411, %v1403, %v1408
  %v1413 = vrsqrt.pop %v1369
  %v1414 = vmul.f32 %v1413, %v1369
  %v1415 = vmul.f32 %v1414, %v1413
  %v1416 = vmul.f32 0.5, %v1415
  %v1417 = vsub.f32 1.5, %v1416
  %v1418 = vmul.f32 %v1413, %v1417
  %vm1419 = vweird.f32 %v1369
  %vm1420 = vweird.f32 %v1413
  %vm1421 = vmor %vm1419, %vm1420
  %v1422 = vsel %vm1421, %v1413, %v1418
  %v1423 = vrsqrt.pop %v1370
  %v1424 = vmul.f32 %v1423, %v1370
  %v1425 = vmul.f32 %v1424, %v1423
  %v1426 = vmul.f32 0.5, %v1425
  %v1427 = vsub.f32 1.5, %v1426
  %v1428 = vmul.f32 %v1423, %v1427
  %vm1429 = vweird.f32 %v1370
  %vm1430 = vweird.f32 %v1423
  %vm1431 = vmor %vm1429, %vm1430
  %v1432 = vsel %vm1431, %v1423, %v1428
  %v1433 = vrsqrt.pop %v1371
  %v1434 = vmul.f32 %v1433, %v1371
  %v1435 = vmul.f32 %v1434, %v1433
  %v1436 = vmul.f32 0.5, %v1435
  %v1437 = vsub.f32 1.5, %v1436
  %v1438 = vmul.f32 %v1433, %v1437
  %vm1439 = vweird.f32 %v1371
  %vm1440 = vweird.f32 %v1433
  %vm1441 = vmor %vm1439, %vm1440
  %v1442 = vsel %vm1441, %v1433, %v1438
  %v1443 = vrsqrt.pop %v1372
  %v1444 = vmul.f32 %v1443, %v1372
  %v1445 = vmul.f32 %v1444, %v1443
  %v1446 = vmul.f32 0.5, %v1445
  %v1447 = vsub.f32 1.5, %v1446
  %v1448 = vmul.f32 %v1443, %v1447
  %vm1449 = vweird.f32 %v1372
  %vm1450 = vweird.f32 %v1443
  %vm1451 = vmor %vm1449, %vm1450
  %v1452 = vsel %vm1451, %v1443, %v1448
  %v1453 = vmul.f32 %v1317, %v1382
  %v1454 = vmul.f32 %v1318, %v1392
  %v1455 = vmul.f32 %v1319, %v1402
  %v1456 = vmul.f32 %v1320, %v1412
  %v1457 = vmul.f32 %v1321, %v1422
  %v1458 = vmul.f32 %v1322, %v1432
  %v1459 = vmul.f32 %v1323, %v1442
  %v1460 = vmul.f32 %v1324, %v1452
  %s1461 = scalar_lea.vmem %s10, 1
  %v1462 = vld [vmem:[%s1461] sm:$0x1]
  %v1464 = vperm.slane %v1462, 0
  %v1466 = vmul.f32 %v1453, %v1464
  %v1467 = vmul.f32 %v1454, %v1464
  %v1468 = vmul.f32 %v1455, %v1464
  %v1469 = vmul.f32 %v1456, %v1464
  %v1470 = vmul.f32 %v1457, %v1464
  %v1471 = vmul.f32 %v1458, %v1464
  %v1472 = vmul.f32 %v1459, %v1464
  %v1473 = vmul.f32 %v1460, %v1464
  %s1474 = scalar_lea.vmem %s11, 1
  %v1475 = vld [vmem:[%s1474] sm:$0x1]
  %v1477 = vperm.slane %v1475, 0
  %v1479 = vadd.f32 %v1466, %v1477
  %v1480 = vadd.f32 %v1467, %v1477
  %v1481 = vadd.f32 %v1468, %v1477
  %v1482 = vadd.f32 %v1469, %v1477
  %v1483 = vadd.f32 %v1470, %v1477
  %v1484 = vadd.f32 %v1471, %v1477
  %v1485 = vadd.f32 %v1472, %v1477
  %v1486 = vadd.f32 %v1473, %v1477
  %v1487 = vld [vmem:[%s12] sm:$0xf]
  %v1488 = vld [vmem:[%s12 + $0x4] sm:$0xf]
  %v1489 = vld [vmem:[%s12 + $0x8] sm:$0xf]
  %v1490 = vld [vmem:[%s12 + $0xc] sm:$0xf]
  %v1491 = vpack.c.bf16 %v1480, %v1479
  %v1492 = vpack.c.bf16 %v1482, %v1481
  %v1493 = vpack.c.bf16 %v1484, %v1483
  %v1494 = vpack.c.bf16 %v1486, %v1485
  %v1495 = vld [vmem:[%s13] sm:$0x1]
  %v1497 = vperm.slane %v1495, 0
  %v1503 = vunpack.c.l.b16 %v1487
  %v1504 = vunpack.c.l.b16 %v1488
  %v1505 = vunpack.c.l.b16 %v1489
  %v1506 = vunpack.c.l.b16 %v1490
  %v1507 = vpack.c.b16 %v1504, %v1503
  %v1508 = vpack.c.b16 %v1506, %v1505
  %v1512 = vsel %vm80, %v1491, 0
  %v1515 = vsel %vm80, %v1492, 0
  %v1518 = vsel %vm80, %v1493, 0
  %v1521 = vsel %vm80, %v1494, 0
  %1523 = vmatpush.bf16.msra.mxu0 0
  %1524 = vmatpush.bf16.msra.mxu0 0
  %1525 = vmatpush.bf16.msra.mxu0 0
  %1526 = vmatpush.bf16.msra.mxu0 0
  %1527 = vmatpush.bf16.msra.mxu0 0
  %1528 = vmatpush.bf16.msra.mxu0 0
  %1529 = vmatpush.bf16.msra.mxu0 %v1508
  %1530 = vmatpush.bf16.msra.mxu0 %v1507
  %1531 = vmatmul.bf16.gmra.mxu0 %v1512
  %v1532 = vpop.f32.mrf.mxu0
  %v1533 = vadd.f32 %v1497, %v1532
  %v1534 = vpop.f32.mrf.mxu0
  %v1535 = vadd.f32 %v1497, %v1534
  %1536 = vmatmul.bf16.gmra.mxu0 %v1515
  %v1537 = vpop.f32.mrf.mxu0
  %v1538 = vadd.f32 %v1497, %v1537
  %v1539 = vpop.f32.mrf.mxu0
  %v1540 = vadd.f32 %v1497, %v1539
  %1541 = vmatmul.bf16.gmra.mxu0 %v1518
  %v1542 = vpop.f32.mrf.mxu0
  %v1543 = vadd.f32 %v1497, %v1542
  %v1544 = vpop.f32.mrf.mxu0
  %v1545 = vadd.f32 %v1497, %v1544
  %1546 = vmatmul.bf16.gmra.mxu0 %v1521
  %v1547 = vpop.f32.mrf.mxu0
  %v1548 = vadd.f32 %v1497, %v1547
  %v1549 = vpop.f32.mrf.mxu0
  %v1550 = vadd.f32 %v1497, %v1549
  %1551 = vdwg.mxu0
  %s1552 = scalar_lea.vmem %s4, 32
  %v1553 = vld [vmem:[%s1552] sm:$0xf]
  %v1554 = vld [vmem:[%s1552 + $0x4] sm:$0xf]
  %v1555 = vld [vmem:[%s1552 + $0x8] sm:$0xf]
  %v1556 = vld [vmem:[%s1552 + $0xc] sm:$0xf]
  %s1557 = scalar_lea.vmem %s5, 2
  %v1558 = vld [vmem:[%s1557] sm:$0x1]
  %v1560 = vperm.slane %v1558, 0
  %v1566 = vunpack.c.l.b16 %v1553
  %v1567 = vunpack.c.l.b16 %v1554
  %v1568 = vunpack.c.l.b16 %v1555
  %v1569 = vunpack.c.l.b16 %v1556
  %v1570 = vpack.c.b16 %v1567, %v1566
  %v1571 = vpack.c.b16 %v1569, %v1568
  %1574 = vmatpush.bf16.msra.mxu0 0
  %1575 = vmatpush.bf16.msra.mxu0 0
  %1576 = vmatpush.bf16.msra.mxu0 0
  %1577 = vmatpush.bf16.msra.mxu0 0
  %1578 = vmatpush.bf16.msra.mxu0 0
  %1579 = vmatpush.bf16.msra.mxu0 0
  %1580 = vmatpush.bf16.msra.mxu0 %v1571
  %1581 = vmatpush.bf16.msra.mxu0 %v1570
  %1582 = vmatmul.bf16.gmra.mxu0 %v1512
  %v1583 = vpop.f32.mrf.mxu0
  %v1584 = vadd.f32 %v1560, %v1583
  %v1585 = vpop.f32.mrf.mxu0
  %v1586 = vadd.f32 %v1560, %v1585
  %1587 = vmatmul.bf16.gmra.mxu0 %v1515
  %v1588 = vpop.f32.mrf.mxu0
  %v1589 = vadd.f32 %v1560, %v1588
  %v1590 = vpop.f32.mrf.mxu0
  %v1591 = vadd.f32 %v1560, %v1590
  %1592 = vmatmul.bf16.gmra.mxu0 %v1518
  %v1593 = vpop.f32.mrf.mxu0
  %v1594 = vadd.f32 %v1560, %v1593
  %v1595 = vpop.f32.mrf.mxu0
  %v1596 = vadd.f32 %v1560, %v1595
  %1597 = vmatmul.bf16.gmra.mxu0 %v1521
  %v1598 = vpop.f32.mrf.mxu0
  %v1599 = vadd.f32 %v1560, %v1598
  %v1600 = vpop.f32.mrf.mxu0
  %v1601 = vadd.f32 %v1560, %v1600
  %1602 = vdwg.mxu0
  %s1603 = scalar_lea.vmem %s6, 32
  %v1604 = vld [vmem:[%s1603] sm:$0xf]
  %v1605 = vld [vmem:[%s1603 + $0x4] sm:$0xf]
  %v1606 = vld [vmem:[%s1603 + $0x8] sm:$0xf]
  %v1607 = vld [vmem:[%s1603 + $0xc] sm:$0xf]
  %v1608 = vpack.c.bf16 %v1586, %v1584
  %v1609 = vpack.c.bf16 %v1591, %v1589
  %v1610 = vpack.c.bf16 %v1596, %v1594
  %v1611 = vpack.c.bf16 %v1601, %v1599
  %s1612 = scalar_lea.vmem %s7, 2
  %v1613 = vld [vmem:[%s1612] sm:$0x1]
  %v1615 = vperm.slane %v1613, 0
  %v1621 = vunpack.c.l.b16 %v1604
  %v1622 = vunpack.c.l.b16 %v1605
  %v1623 = vunpack.c.l.b16 %v1606
  %v1624 = vunpack.c.l.b16 %v1607
  %v1625 = vpack.c.b16 %v1622, %v1621
  %v1626 = vpack.c.b16 %v1624, %v1623
  %v1630 = vsel %vm80, %v1608, 0
  %v1633 = vsel %vm80, %v1609, 0
  %v1636 = vsel %vm80, %v1610, 0
  %v1639 = vsel %vm80, %v1611, 0
  %1641 = vmatpush.bf16.msra.mxu0 0
  %1642 = vmatpush.bf16.msra.mxu0 0
  %1643 = vmatpush.bf16.msra.mxu0 0
  %1644 = vmatpush.bf16.msra.mxu0 0
  %1645 = vmatpush.bf16.msra.mxu0 0
  %1646 = vmatpush.bf16.msra.mxu0 0
  %1647 = vmatpush.bf16.msra.mxu0 %v1626
  %1648 = vmatpush.bf16.msra.mxu0 %v1625
  %1649 = vmatmul.bf16.gmra.mxu0 %v1630
  %v1650 = vpop.f32.mrf.mxu0
  %v1651 = vadd.f32 %v1615, %v1650
  %v1652 = vpop.f32.mrf.mxu0
  %v1653 = vadd.f32 %v1615, %v1652
  %1654 = vmatmul.bf16.gmra.mxu0 %v1633
  %v1655 = vpop.f32.mrf.mxu0
  %v1656 = vadd.f32 %v1615, %v1655
  %v1657 = vpop.f32.mrf.mxu0
  %v1658 = vadd.f32 %v1615, %v1657
  %1659 = vmatmul.bf16.gmra.mxu0 %v1636
  %v1660 = vpop.f32.mrf.mxu0
  %v1661 = vadd.f32 %v1615, %v1660
  %v1662 = vpop.f32.mrf.mxu0
  %v1663 = vadd.f32 %v1615, %v1662
  %1664 = vmatmul.bf16.gmra.mxu0 %v1639
  %v1665 = vpop.f32.mrf.mxu0
  %v1666 = vadd.f32 %v1615, %v1665
  %v1667 = vpop.f32.mrf.mxu0
  %v1668 = vadd.f32 %v1615, %v1667
  %1669 = vdwg.mxu0
  %v1670 = vmax.f32 %v1651, 0.0
  %v1671 = vmax.f32 %v1653, 0.0
  %v1672 = vmax.f32 %v1656, 0.0
  %v1673 = vmax.f32 %v1658, 0.0
  %v1674 = vmax.f32 %v1661, 0.0
  %v1675 = vmax.f32 %v1663, 0.0
  %v1676 = vmax.f32 %v1666, 0.0
  %v1677 = vmax.f32 %v1668, 0.0
  %s1678 = scalar_lea.vmem %s8, 32
  %v1679 = vld [vmem:[%s1678] sm:$0xf]
  %v1680 = vld [vmem:[%s1678 + $0x4] sm:$0xf]
  %v1681 = vld [vmem:[%s1678 + $0x8] sm:$0xf]
  %v1682 = vld [vmem:[%s1678 + $0xc] sm:$0xf]
  %v1683 = vpack.c.bf16 %v1671, %v1670
  %v1684 = vpack.c.bf16 %v1673, %v1672
  %v1685 = vpack.c.bf16 %v1675, %v1674
  %v1686 = vpack.c.bf16 %v1677, %v1676
  %s1687 = scalar_lea.vmem %s9, 2
  %v1688 = vld [vmem:[%s1687] sm:$0x1]
  %v1690 = vperm.slane %v1688, 0
  %v1696 = vunpack.c.l.b16 %v1679
  %v1697 = vunpack.c.l.b16 %v1680
  %v1698 = vunpack.c.l.b16 %v1681
  %v1699 = vunpack.c.l.b16 %v1682
  %v1700 = vpack.c.b16 %v1697, %v1696
  %v1701 = vpack.c.b16 %v1699, %v1698
  %v1705 = vsel %vm80, %v1683, 0
  %v1708 = vsel %vm80, %v1684, 0
  %v1711 = vsel %vm80, %v1685, 0
  %v1714 = vsel %vm80, %v1686, 0
  %1716 = vmatpush.bf16.msra.mxu0 0
  %1717 = vmatpush.bf16.msra.mxu0 0
  %1718 = vmatpush.bf16.msra.mxu0 0
  %1719 = vmatpush.bf16.msra.mxu0 0
  %1720 = vmatpush.bf16.msra.mxu0 0
  %1721 = vmatpush.bf16.msra.mxu0 0
  %1722 = vmatpush.bf16.msra.mxu0 %v1701
  %1723 = vmatpush.bf16.msra.mxu0 %v1700
  %1724 = vmatmul.bf16.gmra.mxu0 %v1705
  %v1725 = vpop.f32.mrf.mxu0
  %v1726 = vadd.f32 %v1690, %v1725
  %v1727 = vpop.f32.mrf.mxu0
  %v1728 = vadd.f32 %v1690, %v1727
  %1729 = vmatmul.bf16.gmra.mxu0 %v1708
  %v1730 = vpop.f32.mrf.mxu0
  %v1731 = vadd.f32 %v1690, %v1730
  %v1732 = vpop.f32.mrf.mxu0
  %v1733 = vadd.f32 %v1690, %v1732
  %1734 = vmatmul.bf16.gmra.mxu0 %v1711
  %v1735 = vpop.f32.mrf.mxu0
  %v1736 = vadd.f32 %v1690, %v1735
  %v1737 = vpop.f32.mrf.mxu0
  %v1738 = vadd.f32 %v1690, %v1737
  %1739 = vmatmul.bf16.gmra.mxu0 %v1714
  %v1740 = vpop.f32.mrf.mxu0
  %v1741 = vadd.f32 %v1690, %v1740
  %v1742 = vpop.f32.mrf.mxu0
  %v1743 = vadd.f32 %v1690, %v1742
  %1744 = vdwg.mxu0
  %v1745 = vadd.f32 %v1726, %v1584
  %v1746 = vadd.f32 %v1728, %v1586
  %v1747 = vadd.f32 %v1731, %v1589
  %v1748 = vadd.f32 %v1733, %v1591
  %v1749 = vadd.f32 %v1736, %v1594
  %v1750 = vadd.f32 %v1738, %v1596
  %v1751 = vadd.f32 %v1741, %v1599
  %v1752 = vadd.f32 %v1743, %v1601
  %v1753 = vsel %vm80, %v1745, 0.0
  %1754 = vadd.xlane.f32.xlu0 %v1753
  %v1755 = vpop.xlane.xlu0 %1754
  %v1756 = vsel %vm80, %v1746, 0.0
  %1757 = vadd.xlane.f32.xlu0 %v1756
  %v1758 = vpop.xlane.xlu0 %1757
  %v1759 = vsel %vm80, %v1747, 0.0
  %1760 = vadd.xlane.f32.xlu0 %v1759
  %v1761 = vpop.xlane.xlu0 %1760
  %v1762 = vsel %vm80, %v1748, 0.0
  %1763 = vadd.xlane.f32.xlu0 %v1762
  %v1764 = vpop.xlane.xlu0 %1763
  %v1765 = vsel %vm80, %v1749, 0.0
  %1766 = vadd.xlane.f32.xlu0 %v1765
  %v1767 = vpop.xlane.xlu0 %1766
  %v1768 = vsel %vm80, %v1750, 0.0
  %1769 = vadd.xlane.f32.xlu0 %v1768
  %v1770 = vpop.xlane.xlu0 %1769
  %v1771 = vsel %vm80, %v1751, 0.0
  %1772 = vadd.xlane.f32.xlu0 %v1771
  %v1773 = vpop.xlane.xlu0 %1772
  %v1774 = vsel %vm80, %v1752, 0.0
  %1775 = vadd.xlane.f32.xlu0 %v1774
  %v1776 = vpop.xlane.xlu0 %1775
  %v1777 = vmul.f32 %v1755, %v891
  %v1778 = vmul.f32 %v1758, %v891
  %v1779 = vmul.f32 %v1761, %v891
  %v1780 = vmul.f32 %v1764, %v891
  %v1781 = vmul.f32 %v1767, %v891
  %v1782 = vmul.f32 %v1770, %v891
  %v1783 = vmul.f32 %v1773, %v891
  %v1784 = vmul.f32 %v1776, %v891
  %v1785 = vsub.f32 %v1745, %v1777
  %v1786 = vsub.f32 %v1746, %v1778
  %v1787 = vsub.f32 %v1747, %v1779
  %v1788 = vsub.f32 %v1748, %v1780
  %v1789 = vsub.f32 %v1749, %v1781
  %v1790 = vsub.f32 %v1750, %v1782
  %v1791 = vsub.f32 %v1751, %v1783
  %v1792 = vsub.f32 %v1752, %v1784
  %v1793 = vmul.f32 %v1785, %v1785
  %v1794 = vmul.f32 %v1786, %v1786
  %v1795 = vmul.f32 %v1787, %v1787
  %v1796 = vmul.f32 %v1788, %v1788
  %v1797 = vmul.f32 %v1789, %v1789
  %v1798 = vmul.f32 %v1790, %v1790
  %v1799 = vmul.f32 %v1791, %v1791
  %v1800 = vmul.f32 %v1792, %v1792
  %v1801 = vsel %vm80, %v1793, 0.0
  %1802 = vadd.xlane.f32.xlu0 %v1801
  %v1803 = vpop.xlane.xlu0 %1802
  %v1804 = vsel %vm80, %v1794, 0.0
  %1805 = vadd.xlane.f32.xlu0 %v1804
  %v1806 = vpop.xlane.xlu0 %1805
  %v1807 = vsel %vm80, %v1795, 0.0
  %1808 = vadd.xlane.f32.xlu0 %v1807
  %v1809 = vpop.xlane.xlu0 %1808
  %v1810 = vsel %vm80, %v1796, 0.0
  %1811 = vadd.xlane.f32.xlu0 %v1810
  %v1812 = vpop.xlane.xlu0 %1811
  %v1813 = vsel %vm80, %v1797, 0.0
  %1814 = vadd.xlane.f32.xlu0 %v1813
  %v1815 = vpop.xlane.xlu0 %1814
  %v1816 = vsel %vm80, %v1798, 0.0
  %1817 = vadd.xlane.f32.xlu0 %v1816
  %v1818 = vpop.xlane.xlu0 %1817
  %v1819 = vsel %vm80, %v1799, 0.0
  %1820 = vadd.xlane.f32.xlu0 %v1819
  %v1821 = vpop.xlane.xlu0 %1820
  %v1822 = vsel %vm80, %v1800, 0.0
  %1823 = vadd.xlane.f32.xlu0 %v1822
  %v1824 = vpop.xlane.xlu0 %1823
  %v1825 = vmul.f32 %v1803, %v891
  %v1826 = vmul.f32 %v1806, %v891
  %v1827 = vmul.f32 %v1809, %v891
  %v1828 = vmul.f32 %v1812, %v891
  %v1829 = vmul.f32 %v1815, %v891
  %v1830 = vmul.f32 %v1818, %v891
  %v1831 = vmul.f32 %v1821, %v891
  %v1832 = vmul.f32 %v1824, %v891
  %v1833 = vadd.f32 %v1825, 1e-05
  %v1834 = vadd.f32 %v1826, 1e-05
  %v1835 = vadd.f32 %v1827, 1e-05
  %v1836 = vadd.f32 %v1828, 1e-05
  %v1837 = vadd.f32 %v1829, 1e-05
  %v1838 = vadd.f32 %v1830, 1e-05
  %v1839 = vadd.f32 %v1831, 1e-05
  %v1840 = vadd.f32 %v1832, 1e-05
  %v1841 = vrsqrt.pop %v1833
  %v1842 = vmul.f32 %v1841, %v1833
  %v1843 = vmul.f32 %v1842, %v1841
  %v1844 = vmul.f32 0.5, %v1843
  %v1845 = vsub.f32 1.5, %v1844
  %v1846 = vmul.f32 %v1841, %v1845
  %vm1847 = vweird.f32 %v1833
  %vm1848 = vweird.f32 %v1841
  %vm1849 = vmor %vm1847, %vm1848
  %v1850 = vsel %vm1849, %v1841, %v1846
  %v1851 = vrsqrt.pop %v1834
  %v1852 = vmul.f32 %v1851, %v1834
  %v1853 = vmul.f32 %v1852, %v1851
  %v1854 = vmul.f32 0.5, %v1853
  %v1855 = vsub.f32 1.5, %v1854
  %v1856 = vmul.f32 %v1851, %v1855
  %vm1857 = vweird.f32 %v1834
  %vm1858 = vweird.f32 %v1851
  %vm1859 = vmor %vm1857, %vm1858
  %v1860 = vsel %vm1859, %v1851, %v1856
  %v1861 = vrsqrt.pop %v1835
  %v1862 = vmul.f32 %v1861, %v1835
  %v1863 = vmul.f32 %v1862, %v1861
  %v1864 = vmul.f32 0.5, %v1863
  %v1865 = vsub.f32 1.5, %v1864
  %v1866 = vmul.f32 %v1861, %v1865
  %vm1867 = vweird.f32 %v1835
  %vm1868 = vweird.f32 %v1861
  %vm1869 = vmor %vm1867, %vm1868
  %v1870 = vsel %vm1869, %v1861, %v1866
  %v1871 = vrsqrt.pop %v1836
  %v1872 = vmul.f32 %v1871, %v1836
  %v1873 = vmul.f32 %v1872, %v1871
  %v1874 = vmul.f32 0.5, %v1873
  %v1875 = vsub.f32 1.5, %v1874
  %v1876 = vmul.f32 %v1871, %v1875
  %vm1877 = vweird.f32 %v1836
  %vm1878 = vweird.f32 %v1871
  %vm1879 = vmor %vm1877, %vm1878
  %v1880 = vsel %vm1879, %v1871, %v1876
  %v1881 = vrsqrt.pop %v1837
  %v1882 = vmul.f32 %v1881, %v1837
  %v1883 = vmul.f32 %v1882, %v1881
  %v1884 = vmul.f32 0.5, %v1883
  %v1885 = vsub.f32 1.5, %v1884
  %v1886 = vmul.f32 %v1881, %v1885
  %vm1887 = vweird.f32 %v1837
  %vm1888 = vweird.f32 %v1881
  %vm1889 = vmor %vm1887, %vm1888
  %v1890 = vsel %vm1889, %v1881, %v1886
  %v1891 = vrsqrt.pop %v1838
  %v1892 = vmul.f32 %v1891, %v1838
  %v1893 = vmul.f32 %v1892, %v1891
  %v1894 = vmul.f32 0.5, %v1893
  %v1895 = vsub.f32 1.5, %v1894
  %v1896 = vmul.f32 %v1891, %v1895
  %vm1897 = vweird.f32 %v1838
  %vm1898 = vweird.f32 %v1891
  %vm1899 = vmor %vm1897, %vm1898
  %v1900 = vsel %vm1899, %v1891, %v1896
  %v1901 = vrsqrt.pop %v1839
  %v1902 = vmul.f32 %v1901, %v1839
  %v1903 = vmul.f32 %v1902, %v1901
  %v1904 = vmul.f32 0.5, %v1903
  %v1905 = vsub.f32 1.5, %v1904
  %v1906 = vmul.f32 %v1901, %v1905
  %vm1907 = vweird.f32 %v1839
  %vm1908 = vweird.f32 %v1901
  %vm1909 = vmor %vm1907, %vm1908
  %v1910 = vsel %vm1909, %v1901, %v1906
  %v1911 = vrsqrt.pop %v1840
  %v1912 = vmul.f32 %v1911, %v1840
  %v1913 = vmul.f32 %v1912, %v1911
  %v1914 = vmul.f32 0.5, %v1913
  %v1915 = vsub.f32 1.5, %v1914
  %v1916 = vmul.f32 %v1911, %v1915
  %vm1917 = vweird.f32 %v1840
  %vm1918 = vweird.f32 %v1911
  %vm1919 = vmor %vm1917, %vm1918
  %v1920 = vsel %vm1919, %v1911, %v1916
  %v1921 = vmul.f32 %v1785, %v1850
  %v1922 = vmul.f32 %v1786, %v1860
  %v1923 = vmul.f32 %v1787, %v1870
  %v1924 = vmul.f32 %v1788, %v1880
  %v1925 = vmul.f32 %v1789, %v1890
  %v1926 = vmul.f32 %v1790, %v1900
  %v1927 = vmul.f32 %v1791, %v1910
  %v1928 = vmul.f32 %v1792, %v1920
  %s1929 = scalar_lea.vmem %s10, 2
  %v1930 = vld [vmem:[%s1929] sm:$0x1]
  %v1932 = vperm.slane %v1930, 0
  %v1934 = vmul.f32 %v1921, %v1932
  %v1935 = vmul.f32 %v1922, %v1932
  %v1936 = vmul.f32 %v1923, %v1932
  %v1937 = vmul.f32 %v1924, %v1932
  %v1938 = vmul.f32 %v1925, %v1932
  %v1939 = vmul.f32 %v1926, %v1932
  %v1940 = vmul.f32 %v1927, %v1932
  %v1941 = vmul.f32 %v1928, %v1932
  %s1942 = scalar_lea.vmem %s11, 2
  %v1943 = vld [vmem:[%s1942] sm:$0x1]
  %v1945 = vperm.slane %v1943, 0
  %v1947 = vadd.f32 %v1934, %v1945
  %v1948 = vadd.f32 %v1935, %v1945
  %v1949 = vadd.f32 %v1936, %v1945
  %v1950 = vadd.f32 %v1937, %v1945
  %v1951 = vadd.f32 %v1938, %v1945
  %v1952 = vadd.f32 %v1939, %v1945
  %v1953 = vadd.f32 %v1940, %v1945
  %v1954 = vadd.f32 %v1941, %v1945
  %s1955 = scalar_lea.vmem %s4, 48
  %v1956 = vld [vmem:[%s1955] sm:$0xf]
  %v1957 = vld [vmem:[%s1955 + $0x4] sm:$0xf]
  %v1958 = vld [vmem:[%s1955 + $0x8] sm:$0xf]
  %v1959 = vld [vmem:[%s1955 + $0xc] sm:$0xf]
  %v1960 = vpack.c.bf16 %v1948, %v1947
  %v1961 = vpack.c.bf16 %v1950, %v1949
  %v1962 = vpack.c.bf16 %v1952, %v1951
  %v1963 = vpack.c.bf16 %v1954, %v1953
  %s1964 = scalar_lea.vmem %s5, 3
  %v1965 = vld [vmem:[%s1964] sm:$0x1]
  %v1967 = vperm.slane %v1965, 0
  %v1973 = vunpack.c.l.b16 %v1956
  %v1974 = vunpack.c.l.b16 %v1957
  %v1975 = vunpack.c.l.b16 %v1958
  %v1976 = vunpack.c.l.b16 %v1959
  %v1977 = vpack.c.b16 %v1974, %v1973
  %v1978 = vpack.c.b16 %v1976, %v1975
  %v1982 = vsel %vm80, %v1960, 0
  %v1985 = vsel %vm80, %v1961, 0
  %v1988 = vsel %vm80, %v1962, 0
  %v1991 = vsel %vm80, %v1963, 0
  %1993 = vmatpush.bf16.msra.mxu0 0
  %1994 = vmatpush.bf16.msra.mxu0 0
  %1995 = vmatpush.bf16.msra.mxu0 0
  %1996 = vmatpush.bf16.msra.mxu0 0
  %1997 = vmatpush.bf16.msra.mxu0 0
  %1998 = vmatpush.bf16.msra.mxu0 0
  %1999 = vmatpush.bf16.msra.mxu0 %v1978
  %2000 = vmatpush.bf16.msra.mxu0 %v1977
  %2001 = vmatmul.bf16.gmra.mxu0 %v1982
  %v2002 = vpop.f32.mrf.mxu0
  %v2003 = vadd.f32 %v1967, %v2002
  %v2004 = vpop.f32.mrf.mxu0
  %v2005 = vadd.f32 %v1967, %v2004
  %2006 = vmatmul.bf16.gmra.mxu0 %v1985
  %v2007 = vpop.f32.mrf.mxu0
  %v2008 = vadd.f32 %v1967, %v2007
  %v2009 = vpop.f32.mrf.mxu0
  %v2010 = vadd.f32 %v1967, %v2009
  %2011 = vmatmul.bf16.gmra.mxu0 %v1988
  %v2012 = vpop.f32.mrf.mxu0
  %v2013 = vadd.f32 %v1967, %v2012
  %v2014 = vpop.f32.mrf.mxu0
  %v2015 = vadd.f32 %v1967, %v2014
  %2016 = vmatmul.bf16.gmra.mxu0 %v1991
  %v2017 = vpop.f32.mrf.mxu0
  %v2018 = vadd.f32 %v1967, %v2017
  %v2019 = vpop.f32.mrf.mxu0
  %v2020 = vadd.f32 %v1967, %v2019
  %2021 = vdwg.mxu0
  %s2022 = scalar_lea.vmem %s6, 48
  %v2023 = vld [vmem:[%s2022] sm:$0xf]
  %v2024 = vld [vmem:[%s2022 + $0x4] sm:$0xf]
  %v2025 = vld [vmem:[%s2022 + $0x8] sm:$0xf]
  %v2026 = vld [vmem:[%s2022 + $0xc] sm:$0xf]
  %v2027 = vpack.c.bf16 %v2005, %v2003
  %v2028 = vpack.c.bf16 %v2010, %v2008
  %v2029 = vpack.c.bf16 %v2015, %v2013
  %v2030 = vpack.c.bf16 %v2020, %v2018
  %s2031 = scalar_lea.vmem %s7, 3
  %v2032 = vld [vmem:[%s2031] sm:$0x1]
  %v2034 = vperm.slane %v2032, 0
  %v2040 = vunpack.c.l.b16 %v2023
  %v2041 = vunpack.c.l.b16 %v2024
  %v2042 = vunpack.c.l.b16 %v2025
  %v2043 = vunpack.c.l.b16 %v2026
  %v2044 = vpack.c.b16 %v2041, %v2040
  %v2045 = vpack.c.b16 %v2043, %v2042
  %v2049 = vsel %vm80, %v2027, 0
  %v2052 = vsel %vm80, %v2028, 0
  %v2055 = vsel %vm80, %v2029, 0
  %v2058 = vsel %vm80, %v2030, 0
  %2060 = vmatpush.bf16.msra.mxu0 0
  %2061 = vmatpush.bf16.msra.mxu0 0
  %2062 = vmatpush.bf16.msra.mxu0 0
  %2063 = vmatpush.bf16.msra.mxu0 0
  %2064 = vmatpush.bf16.msra.mxu0 0
  %2065 = vmatpush.bf16.msra.mxu0 0
  %2066 = vmatpush.bf16.msra.mxu0 %v2045
  %2067 = vmatpush.bf16.msra.mxu0 %v2044
  %2068 = vmatmul.bf16.gmra.mxu0 %v2049
  %v2069 = vpop.f32.mrf.mxu0
  %v2070 = vadd.f32 %v2034, %v2069
  %v2071 = vpop.f32.mrf.mxu0
  %v2072 = vadd.f32 %v2034, %v2071
  %2073 = vmatmul.bf16.gmra.mxu0 %v2052
  %v2074 = vpop.f32.mrf.mxu0
  %v2075 = vadd.f32 %v2034, %v2074
  %v2076 = vpop.f32.mrf.mxu0
  %v2077 = vadd.f32 %v2034, %v2076
  %2078 = vmatmul.bf16.gmra.mxu0 %v2055
  %v2079 = vpop.f32.mrf.mxu0
  %v2080 = vadd.f32 %v2034, %v2079
  %v2081 = vpop.f32.mrf.mxu0
  %v2082 = vadd.f32 %v2034, %v2081
  %2083 = vmatmul.bf16.gmra.mxu0 %v2058
  %v2084 = vpop.f32.mrf.mxu0
  %v2085 = vadd.f32 %v2034, %v2084
  %v2086 = vpop.f32.mrf.mxu0
  %v2087 = vadd.f32 %v2034, %v2086
  %2088 = vdwg.mxu0
  %v2089 = vmax.f32 %v2070, 0.0
  %v2090 = vmax.f32 %v2072, 0.0
  %v2091 = vmax.f32 %v2075, 0.0
  %v2092 = vmax.f32 %v2077, 0.0
  %v2093 = vmax.f32 %v2080, 0.0
  %v2094 = vmax.f32 %v2082, 0.0
  %v2095 = vmax.f32 %v2085, 0.0
  %v2096 = vmax.f32 %v2087, 0.0
  %s2097 = scalar_lea.vmem %s8, 48
  %v2098 = vld [vmem:[%s2097] sm:$0xf]
  %v2099 = vld [vmem:[%s2097 + $0x4] sm:$0xf]
  %v2100 = vld [vmem:[%s2097 + $0x8] sm:$0xf]
  %v2101 = vld [vmem:[%s2097 + $0xc] sm:$0xf]
  %v2102 = vpack.c.bf16 %v2090, %v2089
  %v2103 = vpack.c.bf16 %v2092, %v2091
  %v2104 = vpack.c.bf16 %v2094, %v2093
  %v2105 = vpack.c.bf16 %v2096, %v2095
  %s2106 = scalar_lea.vmem %s9, 3
  %v2107 = vld [vmem:[%s2106] sm:$0x1]
  %v2109 = vperm.slane %v2107, 0
  %v2115 = vunpack.c.l.b16 %v2098
  %v2116 = vunpack.c.l.b16 %v2099
  %v2117 = vunpack.c.l.b16 %v2100
  %v2118 = vunpack.c.l.b16 %v2101
  %v2119 = vpack.c.b16 %v2116, %v2115
  %v2120 = vpack.c.b16 %v2118, %v2117
  %v2124 = vsel %vm80, %v2102, 0
  %v2127 = vsel %vm80, %v2103, 0
  %v2130 = vsel %vm80, %v2104, 0
  %v2133 = vsel %vm80, %v2105, 0
  %2135 = vmatpush.bf16.msra.mxu0 0
  %2136 = vmatpush.bf16.msra.mxu0 0
  %2137 = vmatpush.bf16.msra.mxu0 0
  %2138 = vmatpush.bf16.msra.mxu0 0
  %2139 = vmatpush.bf16.msra.mxu0 0
  %2140 = vmatpush.bf16.msra.mxu0 0
  %2141 = vmatpush.bf16.msra.mxu0 %v2120
  %2142 = vmatpush.bf16.msra.mxu0 %v2119
  %2143 = vmatmul.bf16.gmra.mxu0 %v2124
  %v2144 = vpop.f32.mrf.mxu0
  %v2145 = vadd.f32 %v2109, %v2144
  %v2146 = vpop.f32.mrf.mxu0
  %v2147 = vadd.f32 %v2109, %v2146
  %2148 = vmatmul.bf16.gmra.mxu0 %v2127
  %v2149 = vpop.f32.mrf.mxu0
  %v2150 = vadd.f32 %v2109, %v2149
  %v2151 = vpop.f32.mrf.mxu0
  %v2152 = vadd.f32 %v2109, %v2151
  %2153 = vmatmul.bf16.gmra.mxu0 %v2130
  %v2154 = vpop.f32.mrf.mxu0
  %v2155 = vadd.f32 %v2109, %v2154
  %v2156 = vpop.f32.mrf.mxu0
  %v2157 = vadd.f32 %v2109, %v2156
  %2158 = vmatmul.bf16.gmra.mxu0 %v2133
  %v2159 = vpop.f32.mrf.mxu0
  %v2160 = vadd.f32 %v2109, %v2159
  %v2161 = vpop.f32.mrf.mxu0
  %v2162 = vadd.f32 %v2109, %v2161
  %2163 = vdwg.mxu0
  %v2164 = vadd.f32 %v2145, %v2003
  %v2165 = vadd.f32 %v2147, %v2005
  %v2166 = vadd.f32 %v2150, %v2008
  %v2167 = vadd.f32 %v2152, %v2010
  %v2168 = vadd.f32 %v2155, %v2013
  %v2169 = vadd.f32 %v2157, %v2015
  %v2170 = vadd.f32 %v2160, %v2018
  %v2171 = vadd.f32 %v2162, %v2020
  %v2172 = vsel %vm80, %v2164, 0.0
  %2173 = vadd.xlane.f32.xlu0 %v2172
  %v2174 = vpop.xlane.xlu0 %2173
  %v2175 = vsel %vm80, %v2165, 0.0
  %2176 = vadd.xlane.f32.xlu0 %v2175
  %v2177 = vpop.xlane.xlu0 %2176
  %v2178 = vsel %vm80, %v2166, 0.0
  %2179 = vadd.xlane.f32.xlu0 %v2178
  %v2180 = vpop.xlane.xlu0 %2179
  %v2181 = vsel %vm80, %v2167, 0.0
  %2182 = vadd.xlane.f32.xlu0 %v2181
  %v2183 = vpop.xlane.xlu0 %2182
  %v2184 = vsel %vm80, %v2168, 0.0
  %2185 = vadd.xlane.f32.xlu0 %v2184
  %v2186 = vpop.xlane.xlu0 %2185
  %v2187 = vsel %vm80, %v2169, 0.0
  %2188 = vadd.xlane.f32.xlu0 %v2187
  %v2189 = vpop.xlane.xlu0 %2188
  %v2190 = vsel %vm80, %v2170, 0.0
  %2191 = vadd.xlane.f32.xlu0 %v2190
  %v2192 = vpop.xlane.xlu0 %2191
  %v2193 = vsel %vm80, %v2171, 0.0
  %2194 = vadd.xlane.f32.xlu0 %v2193
  %v2195 = vpop.xlane.xlu0 %2194
  %v2196 = vmul.f32 %v2174, %v891
  %v2197 = vmul.f32 %v2177, %v891
  %v2198 = vmul.f32 %v2180, %v891
  %v2199 = vmul.f32 %v2183, %v891
  %v2200 = vmul.f32 %v2186, %v891
  %v2201 = vmul.f32 %v2189, %v891
  %v2202 = vmul.f32 %v2192, %v891
  %v2203 = vmul.f32 %v2195, %v891
  %v2204 = vsub.f32 %v2164, %v2196
  %v2205 = vsub.f32 %v2165, %v2197
  %v2206 = vsub.f32 %v2166, %v2198
  %v2207 = vsub.f32 %v2167, %v2199
  %v2208 = vsub.f32 %v2168, %v2200
  %v2209 = vsub.f32 %v2169, %v2201
  %v2210 = vsub.f32 %v2170, %v2202
  %v2211 = vsub.f32 %v2171, %v2203
  %v2212 = vmul.f32 %v2204, %v2204
  %v2213 = vmul.f32 %v2205, %v2205
  %v2214 = vmul.f32 %v2206, %v2206
  %v2215 = vmul.f32 %v2207, %v2207
  %v2216 = vmul.f32 %v2208, %v2208
  %v2217 = vmul.f32 %v2209, %v2209
  %v2218 = vmul.f32 %v2210, %v2210
  %v2219 = vmul.f32 %v2211, %v2211
  %v2220 = vsel %vm80, %v2212, 0.0
  %2221 = vadd.xlane.f32.xlu0 %v2220
  %v2222 = vpop.xlane.xlu0 %2221
  %v2223 = vsel %vm80, %v2213, 0.0
  %2224 = vadd.xlane.f32.xlu0 %v2223
  %v2225 = vpop.xlane.xlu0 %2224
  %v2226 = vsel %vm80, %v2214, 0.0
  %2227 = vadd.xlane.f32.xlu0 %v2226
  %v2228 = vpop.xlane.xlu0 %2227
  %v2229 = vsel %vm80, %v2215, 0.0
  %2230 = vadd.xlane.f32.xlu0 %v2229
  %v2231 = vpop.xlane.xlu0 %2230
  %v2232 = vsel %vm80, %v2216, 0.0
  %2233 = vadd.xlane.f32.xlu0 %v2232
  %v2234 = vpop.xlane.xlu0 %2233
  %v2235 = vsel %vm80, %v2217, 0.0
  %2236 = vadd.xlane.f32.xlu0 %v2235
  %v2237 = vpop.xlane.xlu0 %2236
  %v2238 = vsel %vm80, %v2218, 0.0
  %2239 = vadd.xlane.f32.xlu0 %v2238
  %v2240 = vpop.xlane.xlu0 %2239
  %v2241 = vsel %vm80, %v2219, 0.0
  %2242 = vadd.xlane.f32.xlu0 %v2241
  %v2243 = vpop.xlane.xlu0 %2242
  %v2244 = vmul.f32 %v2222, %v891
  %v2245 = vmul.f32 %v2225, %v891
  %v2246 = vmul.f32 %v2228, %v891
  %v2247 = vmul.f32 %v2231, %v891
  %v2248 = vmul.f32 %v2234, %v891
  %v2249 = vmul.f32 %v2237, %v891
  %v2250 = vmul.f32 %v2240, %v891
  %v2251 = vmul.f32 %v2243, %v891
  %v2252 = vadd.f32 %v2244, 1e-05
  %v2253 = vadd.f32 %v2245, 1e-05
  %v2254 = vadd.f32 %v2246, 1e-05
  %v2255 = vadd.f32 %v2247, 1e-05
  %v2256 = vadd.f32 %v2248, 1e-05
  %v2257 = vadd.f32 %v2249, 1e-05
  %v2258 = vadd.f32 %v2250, 1e-05
  %v2259 = vadd.f32 %v2251, 1e-05
  %v2260 = vrsqrt.pop %v2252
  %v2261 = vmul.f32 %v2260, %v2252
  %v2262 = vmul.f32 %v2261, %v2260
  %v2263 = vmul.f32 0.5, %v2262
  %v2264 = vsub.f32 1.5, %v2263
  %v2265 = vmul.f32 %v2260, %v2264
  %vm2266 = vweird.f32 %v2252
  %vm2267 = vweird.f32 %v2260
  %vm2268 = vmor %vm2266, %vm2267
  %v2269 = vsel %vm2268, %v2260, %v2265
  %v2270 = vrsqrt.pop %v2253
  %v2271 = vmul.f32 %v2270, %v2253
  %v2272 = vmul.f32 %v2271, %v2270
  %v2273 = vmul.f32 0.5, %v2272
  %v2274 = vsub.f32 1.5, %v2273
  %v2275 = vmul.f32 %v2270, %v2274
  %vm2276 = vweird.f32 %v2253
  %vm2277 = vweird.f32 %v2270
  %vm2278 = vmor %vm2276, %vm2277
  %v2279 = vsel %vm2278, %v2270, %v2275
  %v2280 = vrsqrt.pop %v2254
  %v2281 = vmul.f32 %v2280, %v2254
  %v2282 = vmul.f32 %v2281, %v2280
  %v2283 = vmul.f32 0.5, %v2282
  %v2284 = vsub.f32 1.5, %v2283
  %v2285 = vmul.f32 %v2280, %v2284
  %vm2286 = vweird.f32 %v2254
  %vm2287 = vweird.f32 %v2280
  %vm2288 = vmor %vm2286, %vm2287
  %v2289 = vsel %vm2288, %v2280, %v2285
  %v2290 = vrsqrt.pop %v2255
  %v2291 = vmul.f32 %v2290, %v2255
  %v2292 = vmul.f32 %v2291, %v2290
  %v2293 = vmul.f32 0.5, %v2292
  %v2294 = vsub.f32 1.5, %v2293
  %v2295 = vmul.f32 %v2290, %v2294
  %vm2296 = vweird.f32 %v2255
  %vm2297 = vweird.f32 %v2290
  %vm2298 = vmor %vm2296, %vm2297
  %v2299 = vsel %vm2298, %v2290, %v2295
  %v2300 = vrsqrt.pop %v2256
  %v2301 = vmul.f32 %v2300, %v2256
  %v2302 = vmul.f32 %v2301, %v2300
  %v2303 = vmul.f32 0.5, %v2302
  %v2304 = vsub.f32 1.5, %v2303
  %v2305 = vmul.f32 %v2300, %v2304
  %vm2306 = vweird.f32 %v2256
  %vm2307 = vweird.f32 %v2300
  %vm2308 = vmor %vm2306, %vm2307
  %v2309 = vsel %vm2308, %v2300, %v2305
  %v2310 = vrsqrt.pop %v2257
  %v2311 = vmul.f32 %v2310, %v2257
  %v2312 = vmul.f32 %v2311, %v2310
  %v2313 = vmul.f32 0.5, %v2312
  %v2314 = vsub.f32 1.5, %v2313
  %v2315 = vmul.f32 %v2310, %v2314
  %vm2316 = vweird.f32 %v2257
  %vm2317 = vweird.f32 %v2310
  %vm2318 = vmor %vm2316, %vm2317
  %v2319 = vsel %vm2318, %v2310, %v2315
  %v2320 = vrsqrt.pop %v2258
  %v2321 = vmul.f32 %v2320, %v2258
  %v2322 = vmul.f32 %v2321, %v2320
  %v2323 = vmul.f32 0.5, %v2322
  %v2324 = vsub.f32 1.5, %v2323
  %v2325 = vmul.f32 %v2320, %v2324
  %vm2326 = vweird.f32 %v2258
  %vm2327 = vweird.f32 %v2320
  %vm2328 = vmor %vm2326, %vm2327
  %v2329 = vsel %vm2328, %v2320, %v2325
  %v2330 = vrsqrt.pop %v2259
  %v2331 = vmul.f32 %v2330, %v2259
  %v2332 = vmul.f32 %v2331, %v2330
  %v2333 = vmul.f32 0.5, %v2332
  %v2334 = vsub.f32 1.5, %v2333
  %v2335 = vmul.f32 %v2330, %v2334
  %vm2336 = vweird.f32 %v2259
  %vm2337 = vweird.f32 %v2330
  %vm2338 = vmor %vm2336, %vm2337
  %v2339 = vsel %vm2338, %v2330, %v2335
  %v2340 = vmul.f32 %v2204, %v2269
  %v2341 = vmul.f32 %v2205, %v2279
  %v2342 = vmul.f32 %v2206, %v2289
  %v2343 = vmul.f32 %v2207, %v2299
  %v2344 = vmul.f32 %v2208, %v2309
  %v2345 = vmul.f32 %v2209, %v2319
  %v2346 = vmul.f32 %v2210, %v2329
  %v2347 = vmul.f32 %v2211, %v2339
  %s2348 = scalar_lea.vmem %s10, 3
  %v2349 = vld [vmem:[%s2348] sm:$0x1]
  %v2351 = vperm.slane %v2349, 0
  %v2353 = vmul.f32 %v2340, %v2351
  %v2354 = vmul.f32 %v2341, %v2351
  %v2355 = vmul.f32 %v2342, %v2351
  %v2356 = vmul.f32 %v2343, %v2351
  %v2357 = vmul.f32 %v2344, %v2351
  %v2358 = vmul.f32 %v2345, %v2351
  %v2359 = vmul.f32 %v2346, %v2351
  %v2360 = vmul.f32 %v2347, %v2351
  %s2361 = scalar_lea.vmem %s11, 3
  %v2362 = vld [vmem:[%s2361] sm:$0x1]
  %v2364 = vperm.slane %v2362, 0
  %v2366 = vadd.f32 %v2353, %v2364
  %v2367 = vadd.f32 %v2354, %v2364
  %v2368 = vadd.f32 %v2355, %v2364
  %v2369 = vadd.f32 %v2356, %v2364
  %v2370 = vadd.f32 %v2357, %v2364
  %v2371 = vadd.f32 %v2358, %v2364
  %v2372 = vadd.f32 %v2359, %v2364
  %v2373 = vadd.f32 %v2360, %v2364
  %s2374 = scalar_lea.vmem %s12, 16
  %v2375 = vld [vmem:[%s2374] sm:$0xf]
  %v2376 = vld [vmem:[%s2374 + $0x4] sm:$0xf]
  %v2377 = vld [vmem:[%s2374 + $0x8] sm:$0xf]
  %v2378 = vld [vmem:[%s2374 + $0xc] sm:$0xf]
  %v2379 = vpack.c.bf16 %v2367, %v2366
  %v2380 = vpack.c.bf16 %v2369, %v2368
  %v2381 = vpack.c.bf16 %v2371, %v2370
  %v2382 = vpack.c.bf16 %v2373, %v2372
  %v2387 = vunpack.c.l.b16 %v2375
  %v2388 = vunpack.c.l.b16 %v2376
  %v2389 = vunpack.c.l.b16 %v2377
  %v2390 = vunpack.c.l.b16 %v2378
  %v2391 = vpack.c.b16 %v2388, %v2387
  %v2392 = vpack.c.b16 %v2390, %v2389
  %v2396 = vsel %vm80, %v2379, 0
  %v2399 = vsel %vm80, %v2380, 0
  %v2402 = vsel %vm80, %v2381, 0
  %v2405 = vsel %vm80, %v2382, 0
  %2407 = vmatpush.bf16.msra.mxu0 0
  %2408 = vmatpush.bf16.msra.mxu0 0
  %2409 = vmatpush.bf16.msra.mxu0 0
  %2410 = vmatpush.bf16.msra.mxu0 0
  %2411 = vmatpush.bf16.msra.mxu0 0
  %2412 = vmatpush.bf16.msra.mxu0 0
  %2413 = vmatpush.bf16.msra.mxu0 %v2392
  %2414 = vmatpush.bf16.msra.mxu0 %v2391
  %2415 = vmatmul.bf16.gmra.mxu0 %v2396
  %v2416 = vpop.f32.mrf.mxu0
  %v2417 = vadd.f32 0.0, %v2416
  %v2418 = vpop.f32.mrf.mxu0
  %v2419 = vadd.f32 0.0, %v2418
  %2420 = vmatmul.bf16.gmra.mxu0 %v2399
  %v2421 = vpop.f32.mrf.mxu0
  %v2422 = vadd.f32 0.0, %v2421
  %v2423 = vpop.f32.mrf.mxu0
  %v2424 = vadd.f32 0.0, %v2423
  %2425 = vmatmul.bf16.gmra.mxu0 %v2402
  %v2426 = vpop.f32.mrf.mxu0
  %v2427 = vadd.f32 0.0, %v2426
  %v2428 = vpop.f32.mrf.mxu0
  %v2429 = vadd.f32 0.0, %v2428
  %2430 = vmatmul.bf16.gmra.mxu0 %v2405
  %v2431 = vpop.f32.mrf.mxu0
  %v2432 = vadd.f32 0.0, %v2431
  %v2433 = vpop.f32.mrf.mxu0
  %v2434 = vadd.f32 0.0, %v2433
  %2435 = vdwg.mxu0
  %v2436 = vadd.f32 %v1533, %v2417
  %v2437 = vadd.f32 %v1535, %v2419
  %v2438 = vadd.f32 %v1538, %v2422
  %v2439 = vadd.f32 %v1540, %v2424
  %v2440 = vadd.f32 %v1543, %v2427
  %v2441 = vadd.f32 %v1545, %v2429
  %v2442 = vadd.f32 %v1548, %v2432
  %v2443 = vadd.f32 %v1550, %v2434
  %s2444 = scalar_lea.vmem %s13, 1
  %v2445 = vld [vmem:[%s2444] sm:$0x1]
  %v2447 = vperm.slane %v2445, 0
  %v2449 = vadd.f32 %v2436, %v2447
  %v2450 = vadd.f32 %v2437, %v2447
  %v2451 = vadd.f32 %v2438, %v2447
  %v2452 = vadd.f32 %v2439, %v2447
  %v2453 = vadd.f32 %v2440, %v2447
  %v2454 = vadd.f32 %v2441, %v2447
  %v2455 = vadd.f32 %v2442, %v2447
  %v2456 = vadd.f32 %v2443, %v2447
  %vm2457 = vcmask 64512
  %2458 = vst.msk [vmem:[%s14] sm:$0xff] %vm2457, %v2449
  %2459 = vst.msk [vmem:[%s14 + $0x8] sm:$0xff] %vm2457, %v2450
  %2460 = vst.msk [vmem:[%s14 + $0x10] sm:$0xff] %vm2457, %v2451
  %2461 = vst.msk [vmem:[%s14 + $0x18] sm:$0xff] %vm2457, %v2452
  %2462 = vst.msk [vmem:[%s14 + $0x20] sm:$0xff] %vm2457, %v2453
  %2463 = vst.msk [vmem:[%s14 + $0x28] sm:$0xff] %vm2457, %v2454
  %2464 = vst.msk [vmem:[%s14 + $0x30] sm:$0xff] %vm2457, %v2455
  %2465 = vst.msk [vmem:[%s14 + $0x38] sm:$0xff] %vm2457, %v2456
  // Predicated region
  $region58: #{contrast_rnn_forward.1} parent=0 // pred_check
    _
  $region59: #{contrast_rnn_forward.1} parent=0 // pred_check_branch
    %2467 = sbr.rel (0) target = $region61
  $region60: #{contrast_rnn_forward.1} parent=0 // pred_region
    _
  $region61: #{contrast_rnn_forward.1} parent=0 // pred_fallthru
    _
  // Predicated region
  $region62: #{contrast_rnn_forward.1} parent=0 // pred_check
    _
  $region63: #{contrast_rnn_forward.1} parent=0 // pred_check_branch
    %2469 = sbr.rel (0) target = $region65
  $region64: #{contrast_rnn_forward.1} parent=0 // pred_region
    _
  $region65: #{contrast_rnn_forward.1} parent=0 // pred_fallthru
    _

</llo_original>
